<compile_context>
chip_gen: v6e
topology: v6e:2x2x1
jax: 0.10.0
libtpu: 0.0.40
codegen_flags: <defaults>
</compile_context>

<pallas_src>
import jax
import jax.numpy as jnp
from jax import lax
from jax.experimental import pallas as pl
from jax.experimental.pallas import tpu as pltpu


# ----------------------------------------------------------------------------
# GRU recurrence Pallas kernel: whole (sub-)sequence resident, in-kernel loop.
# Inputs are the PRE-COMPUTED input-side gate activations (one array per gate),
# so the kernel only performs the h-dependent matmuls + gate elementwise math.
# ----------------------------------------------------------------------------
def _gru_recurrence_kernel(gir_ref, giz_ref, gin_ref,
                           whr_ref, whz_ref, whn_ref,
                           bhn_ref, out_ref):
    T, Bx, H = gir_ref.shape

    # Weights / bias loaded (and broadcast) once, hoisted out of the time loop.
    w_r = whr_ref[...]                                   # (H, H)
    w_z = whz_ref[...]                                   # (H, H)
    w_n = whn_ref[...]                                   # (H, H)
    b_n = jnp.broadcast_to(bhn_ref[...], (Bx, H))        # (Bx, H), hoisted

    def step(t, h):
        # h-dependent matmuls; each output is lane-aligned at 0 (per-gate W_hh).
        h_r = jnp.dot(h, w_r, preferred_element_type=jnp.float32)
        h_z = jnp.dot(h, w_z, preferred_element_type=jnp.float32)
        h_n = jnp.dot(h, w_n, preferred_element_type=jnp.float32) + b_n

        r = jax.nn.sigmoid(gir_ref[t] + h_r)
        z = jax.nn.sigmoid(giz_ref[t] + h_z)
        n = jnp.tanh(gin_ref[t] + r * h_n)
        h_new = (1.0 - z) * n + z * h

        out_ref[t] = h_new.astype(out_ref.dtype)
        return h_new

    h0 = jnp.zeros((Bx, H), jnp.float32)
    # Short sequences: fully unroll (LLO scheduler visibility); else unroll by 8.
    lax.fori_loop(0, T, step, h0, unroll=True if T <= 16 else 8)


def gru_recurrence(gi_r, gi_z, gi_n, whh_r_t, whh_z_t, whh_n_t, bhh_n):
    """Run the h-dependent part of a GRU over a time-major sequence.

    gi_*:    (T, Bx, H)  precomputed x @ W_i{r,z,n} (+ folded biases)
    whh_*_t: (H, H)      pre-transposed recurrent weights (per gate)
    bhh_n:   (1, H)      recurrent bias of the candidate gate (cannot be folded)
    returns  (T, Bx, H)  hidden states for every time step (h0 = 0).
    """
    T, Bx, H = gi_r.shape
    vmem = pl.BlockSpec(memory_space=pltpu.MemorySpace.VMEM)
    return pl.pallas_call(
        _gru_recurrence_kernel,
        out_shape=jax.ShapeDtypeStruct((T, Bx, H), jnp.float32),
        in_specs=[vmem] * 7,
        out_specs=vmem,
    )(gi_r, gi_z, gi_n, whh_r_t, whh_z_t, whh_n_t, bhh_n)


# ----------------------------------------------------------------------------
# DRNN plumbing (dilation reshapes + hoisted fused input projection in XLA)
# ----------------------------------------------------------------------------
def drnn_layer(x, lp, rate):
    """One dilated-GRU layer. x: (T, B, I) -> (T, B, H)."""
    T, B, I = x.shape
    H = lp["whh_r_t"].shape[0]
    n_steps = -(-T // rate)  # ceil
    pad = n_steps * rate - T
    if pad:
        x = jnp.concatenate([x, jnp.zeros((pad, B, I), x.dtype)], axis=0)

    # Interleave via pure reshape: (n_steps*rate, B, I) -> (n_steps, rate*B, I).
    # Step i, batch-chunk j  <->  original time  i*rate + j   (standard DRNN).
    xd = x.reshape(n_steps, rate * B, I)
    Bx = rate * B
    flat = xd.reshape(n_steps * Bx, I)

    # Hoisted input projection: ONE matmul over the whole sequence for all
    # three gates.  b_hh_r / b_hh_z are additive only, so they fold in here;
    # b_hh_n must stay inside the recurrence (it is multiplied by r).
    b_fold = jnp.concatenate(
        [lp["bih_r"] + lp["bhh_r"], lp["bih_z"] + lp["bhh_z"], lp["bih_n"]],
        axis=1)                                            # (1, 3H)
    gi = flat @ lp["wih_t"] + b_fold                       # (n_steps*Bx, 3H)
    gi = gi.reshape(n_steps, Bx, 3 * H)
    # Per-gate slabs split in XLA so each Pallas input lands lane-0 aligned.
    gi_r = gi[..., 0 * H:1 * H]
    gi_z = gi[..., 1 * H:2 * H]
    gi_n = gi[..., 2 * H:3 * H]

    hd = gru_recurrence(gi_r, gi_z, gi_n,
                        lp["whh_r_t"], lp["whh_z_t"], lp["whh_n_t"],
                        lp["bhh_n"])                       # (n_steps, rate*B, H)

    # De-interleave via pure reshape and drop padded tail timesteps.
    out = hd.reshape(n_steps * rate, B, H)
    return out[:T]


def classifier_forward(inputs, params):
    """inputs: (T, B, n_inputs). Returns (pred, all_time_step)."""
    x = inputs
    for l, lp in enumerate(params["gru_layers"]):
        x = drnn_layer(x, lp, rate=2 ** l)                 # (T, B, H)

    # Tiny output head (C=4 lanes): left to XLA; a dedicated Pallas launch plus
    # masked 4-lane stores would cost more than the work itself.
    logits = x @ params["w_out_t"] + params["b_out"]       # (T, B, C)

    all_time_step = logits                                 # (T, B, n_classes)
    pred = logits[-1]                                      # last-step logits, (B, n_classes)
    return pred, all_time_step


# ----------------------------------------------------------------------------
# Deterministic parameter construction (PyTorch-style uniform(-1/sqrt(H), 1/sqrt(H)))
# Input weights are stored pre-transposed and gate-concatenated (order r, z, n);
# recurrent weights stay per-gate so kernel matmul outputs are lane-aligned.
# ----------------------------------------------------------------------------
def make_params(key, n_inputs, n_hidden, n_layers, n_classes):
    params = {"gru_layers": []}
    scale = 1.0 / jnp.sqrt(jnp.float32(n_hidden))

    def unif(k, shape):
        return jax.random.uniform(k, shape, jnp.float32, -scale, scale)

    for l in range(n_layers):
        in_dim = n_inputs if l == 0 else n_hidden
        key, *ks = jax.random.split(key, 13)
        wih_r_t = unif(ks[0], (in_dim, n_hidden))
        wih_z_t = unif(ks[1], (in_dim, n_hidden))
        wih_n_t = unif(ks[2], (in_dim, n_hidden))
        lp = {
            # fused input-projection weight (in_dim, 3H), gate order r,z,n
            "wih_t": jnp.concatenate([wih_r_t, wih_z_t, wih_n_t], axis=1),
            "whh_r_t": unif(ks[3], (n_hidden, n_hidden)),
            "whh_z_t": unif(ks[4], (n_hidden, n_hidden)),
            "whh_n_t": unif(ks[5], (n_hidden, n_hidden)),
            "bih_r": unif(ks[6], (1, n_hidden)),
            "bih_z": unif(ks[7], (1, n_hidden)),
            "bih_n": unif(ks[8], (1, n_hidden)),
            "bhh_r": unif(ks[9], (1, n_hidden)),
            "bhh_z": unif(ks[10], (1, n_hidden)),
            "bhh_n": unif(ks[11], (1, n_hidden)),
        }
        params["gru_layers"].append(lp)

    key, k5, k6 = jax.random.split(key, 3)
    params["w_out_t"] = unif(k5, (n_hidden, n_classes))
    params["b_out"] = unif(k6, (1, n_classes))
    return params


if __name__ == "__main__":
    n_inputs, n_hidden, n_layers, n_classes = 16, 32, 3, 4
    T, B = 8, 2

    key = jax.random.PRNGKey(0)
    key, kx = jax.random.split(key)
    inputs = jax.random.normal(kx, (T, B, n_inputs), jnp.float32)   # layout: (T, B, I)

    params = make_params(key, n_inputs, n_hidden, n_layers, n_classes)

    fwd = jax.jit(classifier_forward)
    pred, all_time_step = fwd(inputs, params)
    jax.block_until_ready((pred, all_time_step))

    assert pred.shape == (B, n_classes)
    assert all_time_step.shape == (T, B, n_classes)
    assert bool(jnp.all(jnp.isfinite(pred))) and bool(jnp.all(jnp.isfinite(all_time_step)))
    print("KERNEL_OK")
</pallas_src>

<mosaic_0001>
module attributes {stable_mosaic.version = 11 : i64} {
  func.func @_gru_recurrence_kernel(%arg0: memref<8x2x32xf32, #tpu.memory_space<vmem>>, %arg1: memref<8x2x32xf32, #tpu.memory_space<vmem>>, %arg2: memref<8x2x32xf32, #tpu.memory_space<vmem>>, %arg3: memref<32x32xf32, #tpu.memory_space<vmem>>, %arg4: memref<32x32xf32, #tpu.memory_space<vmem>>, %arg5: memref<32x32xf32, #tpu.memory_space<vmem>>, %arg6: memref<1x32xf32, #tpu.memory_space<vmem>>, %arg7: memref<8x2x32xf32, #tpu.memory_space<vmem>>) attributes {dimension_semantics = [], scalar_prefetch = 0 : i64, scratch_operands = 0 : i64, tpu.core_type = #tpu.core_type<tc>} {
    %c0 = arith.constant 0 : index
    %c0_0 = arith.constant 0 : index
    %0 = vector.load %arg3[%c0, %c0_0] : memref<32x32xf32, #tpu.memory_space<vmem>>, vector<32x32xf32>
    %c0_1 = arith.constant 0 : index
    %c0_2 = arith.constant 0 : index
    %1 = vector.load %arg4[%c0_1, %c0_2] : memref<32x32xf32, #tpu.memory_space<vmem>>, vector<32x32xf32>
    %c0_3 = arith.constant 0 : index
    %c0_4 = arith.constant 0 : index
    %2 = vector.load %arg5[%c0_3, %c0_4] : memref<32x32xf32, #tpu.memory_space<vmem>>, vector<32x32xf32>
    %c0_5 = arith.constant 0 : index
    %c0_6 = arith.constant 0 : index
    %3 = vector.load %arg6[%c0_5, %c0_6] : memref<1x32xf32, #tpu.memory_space<vmem>>, vector<1x32xf32>
    %4 = vector.shape_cast %3 : vector<1x32xf32> to vector<1x32xf32>
    %5 = vector.broadcast %4 : vector<1x32xf32> to vector<2x32xf32>
    %cst = arith.constant 0.000000e+00 : f32
    %6 = vector.broadcast %cst : f32 to vector<2x32xf32>
    %c0_i32 = arith.constant 0 : i32
    %cst_7 = arith.constant dense<0.000000e+00> : vector<2x32xf32>
    %7 = tpu.matmul %6, %0, %cst_7 {dimension_numbers = #tpu.dot_dimension_numbers<[1], [0], [0], [1], [0, 0, 1, 1], [], []>} : vector<2x32xf32>, vector<32x32xf32>, vector<2x32xf32> -> vector<2x32xf32>
    %cst_8 = arith.constant dense<0.000000e+00> : vector<2x32xf32>
    %8 = tpu.matmul %6, %1, %cst_8 {dimension_numbers = #tpu.dot_dimension_numbers<[1], [0], [0], [1], [0, 0, 1, 1], [], []>} : vector<2x32xf32>, vector<32x32xf32>, vector<2x32xf32> -> vector<2x32xf32>
    %cst_9 = arith.constant dense<0.000000e+00> : vector<2x32xf32>
    %9 = tpu.matmul %6, %2, %cst_9 {dimension_numbers = #tpu.dot_dimension_numbers<[1], [0], [0], [1], [0, 0, 1, 1], [], []>} : vector<2x32xf32>, vector<32x32xf32>, vector<2x32xf32> -> vector<2x32xf32>
    %10 = arith.addf %9, %5 : vector<2x32xf32>
    %11 = arith.index_cast %c0_i32 : i32 to index
    %c0_10 = arith.constant 0 : index
    %c0_11 = arith.constant 0 : index
    %12 = vector.load %arg0[%11, %c0_10, %c0_11] : memref<8x2x32xf32, #tpu.memory_space<vmem>>, vector<1x2x32xf32>
    %13 = vector.shape_cast %12 : vector<1x2x32xf32> to vector<2x32xf32>
    %14 = arith.addf %13, %7 : vector<2x32xf32>
    %15 = arith.negf %14 : vector<2x32xf32>
    %16 = math.exp %15 : vector<2x32xf32>
    %cst_12 = arith.constant 1.000000e+00 : f32
    %17 = vector.broadcast %cst_12 : f32 to vector<2x32xf32>
    %18 = arith.addf %17, %16 : vector<2x32xf32>
    %19 = arith.divf %17, %18 : vector<2x32xf32>
    %20 = arith.index_cast %c0_i32 : i32 to index
    %c0_13 = arith.constant 0 : index
    %c0_14 = arith.constant 0 : index
    %21 = vector.load %arg1[%20, %c0_13, %c0_14] : memref<8x2x32xf32, #tpu.memory_space<vmem>>, vector<1x2x32xf32>
    %22 = vector.shape_cast %21 : vector<1x2x32xf32> to vector<2x32xf32>
    %23 = arith.addf %22, %8 : vector<2x32xf32>
    %24 = arith.negf %23 : vector<2x32xf32>
    %25 = math.exp %24 : vector<2x32xf32>
    %cst_15 = arith.constant 1.000000e+00 : f32
    %26 = vector.broadcast %cst_15 : f32 to vector<2x32xf32>
    %27 = arith.addf %26, %25 : vector<2x32xf32>
    %28 = arith.divf %26, %27 : vector<2x32xf32>
    %29 = arith.index_cast %c0_i32 : i32 to index
    %c0_16 = arith.constant 0 : index
    %c0_17 = arith.constant 0 : index
    %30 = vector.load %arg2[%29, %c0_16, %c0_17] : memref<8x2x32xf32, #tpu.memory_space<vmem>>, vector<1x2x32xf32>
    %31 = vector.shape_cast %30 : vector<1x2x32xf32> to vector<2x32xf32>
    %32 = arith.mulf %19, %10 : vector<2x32xf32>
    %33 = arith.addf %31, %32 : vector<2x32xf32>
    %34 = math.tanh %33 : vector<2x32xf32>
    %cst_18 = arith.constant 1.000000e+00 : f32
    %35 = vector.broadcast %cst_18 : f32 to vector<2x32xf32>
    %36 = arith.subf %35, %28 : vector<2x32xf32>
    %37 = arith.mulf %36, %34 : vector<2x32xf32>
    %38 = arith.mulf %28, %6 : vector<2x32xf32>
    %39 = arith.addf %37, %38 : vector<2x32xf32>
    %40 = arith.index_cast %c0_i32 : i32 to index
    %c0_19 = arith.constant 0 : index
    %c0_20 = arith.constant 0 : index
    %41 = vector.load %arg7[%40, %c0_19, %c0_20] : memref<8x2x32xf32, #tpu.memory_space<vmem>>, vector<1x2x32xf32>
    %42 = vector.shape_cast %41 : vector<1x2x32xf32> to vector<2x32xf32>
    %43 = vector.shape_cast %39 : vector<2x32xf32> to vector<1x2x32xf32>
    tpu.vector_store %arg7[%40, %c0_19, %c0_20], %43 {strides = array<i32>} : memref<8x2x32xf32, #tpu.memory_space<vmem>>, vector<1x2x32xf32>,
    %c1_i32 = arith.constant 1 : i32
    %cst_21 = arith.constant dense<0.000000e+00> : vector<2x32xf32>
    %44 = tpu.matmul %39, %0, %cst_21 {dimension_numbers = #tpu.dot_dimension_numbers<[1], [0], [0], [1], [0, 0, 1, 1], [], []>} : vector<2x32xf32>, vector<32x32xf32>, vector<2x32xf32> -> vector<2x32xf32>
    %cst_22 = arith.constant dense<0.000000e+00> : vector<2x32xf32>
    %45 = tpu.matmul %39, %1, %cst_22 {dimension_numbers = #tpu.dot_dimension_numbers<[1], [0], [0], [1], [0, 0, 1, 1], [], []>} : vector<2x32xf32>, vector<32x32xf32>, vector<2x32xf32> -> vector<2x32xf32>
    %cst_23 = arith.constant dense<0.000000e+00> : vector<2x32xf32>
    %46 = tpu.matmul %39, %2, %cst_23 {dimension_numbers = #tpu.dot_dimension_numbers<[1], [0], [0], [1], [0, 0, 1, 1], [], []>} : vector<2x32xf32>, vector<32x32xf32>, vector<2x32xf32> -> vector<2x32xf32>
    %47 = arith.addf %46, %5 : vector<2x32xf32>
    %48 = arith.index_cast %c1_i32 : i32 to index
    %c0_24 = arith.constant 0 : index
    %c0_25 = arith.constant 0 : index
    %49 = vector.load %arg0[%48, %c0_24, %c0_25] : memref<8x2x32xf32, #tpu.memory_space<vmem>>, vector<1x2x32xf32>
    %50 = vector.shape_cast %49 : vector<1x2x32xf32> to vector<2x32xf32>
    %51 = arith.addf %50, %44 : vector<2x32xf32>
    %52 = arith.negf %51 : vector<2x32xf32>
    %53 = math.exp %52 : vector<2x32xf32>
    %cst_26 = arith.constant 1.000000e+00 : f32
    %54 = vector.broadcast %cst_26 : f32 to vector<2x32xf32>
    %55 = arith.addf %54, %53 : vector<2x32xf32>
    %56 = arith.divf %54, %55 : vector<2x32xf32>
    %57 = arith.index_cast %c1_i32 : i32 to index
    %c0_27 = arith.constant 0 : index
    %c0_28 = arith.constant 0 : index
    %58 = vector.load %arg1[%57, %c0_27, %c0_28] : memref<8x2x32xf32, #tpu.memory_space<vmem>>, vector<1x2x32xf32>
    %59 = vector.shape_cast %58 : vector<1x2x32xf32> to vector<2x32xf32>
    %60 = arith.addf %59, %45 : vector<2x32xf32>
    %61 = arith.negf %60 : vector<2x32xf32>
    %62 = math.exp %61 : vector<2x32xf32>
    %cst_29 = arith.constant 1.000000e+00 : f32
    %63 = vector.broadcast %cst_29 : f32 to vector<2x32xf32>
    %64 = arith.addf %63, %62 : vector<2x32xf32>
    %65 = arith.divf %63, %64 : vector<2x32xf32>
    %66 = arith.index_cast %c1_i32 : i32 to index
    %c0_30 = arith.constant 0 : index
    %c0_31 = arith.constant 0 : index
    %67 = vector.load %arg2[%66, %c0_30, %c0_31] : memref<8x2x32xf32, #tpu.memory_space<vmem>>, vector<1x2x32xf32>
    %68 = vector.shape_cast %67 : vector<1x2x32xf32> to vector<2x32xf32>
    %69 = arith.mulf %56, %47 : vector<2x32xf32>
    %70 = arith.addf %68, %69 : vector<2x32xf32>
    %71 = math.tanh %70 : vector<2x32xf32>
    %cst_32 = arith.constant 1.000000e+00 : f32
    %72 = vector.broadcast %cst_32 : f32 to vector<2x32xf32>
    %73 = arith.subf %72, %65 : vector<2x32xf32>
    %74 = arith.mulf %73, %71 : vector<2x32xf32>
    %75 = arith.mulf %65, %39 : vector<2x32xf32>
    %76 = arith.addf %74, %75 : vector<2x32xf32>
    %77 = arith.index_cast %c1_i32 : i32 to index
    %c0_33 = arith.constant 0 : index
    %c0_34 = arith.constant 0 : index
    %78 = vector.load %arg7[%77, %c0_33, %c0_34] : memref<8x2x32xf32, #tpu.memory_space<vmem>>, vector<1x2x32xf32>
    %79 = vector.shape_cast %78 : vector<1x2x32xf32> to vector<2x32xf32>
    %80 = vector.shape_cast %76 : vector<2x32xf32> to vector<1x2x32xf32>
    tpu.vector_store %arg7[%77, %c0_33, %c0_34], %80 {strides = array<i32>} : memref<8x2x32xf32, #tpu.memory_space<vmem>>, vector<1x2x32xf32>,
    %c2_i32 = arith.constant 2 : i32
    %cst_35 = arith.constant dense<0.000000e+00> : vector<2x32xf32>
    %81 = tpu.matmul %76, %0, %cst_35 {dimension_numbers = #tpu.dot_dimension_numbers<[1], [0], [0], [1], [0, 0, 1, 1], [], []>} : vector<2x32xf32>, vector<32x32xf32>, vector<2x32xf32> -> vector<2x32xf32>
    %cst_36 = arith.constant dense<0.000000e+00> : vector<2x32xf32>
    %82 = tpu.matmul %76, %1, %cst_36 {dimension_numbers = #tpu.dot_dimension_numbers<[1], [0], [0], [1], [0, 0, 1, 1], [], []>} : vector<2x32xf32>, vector<32x32xf32>, vector<2x32xf32> -> vector<2x32xf32>
    %cst_37 = arith.constant dense<0.000000e+00> : vector<2x32xf32>
    %83 = tpu.matmul %76, %2, %cst_37 {dimension_numbers = #tpu.dot_dimension_numbers<[1], [0], [0], [1], [0, 0, 1, 1], [], []>} : vector<2x32xf32>, vector<32x32xf32>, vector<2x32xf32> -> vector<2x32xf32>
    %84 = arith.addf %83, %5 : vector<2x32xf32>
    %85 = arith.index_cast %c2_i32 : i32 to index
    %c0_38 = arith.constant 0 : index
    %c0_39 = arith.constant 0 : index
    %86 = vector.load %arg0[%85, %c0_38, %c0_39] : memref<8x2x32xf32, #tpu.memory_space<vmem>>, vector<1x2x32xf32>
    %87 = vector.shape_cast %86 : vector<1x2x32xf32> to vector<2x32xf32>
    %88 = arith.addf %87, %81 : vector<2x32xf32>
    %89 = arith.negf %88 : vector<2x32xf32>
    %90 = math.exp %89 : vector<2x32xf32>
    %cst_40 = arith.constant 1.000000e+00 : f32
    %91 = vector.broadcast %cst_40 : f32 to vector<2x32xf32>
    %92 = arith.addf %91, %90 : vector<2x32xf32>
    %93 = arith.divf %91, %92 : vector<2x32xf32>
    %94 = arith.index_cast %c2_i32 : i32 to index
    %c0_41 = arith.constant 0 : index
    %c0_42 = arith.constant 0 : index
    %95 = vector.load %arg1[%94, %c0_41, %c0_42] : memref<8x2x32xf32, #tpu.memory_space<vmem>>, vector<1x2x32xf32>
    %96 = vector.shape_cast %95 : vector<1x2x32xf32> to vector<2x32xf32>
    %97 = arith.addf %96, %82 : vector<2x32xf32>
    %98 = arith.negf %97 : vector<2x32xf32>
    %99 = math.exp %98 : vector<2x32xf32>
    %cst_43 = arith.constant 1.000000e+00 : f32
    %100 = vector.broadcast %cst_43 : f32 to vector<2x32xf32>
    %101 = arith.addf %100, %99 : vector<2x32xf32>
    %102 = arith.divf %100, %101 : vector<2x32xf32>
    %103 = arith.index_cast %c2_i32 : i32 to index
    %c0_44 = arith.constant 0 : index
    %c0_45 = arith.constant 0 : index
    %104 = vector.load %arg2[%103, %c0_44, %c0_45] : memref<8x2x32xf32, #tpu.memory_space<vmem>>, vector<1x2x32xf32>
    %105 = vector.shape_cast %104 : vector<1x2x32xf32> to vector<2x32xf32>
    %106 = arith.mulf %93, %84 : vector<2x32xf32>
    %107 = arith.addf %105, %106 : vector<2x32xf32>
    %108 = math.tanh %107 : vector<2x32xf32>
    %cst_46 = arith.constant 1.000000e+00 : f32
    %109 = vector.broadcast %cst_46 : f32 to vector<2x32xf32>
    %110 = arith.subf %109, %102 : vector<2x32xf32>
    %111 = arith.mulf %110, %108 : vector<2x32xf32>
    %112 = arith.mulf %102, %76 : vector<2x32xf32>
    %113 = arith.addf %111, %112 : vector<2x32xf32>
    %114 = arith.index_cast %c2_i32 : i32 to index
    %c0_47 = arith.constant 0 : index
    %c0_48 = arith.constant 0 : index
    %115 = vector.load %arg7[%114, %c0_47, %c0_48] : memref<8x2x32xf32, #tpu.memory_space<vmem>>, vector<1x2x32xf32>
    %116 = vector.shape_cast %115 : vector<1x2x32xf32> to vector<2x32xf32>
    %117 = vector.shape_cast %113 : vector<2x32xf32> to vector<1x2x32xf32>
    tpu.vector_store %arg7[%114, %c0_47, %c0_48], %117 {strides = array<i32>} : memref<8x2x32xf32, #tpu.memory_space<vmem>>, vector<1x2x32xf32>,
    %c3_i32 = arith.constant 3 : i32
    %cst_49 = arith.constant dense<0.000000e+00> : vector<2x32xf32>
    %118 = tpu.matmul %113, %0, %cst_49 {dimension_numbers = #tpu.dot_dimension_numbers<[1], [0], [0], [1], [0, 0, 1, 1], [], []>} : vector<2x32xf32>, vector<32x32xf32>, vector<2x32xf32> -> vector<2x32xf32>
    %cst_50 = arith.constant dense<0.000000e+00> : vector<2x32xf32>
    %119 = tpu.matmul %113, %1, %cst_50 {dimension_numbers = #tpu.dot_dimension_numbers<[1], [0], [0], [1], [0, 0, 1, 1], [], []>} : vector<2x32xf32>, vector<32x32xf32>, vector<2x32xf32> -> vector<2x32xf32>
    %cst_51 = arith.constant dense<0.000000e+00> : vector<2x32xf32>
    %120 = tpu.matmul %113, %2, %cst_51 {dimension_numbers = #tpu.dot_dimension_numbers<[1], [0], [0], [1], [0, 0, 1, 1], [], []>} : vector<2x32xf32>, vector<32x32xf32>, vector<2x32xf32> -> vector<2x32xf32>
    %121 = arith.addf %120, %5 : vector<2x32xf32>
    %122 = arith.index_cast %c3_i32 : i32 to index
    %c0_52 = arith.constant 0 : index
    %c0_53 = arith.constant 0 : index
    %123 = vector.load %arg0[%122, %c0_52, %c0_53] : memref<8x2x32xf32, #tpu.memory_space<vmem>>, vector<1x2x32xf32>
    %124 = vector.shape_cast %123 : vector<1x2x32xf32> to vector<2x32xf32>
    %125 = arith.addf %124, %118 : vector<2x32xf32>
    %126 = arith.negf %125 : vector<2x32xf32>
    %127 = math.exp %126 : vector<2x32xf32>
    %cst_54 = arith.constant 1.000000e+00 : f32
    %128 = vector.broadcast %cst_54 : f32 to vector<2x32xf32>
    %129 = arith.addf %128, %127 : vector<2x32xf32>
    %130 = arith.divf %128, %129 : vector<2x32xf32>
    %131 = arith.index_cast %c3_i32 : i32 to index
    %c0_55 = arith.constant 0 : index
    %c0_56 = arith.constant 0 : index
    %132 = vector.load %arg1[%131, %c0_55, %c0_56] : memref<8x2x32xf32, #tpu.memory_space<vmem>>, vector<1x2x32xf32>
    %133 = vector.shape_cast %132 : vector<1x2x32xf32> to vector<2x32xf32>
    %134 = arith.addf %133, %119 : vector<2x32xf32>
    %135 = arith.negf %134 : vector<2x32xf32>
    %136 = math.exp %135 : vector<2x32xf32>
    %cst_57 = arith.constant 1.000000e+00 : f32
    %137 = vector.broadcast %cst_57 : f32 to vector<2x32xf32>
    %138 = arith.addf %137, %136 : vector<2x32xf32>
    %139 = arith.divf %137, %138 : vector<2x32xf32>
    %140 = arith.index_cast %c3_i32 : i32 to index
    %c0_58 = arith.constant 0 : index
    %c0_59 = arith.constant 0 : index
    %141 = vector.load %arg2[%140, %c0_58, %c0_59] : memref<8x2x32xf32, #tpu.memory_space<vmem>>, vector<1x2x32xf32>
    %142 = vector.shape_cast %141 : vector<1x2x32xf32> to vector<2x32xf32>
    %143 = arith.mulf %130, %121 : vector<2x32xf32>
    %144 = arith.addf %142, %143 : vector<2x32xf32>
    %145 = math.tanh %144 : vector<2x32xf32>
    %cst_60 = arith.constant 1.000000e+00 : f32
    %146 = vector.broadcast %cst_60 : f32 to vector<2x32xf32>
    %147 = arith.subf %146, %139 : vector<2x32xf32>
    %148 = arith.mulf %147, %145 : vector<2x32xf32>
    %149 = arith.mulf %139, %113 : vector<2x32xf32>
    %150 = arith.addf %148, %149 : vector<2x32xf32>
    %151 = arith.index_cast %c3_i32 : i32 to index
    %c0_61 = arith.constant 0 : index
    %c0_62 = arith.constant 0 : index
    %152 = vector.load %arg7[%151, %c0_61, %c0_62] : memref<8x2x32xf32, #tpu.memory_space<vmem>>, vector<1x2x32xf32>
    %153 = vector.shape_cast %152 : vector<1x2x32xf32> to vector<2x32xf32>
    %154 = vector.shape_cast %150 : vector<2x32xf32> to vector<1x2x32xf32>
    tpu.vector_store %arg7[%151, %c0_61, %c0_62], %154 {strides = array<i32>} : memref<8x2x32xf32, #tpu.memory_space<vmem>>, vector<1x2x32xf32>,
    %c4_i32 = arith.constant 4 : i32
    %cst_63 = arith.constant dense<0.000000e+00> : vector<2x32xf32>
    %155 = tpu.matmul %150, %0, %cst_63 {dimension_numbers = #tpu.dot_dimension_numbers<[1], [0], [0], [1], [0, 0, 1, 1], [], []>} : vector<2x32xf32>, vector<32x32xf32>, vector<2x32xf32> -> vector<2x32xf32>
    %cst_64 = arith.constant dense<0.000000e+00> : vector<2x32xf32>
    %156 = tpu.matmul %150, %1, %cst_64 {dimension_numbers = #tpu.dot_dimension_numbers<[1], [0], [0], [1], [0, 0, 1, 1], [], []>} : vector<2x32xf32>, vector<32x32xf32>, vector<2x32xf32> -> vector<2x32xf32>
    %cst_65 = arith.constant dense<0.000000e+00> : vector<2x32xf32>
    %157 = tpu.matmul %150, %2, %cst_65 {dimension_numbers = #tpu.dot_dimension_numbers<[1], [0], [0], [1], [0, 0, 1, 1], [], []>} : vector<2x32xf32>, vector<32x32xf32>, vector<2x32xf32> -> vector<2x32xf32>
    %158 = arith.addf %157, %5 : vector<2x32xf32>
    %159 = arith.index_cast %c4_i32 : i32 to index
    %c0_66 = arith.constant 0 : index
    %c0_67 = arith.constant 0 : index
    %160 = vector.load %arg0[%159, %c0_66, %c0_67] : memref<8x2x32xf32, #tpu.memory_space<vmem>>, vector<1x2x32xf32>
    %161 = vector.shape_cast %160 : vector<1x2x32xf32> to vector<2x32xf32>
    %162 = arith.addf %161, %155 : vector<2x32xf32>
    %163 = arith.negf %162 : vector<2x32xf32>
    %164 = math.exp %163 : vector<2x32xf32>
    %cst_68 = arith.constant 1.000000e+00 : f32
    %165 = vector.broadcast %cst_68 : f32 to vector<2x32xf32>
    %166 = arith.addf %165, %164 : vector<2x32xf32>
    %167 = arith.divf %165, %166 : vector<2x32xf32>
    %168 = arith.index_cast %c4_i32 : i32 to index
    %c0_69 = arith.constant 0 : index
    %c0_70 = arith.constant 0 : index
    %169 = vector.load %arg1[%168, %c0_69, %c0_70] : memref<8x2x32xf32, #tpu.memory_space<vmem>>, vector<1x2x32xf32>
    %170 = vector.shape_cast %169 : vector<1x2x32xf32> to vector<2x32xf32>
    %171 = arith.addf %170, %156 : vector<2x32xf32>
    %172 = arith.negf %171 : vector<2x32xf32>
    %173 = math.exp %172 : vector<2x32xf32>
    %cst_71 = arith.constant 1.000000e+00 : f32
    %174 = vector.broadcast %cst_71 : f32 to vector<2x32xf32>
    %175 = arith.addf %174, %173 : vector<2x32xf32>
    %176 = arith.divf %174, %175 : vector<2x32xf32>
    %177 = arith.index_cast %c4_i32 : i32 to index
    %c0_72 = arith.constant 0 : index
    %c0_73 = arith.constant 0 : index
    %178 = vector.load %arg2[%177, %c0_72, %c0_73] : memref<8x2x32xf32, #tpu.memory_space<vmem>>, vector<1x2x32xf32>
    %179 = vector.shape_cast %178 : vector<1x2x32xf32> to vector<2x32xf32>
    %180 = arith.mulf %167, %158 : vector<2x32xf32>
    %181 = arith.addf %179, %180 : vector<2x32xf32>
    %182 = math.tanh %181 : vector<2x32xf32>
    %cst_74 = arith.constant 1.000000e+00 : f32
    %183 = vector.broadcast %cst_74 : f32 to vector<2x32xf32>
    %184 = arith.subf %183, %176 : vector<2x32xf32>
    %185 = arith.mulf %184, %182 : vector<2x32xf32>
    %186 = arith.mulf %176, %150 : vector<2x32xf32>
    %187 = arith.addf %185, %186 : vector<2x32xf32>
    %188 = arith.index_cast %c4_i32 : i32 to index
    %c0_75 = arith.constant 0 : index
    %c0_76 = arith.constant 0 : index
    %189 = vector.load %arg7[%188, %c0_75, %c0_76] : memref<8x2x32xf32, #tpu.memory_space<vmem>>, vector<1x2x32xf32>
    %190 = vector.shape_cast %189 : vector<1x2x32xf32> to vector<2x32xf32>
    %191 = vector.shape_cast %187 : vector<2x32xf32> to vector<1x2x32xf32>
    tpu.vector_store %arg7[%188, %c0_75, %c0_76], %191 {strides = array<i32>} : memref<8x2x32xf32, #tpu.memory_space<vmem>>, vector<1x2x32xf32>,
    %c5_i32 = arith.constant 5 : i32
    %cst_77 = arith.constant dense<0.000000e+00> : vector<2x32xf32>
    %192 = tpu.matmul %187, %0, %cst_77 {dimension_numbers = #tpu.dot_dimension_numbers<[1], [0], [0], [1], [0, 0, 1, 1], [], []>} : vector<2x32xf32>, vector<32x32xf32>, vector<2x32xf32> -> vector<2x32xf32>
    %cst_78 = arith.constant dense<0.000000e+00> : vector<2x32xf32>
    %193 = tpu.matmul %187, %1, %cst_78 {dimension_numbers = #tpu.dot_dimension_numbers<[1], [0], [0], [1], [0, 0, 1, 1], [], []>} : vector<2x32xf32>, vector<32x32xf32>, vector<2x32xf32> -> vector<2x32xf32>
    %cst_79 = arith.constant dense<0.000000e+00> : vector<2x32xf32>
    %194 = tpu.matmul %187, %2, %cst_79 {dimension_numbers = #tpu.dot_dimension_numbers<[1], [0], [0], [1], [0, 0, 1, 1], [], []>} : vector<2x32xf32>, vector<32x32xf32>, vector<2x32xf32> -> vector<2x32xf32>
    %195 = arith.addf %194, %5 : vector<2x32xf32>
    %196 = arith.index_cast %c5_i32 : i32 to index
    %c0_80 = arith.constant 0 : index
    %c0_81 = arith.constant 0 : index
    %197 = vector.load %arg0[%196, %c0_80, %c0_81] : memref<8x2x32xf32, #tpu.memory_space<vmem>>, vector<1x2x32xf32>
    %198 = vector.shape_cast %197 : vector<1x2x32xf32> to vector<2x32xf32>
    %199 = arith.addf %198, %192 : vector<2x32xf32>
    %200 = arith.negf %199 : vector<2x32xf32>
    %201 = math.exp %200 : vector<2x32xf32>
    %cst_82 = arith.constant 1.000000e+00 : f32
    %202 = vector.broadcast %cst_82 : f32 to vector<2x32xf32>
    %203 = arith.addf %202, %201 : vector<2x32xf32>
    %204 = arith.divf %202, %203 : vector<2x32xf32>
    %205 = arith.index_cast %c5_i32 : i32 to index
    %c0_83 = arith.constant 0 : index
    %c0_84 = arith.constant 0 : index
    %206 = vector.load %arg1[%205, %c0_83, %c0_84] : memref<8x2x32xf32, #tpu.memory_space<vmem>>, vector<1x2x32xf32>
    %207 = vector.shape_cast %206 : vector<1x2x32xf32> to vector<2x32xf32>
    %208 = arith.addf %207, %193 : vector<2x32xf32>
    %209 = arith.negf %208 : vector<2x32xf32>
    %210 = math.exp %209 : vector<2x32xf32>
    %cst_85 = arith.constant 1.000000e+00 : f32
    %211 = vector.broadcast %cst_85 : f32 to vector<2x32xf32>
    %212 = arith.addf %211, %210 : vector<2x32xf32>
    %213 = arith.divf %211, %212 : vector<2x32xf32>
    %214 = arith.index_cast %c5_i32 : i32 to index
    %c0_86 = arith.constant 0 : index
    %c0_87 = arith.constant 0 : index
    %215 = vector.load %arg2[%214, %c0_86, %c0_87] : memref<8x2x32xf32, #tpu.memory_space<vmem>>, vector<1x2x32xf32>
    %216 = vector.shape_cast %215 : vector<1x2x32xf32> to vector<2x32xf32>
    %217 = arith.mulf %204, %195 : vector<2x32xf32>
    %218 = arith.addf %216, %217 : vector<2x32xf32>
    %219 = math.tanh %218 : vector<2x32xf32>
    %cst_88 = arith.constant 1.000000e+00 : f32
    %220 = vector.broadcast %cst_88 : f32 to vector<2x32xf32>
    %221 = arith.subf %220, %213 : vector<2x32xf32>
    %222 = arith.mulf %221, %219 : vector<2x32xf32>
    %223 = arith.mulf %213, %187 : vector<2x32xf32>
    %224 = arith.addf %222, %223 : vector<2x32xf32>
    %225 = arith.index_cast %c5_i32 : i32 to index
    %c0_89 = arith.constant 0 : index
    %c0_90 = arith.constant 0 : index
    %226 = vector.load %arg7[%225, %c0_89, %c0_90] : memref<8x2x32xf32, #tpu.memory_space<vmem>>, vector<1x2x32xf32>
    %227 = vector.shape_cast %226 : vector<1x2x32xf32> to vector<2x32xf32>
    %228 = vector.shape_cast %224 : vector<2x32xf32> to vector<1x2x32xf32>
    tpu.vector_store %arg7[%225, %c0_89, %c0_90], %228 {strides = array<i32>} : memref<8x2x32xf32, #tpu.memory_space<vmem>>, vector<1x2x32xf32>,
    %c6_i32 = arith.constant 6 : i32
    %cst_91 = arith.constant dense<0.000000e+00> : vector<2x32xf32>
    %229 = tpu.matmul %224, %0, %cst_91 {dimension_numbers = #tpu.dot_dimension_numbers<[1], [0], [0], [1], [0, 0, 1, 1], [], []>} : vector<2x32xf32>, vector<32x32xf32>, vector<2x32xf32> -> vector<2x32xf32>
    %cst_92 = arith.constant dense<0.000000e+00> : vector<2x32xf32>
    %230 = tpu.matmul %224, %1, %cst_92 {dimension_numbers = #tpu.dot_dimension_numbers<[1], [0], [0], [1], [0, 0, 1, 1], [], []>} : vector<2x32xf32>, vector<32x32xf32>, vector<2x32xf32> -> vector<2x32xf32>
    %cst_93 = arith.constant dense<0.000000e+00> : vector<2x32xf32>
    %231 = tpu.matmul %224, %2, %cst_93 {dimension_numbers = #tpu.dot_dimension_numbers<[1], [0], [0], [1], [0, 0, 1, 1], [], []>} : vector<2x32xf32>, vector<32x32xf32>, vector<2x32xf32> -> vector<2x32xf32>
    %232 = arith.addf %231, %5 : vector<2x32xf32>
    %233 = arith.index_cast %c6_i32 : i32 to index
    %c0_94 = arith.constant 0 : index
    %c0_95 = arith.constant 0 : index
    %234 = vector.load %arg0[%233, %c0_94, %c0_95] : memref<8x2x32xf32, #tpu.memory_space<vmem>>, vector<1x2x32xf32>
    %235 = vector.shape_cast %234 : vector<1x2x32xf32> to vector<2x32xf32>
    %236 = arith.addf %235, %229 : vector<2x32xf32>
    %237 = arith.negf %236 : vector<2x32xf32>
    %238 = math.exp %237 : vector<2x32xf32>
    %cst_96 = arith.constant 1.000000e+00 : f32
    %239 = vector.broadcast %cst_96 : f32 to vector<2x32xf32>
    %240 = arith.addf %239, %238 : vector<2x32xf32>
    %241 = arith.divf %239, %240 : vector<2x32xf32>
    %242 = arith.index_cast %c6_i32 : i32 to index
    %c0_97 = arith.constant 0 : index
    %c0_98 = arith.constant 0 : index
    %243 = vector.load %arg1[%242, %c0_97, %c0_98] : memref<8x2x32xf32, #tpu.memory_space<vmem>>, vector<1x2x32xf32>
    %244 = vector.shape_cast %243 : vector<1x2x32xf32> to vector<2x32xf32>
    %245 = arith.addf %244, %230 : vector<2x32xf32>
    %246 = arith.negf %245 : vector<2x32xf32>
    %247 = math.exp %246 : vector<2x32xf32>
    %cst_99 = arith.constant 1.000000e+00 : f32
    %248 = vector.broadcast %cst_99 : f32 to vector<2x32xf32>
    %249 = arith.addf %248, %247 : vector<2x32xf32>
    %250 = arith.divf %248, %249 : vector<2x32xf32>
    %251 = arith.index_cast %c6_i32 : i32 to index
    %c0_100 = arith.constant 0 : index
    %c0_101 = arith.constant 0 : index
    %252 = vector.load %arg2[%251, %c0_100, %c0_101] : memref<8x2x32xf32, #tpu.memory_space<vmem>>, vector<1x2x32xf32>
    %253 = vector.shape_cast %252 : vector<1x2x32xf32> to vector<2x32xf32>
    %254 = arith.mulf %241, %232 : vector<2x32xf32>
    %255 = arith.addf %253, %254 : vector<2x32xf32>
    %256 = math.tanh %255 : vector<2x32xf32>
    %cst_102 = arith.constant 1.000000e+00 : f32
    %257 = vector.broadcast %cst_102 : f32 to vector<2x32xf32>
    %258 = arith.subf %257, %250 : vector<2x32xf32>
    %259 = arith.mulf %258, %256 : vector<2x32xf32>
    %260 = arith.mulf %250, %224 : vector<2x32xf32>
    %261 = arith.addf %259, %260 : vector<2x32xf32>
    %262 = arith.index_cast %c6_i32 : i32 to index
    %c0_103 = arith.constant 0 : index
    %c0_104 = arith.constant 0 : index
    %263 = vector.load %arg7[%262, %c0_103, %c0_104] : memref<8x2x32xf32, #tpu.memory_space<vmem>>, vector<1x2x32xf32>
    %264 = vector.shape_cast %263 : vector<1x2x32xf32> to vector<2x32xf32>
    %265 = vector.shape_cast %261 : vector<2x32xf32> to vector<1x2x32xf32>
    tpu.vector_store %arg7[%262, %c0_103, %c0_104], %265 {strides = array<i32>} : memref<8x2x32xf32, #tpu.memory_space<vmem>>, vector<1x2x32xf32>,
    %c7_i32 = arith.constant 7 : i32
    %cst_105 = arith.constant dense<0.000000e+00> : vector<2x32xf32>
    %266 = tpu.matmul %261, %0, %cst_105 {dimension_numbers = #tpu.dot_dimension_numbers<[1], [0], [0], [1], [0, 0, 1, 1], [], []>} : vector<2x32xf32>, vector<32x32xf32>, vector<2x32xf32> -> vector<2x32xf32>
    %cst_106 = arith.constant dense<0.000000e+00> : vector<2x32xf32>
    %267 = tpu.matmul %261, %1, %cst_106 {dimension_numbers = #tpu.dot_dimension_numbers<[1], [0], [0], [1], [0, 0, 1, 1], [], []>} : vector<2x32xf32>, vector<32x32xf32>, vector<2x32xf32> -> vector<2x32xf32>
    %cst_107 = arith.constant dense<0.000000e+00> : vector<2x32xf32>
    %268 = tpu.matmul %261, %2, %cst_107 {dimension_numbers = #tpu.dot_dimension_numbers<[1], [0], [0], [1], [0, 0, 1, 1], [], []>} : vector<2x32xf32>, vector<32x32xf32>, vector<2x32xf32> -> vector<2x32xf32>
    %269 = arith.addf %268, %5 : vector<2x32xf32>
    %270 = arith.index_cast %c7_i32 : i32 to index
    %c0_108 = arith.constant 0 : index
    %c0_109 = arith.constant 0 : index
    %271 = vector.load %arg0[%270, %c0_108, %c0_109] : memref<8x2x32xf32, #tpu.memory_space<vmem>>, vector<1x2x32xf32>
    %272 = vector.shape_cast %271 : vector<1x2x32xf32> to vector<2x32xf32>
    %273 = arith.addf %272, %266 : vector<2x32xf32>
    %274 = arith.negf %273 : vector<2x32xf32>
    %275 = math.exp %274 : vector<2x32xf32>
    %cst_110 = arith.constant 1.000000e+00 : f32
    %276 = vector.broadcast %cst_110 : f32 to vector<2x32xf32>
    %277 = arith.addf %276, %275 : vector<2x32xf32>
    %278 = arith.divf %276, %277 : vector<2x32xf32>
    %279 = arith.index_cast %c7_i32 : i32 to index
    %c0_111 = arith.constant 0 : index
    %c0_112 = arith.constant 0 : index
    %280 = vector.load %arg1[%279, %c0_111, %c0_112] : memref<8x2x32xf32, #tpu.memory_space<vmem>>, vector<1x2x32xf32>
    %281 = vector.shape_cast %280 : vector<1x2x32xf32> to vector<2x32xf32>
    %282 = arith.addf %281, %267 : vector<2x32xf32>
    %283 = arith.negf %282 : vector<2x32xf32>
    %284 = math.exp %283 : vector<2x32xf32>
    %cst_113 = arith.constant 1.000000e+00 : f32
    %285 = vector.broadcast %cst_113 : f32 to vector<2x32xf32>
    %286 = arith.addf %285, %284 : vector<2x32xf32>
    %287 = arith.divf %285, %286 : vector<2x32xf32>
    %288 = arith.index_cast %c7_i32 : i32 to index
    %c0_114 = arith.constant 0 : index
    %c0_115 = arith.constant 0 : index
    %289 = vector.load %arg2[%288, %c0_114, %c0_115] : memref<8x2x32xf32, #tpu.memory_space<vmem>>, vector<1x2x32xf32>
    %290 = vector.shape_cast %289 : vector<1x2x32xf32> to vector<2x32xf32>
    %291 = arith.mulf %278, %269 : vector<2x32xf32>
    %292 = arith.addf %290, %291 : vector<2x32xf32>
    %293 = math.tanh %292 : vector<2x32xf32>
    %cst_116 = arith.constant 1.000000e+00 : f32
    %294 = vector.broadcast %cst_116 : f32 to vector<2x32xf32>
    %295 = arith.subf %294, %287 : vector<2x32xf32>
    %296 = arith.mulf %295, %293 : vector<2x32xf32>
    %297 = arith.mulf %287, %261 : vector<2x32xf32>
    %298 = arith.addf %296, %297 : vector<2x32xf32>
    %299 = arith.index_cast %c7_i32 : i32 to index
    %c0_117 = arith.constant 0 : index
    %c0_118 = arith.constant 0 : index
    %300 = vector.load %arg7[%299, %c0_117, %c0_118] : memref<8x2x32xf32, #tpu.memory_space<vmem>>, vector<1x2x32xf32>
    %301 = vector.shape_cast %300 : vector<1x2x32xf32> to vector<2x32xf32>
    %302 = vector.shape_cast %298 : vector<2x32xf32> to vector<1x2x32xf32>
    tpu.vector_store %arg7[%299, %c0_117, %c0_118], %302 {strides = array<i32>} : memref<8x2x32xf32, #tpu.memory_space<vmem>>, vector<1x2x32xf32>,
    %c8_i32 = arith.constant 8 : i32
    return
  }
}

module attributes {stable_mosaic.version = 11 : i64} {
  func.func @_gru_recurrence_kernel(%arg0: memref<4x4x32xf32, #tpu.memory_space<vmem>>, %arg1: memref<4x4x32xf32, #tpu.memory_space<vmem>>, %arg2: memref<4x4x32xf32, #tpu.memory_space<vmem>>, %arg3: memref<32x32xf32, #tpu.memory_space<vmem>>, %arg4: memref<32x32xf32, #tpu.memory_space<vmem>>, %arg5: memref<32x32xf32, #tpu.memory_space<vmem>>, %arg6: memref<1x32xf32, #tpu.memory_space<vmem>>, %arg7: memref<4x4x32xf32, #tpu.memory_space<vmem>>) attributes {dimension_semantics = [], scalar_prefetch = 0 : i64, scratch_operands = 0 : i64, tpu.core_type = #tpu.core_type<tc>} {
    %c0 = arith.constant 0 : index
    %c0_0 = arith.constant 0 : index
    %0 = vector.load %arg3[%c0, %c0_0] : memref<32x32xf32, #tpu.memory_space<vmem>>, vector<32x32xf32>
    %c0_1 = arith.constant 0 : index
    %c0_2 = arith.constant 0 : index
    %1 = vector.load %arg4[%c0_1, %c0_2] : memref<32x32xf32, #tpu.memory_space<vmem>>, vector<32x32xf32>
    %c0_3 = arith.constant 0 : index
    %c0_4 = arith.constant 0 : index
    %2 = vector.load %arg5[%c0_3, %c0_4] : memref<32x32xf32, #tpu.memory_space<vmem>>, vector<32x32xf32>
    %c0_5 = arith.constant 0 : index
    %c0_6 = arith.constant 0 : index
    %3 = vector.load %arg6[%c0_5, %c0_6] : memref<1x32xf32, #tpu.memory_space<vmem>>, vector<1x32xf32>
    %4 = vector.shape_cast %3 : vector<1x32xf32> to vector<1x32xf32>
    %5 = vector.broadcast %4 : vector<1x32xf32> to vector<4x32xf32>
    %cst = arith.constant 0.000000e+00 : f32
    %6 = vector.broadcast %cst : f32 to vector<4x32xf32>
    %c0_i32 = arith.constant 0 : i32
    %cst_7 = arith.constant dense<0.000000e+00> : vector<4x32xf32>
    %7 = tpu.matmul %6, %0, %cst_7 {dimension_numbers = #tpu.dot_dimension_numbers<[1], [0], [0], [1], [0, 0, 1, 1], [], []>} : vector<4x32xf32>, vector<32x32xf32>, vector<4x32xf32> -> vector<4x32xf32>
    %cst_8 = arith.constant dense<0.000000e+00> : vector<4x32xf32>
    %8 = tpu.matmul %6, %1, %cst_8 {dimension_numbers = #tpu.dot_dimension_numbers<[1], [0], [0], [1], [0, 0, 1, 1], [], []>} : vector<4x32xf32>, vector<32x32xf32>, vector<4x32xf32> -> vector<4x32xf32>
    %cst_9 = arith.constant dense<0.000000e+00> : vector<4x32xf32>
    %9 = tpu.matmul %6, %2, %cst_9 {dimension_numbers = #tpu.dot_dimension_numbers<[1], [0], [0], [1], [0, 0, 1, 1], [], []>} : vector<4x32xf32>, vector<32x32xf32>, vector<4x32xf32> -> vector<4x32xf32>
    %10 = arith.addf %9, %5 : vector<4x32xf32>
    %11 = arith.index_cast %c0_i32 : i32 to index
    %c0_10 = arith.constant 0 : index
    %c0_11 = arith.constant 0 : index
    %12 = vector.load %arg0[%11, %c0_10, %c0_11] : memref<4x4x32xf32, #tpu.memory_space<vmem>>, vector<1x4x32xf32>
    %13 = vector.shape_cast %12 : vector<1x4x32xf32> to vector<4x32xf32>
    %14 = arith.addf %13, %7 : vector<4x32xf32>
    %15 = arith.negf %14 : vector<4x32xf32>
    %16 = math.exp %15 : vector<4x32xf32>
    %cst_12 = arith.constant 1.000000e+00 : f32
    %17 = vector.broadcast %cst_12 : f32 to vector<4x32xf32>
    %18 = arith.addf %17, %16 : vector<4x32xf32>
    %19 = arith.divf %17, %18 : vector<4x32xf32>
    %20 = arith.index_cast %c0_i32 : i32 to index
    %c0_13 = arith.constant 0 : index
    %c0_14 = arith.constant 0 : index
    %21 = vector.load %arg1[%20, %c0_13, %c0_14] : memref<4x4x32xf32, #tpu.memory_space<vmem>>, vector<1x4x32xf32>
    %22 = vector.shape_cast %21 : vector<1x4x32xf32> to vector<4x32xf32>
    %23 = arith.addf %22, %8 : vector<4x32xf32>
    %24 = arith.negf %23 : vector<4x32xf32>
    %25 = math.exp %24 : vector<4x32xf32>
    %cst_15 = arith.constant 1.000000e+00 : f32
    %26 = vector.broadcast %cst_15 : f32 to vector<4x32xf32>
    %27 = arith.addf %26, %25 : vector<4x32xf32>
    %28 = arith.divf %26, %27 : vector<4x32xf32>
    %29 = arith.index_cast %c0_i32 : i32 to index
    %c0_16 = arith.constant 0 : index
    %c0_17 = arith.constant 0 : index
    %30 = vector.load %arg2[%29, %c0_16, %c0_17] : memref<4x4x32xf32, #tpu.memory_space<vmem>>, vector<1x4x32xf32>
    %31 = vector.shape_cast %30 : vector<1x4x32xf32> to vector<4x32xf32>
    %32 = arith.mulf %19, %10 : vector<4x32xf32>
    %33 = arith.addf %31, %32 : vector<4x32xf32>
    %34 = math.tanh %33 : vector<4x32xf32>
    %cst_18 = arith.constant 1.000000e+00 : f32
    %35 = vector.broadcast %cst_18 : f32 to vector<4x32xf32>
    %36 = arith.subf %35, %28 : vector<4x32xf32>
    %37 = arith.mulf %36, %34 : vector<4x32xf32>
    %38 = arith.mulf %28, %6 : vector<4x32xf32>
    %39 = arith.addf %37, %38 : vector<4x32xf32>
    %40 = arith.index_cast %c0_i32 : i32 to index
    %c0_19 = arith.constant 0 : index
    %c0_20 = arith.constant 0 : index
    %41 = vector.load %arg7[%40, %c0_19, %c0_20] : memref<4x4x32xf32, #tpu.memory_space<vmem>>, vector<1x4x32xf32>
    %42 = vector.shape_cast %41 : vector<1x4x32xf32> to vector<4x32xf32>
    %43 = vector.shape_cast %39 : vector<4x32xf32> to vector<1x4x32xf32>
    tpu.vector_store %arg7[%40, %c0_19, %c0_20], %43 {strides = array<i32>} : memref<4x4x32xf32, #tpu.memory_space<vmem>>, vector<1x4x32xf32>,
    %c1_i32 = arith.constant 1 : i32
    %cst_21 = arith.constant dense<0.000000e+00> : vector<4x32xf32>
    %44 = tpu.matmul %39, %0, %cst_21 {dimension_numbers = #tpu.dot_dimension_numbers<[1], [0], [0], [1], [0, 0, 1, 1], [], []>} : vector<4x32xf32>, vector<32x32xf32>, vector<4x32xf32> -> vector<4x32xf32>
    %cst_22 = arith.constant dense<0.000000e+00> : vector<4x32xf32>
    %45 = tpu.matmul %39, %1, %cst_22 {dimension_numbers = #tpu.dot_dimension_numbers<[1], [0], [0], [1], [0, 0, 1, 1], [], []>} : vector<4x32xf32>, vector<32x32xf32>, vector<4x32xf32> -> vector<4x32xf32>
    %cst_23 = arith.constant dense<0.000000e+00> : vector<4x32xf32>
    %46 = tpu.matmul %39, %2, %cst_23 {dimension_numbers = #tpu.dot_dimension_numbers<[1], [0], [0], [1], [0, 0, 1, 1], [], []>} : vector<4x32xf32>, vector<32x32xf32>, vector<4x32xf32> -> vector<4x32xf32>
    %47 = arith.addf %46, %5 : vector<4x32xf32>
    %48 = arith.index_cast %c1_i32 : i32 to index
    %c0_24 = arith.constant 0 : index
    %c0_25 = arith.constant 0 : index
    %49 = vector.load %arg0[%48, %c0_24, %c0_25] : memref<4x4x32xf32, #tpu.memory_space<vmem>>, vector<1x4x32xf32>
    %50 = vector.shape_cast %49 : vector<1x4x32xf32> to vector<4x32xf32>
    %51 = arith.addf %50, %44 : vector<4x32xf32>
    %52 = arith.negf %51 : vector<4x32xf32>
    %53 = math.exp %52 : vector<4x32xf32>
    %cst_26 = arith.constant 1.000000e+00 : f32
    %54 = vector.broadcast %cst_26 : f32 to vector<4x32xf32>
    %55 = arith.addf %54, %53 : vector<4x32xf32>
    %56 = arith.divf %54, %55 : vector<4x32xf32>
    %57 = arith.index_cast %c1_i32 : i32 to index
    %c0_27 = arith.constant 0 : index
    %c0_28 = arith.constant 0 : index
    %58 = vector.load %arg1[%57, %c0_27, %c0_28] : memref<4x4x32xf32, #tpu.memory_space<vmem>>, vector<1x4x32xf32>
    %59 = vector.shape_cast %58 : vector<1x4x32xf32> to vector<4x32xf32>
    %60 = arith.addf %59, %45 : vector<4x32xf32>
    %61 = arith.negf %60 : vector<4x32xf32>
    %62 = math.exp %61 : vector<4x32xf32>
    %cst_29 = arith.constant 1.000000e+00 : f32
    %63 = vector.broadcast %cst_29 : f32 to vector<4x32xf32>
    %64 = arith.addf %63, %62 : vector<4x32xf32>
    %65 = arith.divf %63, %64 : vector<4x32xf32>
    %66 = arith.index_cast %c1_i32 : i32 to index
    %c0_30 = arith.constant 0 : index
    %c0_31 = arith.constant 0 : index
    %67 = vector.load %arg2[%66, %c0_30, %c0_31] : memref<4x4x32xf32, #tpu.memory_space<vmem>>, vector<1x4x32xf32>
    %68 = vector.shape_cast %67 : vector<1x4x32xf32> to vector<4x32xf32>
    %69 = arith.mulf %56, %47 : vector<4x32xf32>
    %70 = arith.addf %68, %69 : vector<4x32xf32>
    %71 = math.tanh %70 : vector<4x32xf32>
    %cst_32 = arith.constant 1.000000e+00 : f32
    %72 = vector.broadcast %cst_32 : f32 to vector<4x32xf32>
    %73 = arith.subf %72, %65 : vector<4x32xf32>
    %74 = arith.mulf %73, %71 : vector<4x32xf32>
    %75 = arith.mulf %65, %39 : vector<4x32xf32>
    %76 = arith.addf %74, %75 : vector<4x32xf32>
    %77 = arith.index_cast %c1_i32 : i32 to index
    %c0_33 = arith.constant 0 : index
    %c0_34 = arith.constant 0 : index
    %78 = vector.load %arg7[%77, %c0_33, %c0_34] : memref<4x4x32xf32, #tpu.memory_space<vmem>>, vector<1x4x32xf32>
    %79 = vector.shape_cast %78 : vector<1x4x32xf32> to vector<4x32xf32>
    %80 = vector.shape_cast %76 : vector<4x32xf32> to vector<1x4x32xf32>
    tpu.vector_store %arg7[%77, %c0_33, %c0_34], %80 {strides = array<i32>} : memref<4x4x32xf32, #tpu.memory_space<vmem>>, vector<1x4x32xf32>,
    %c2_i32 = arith.constant 2 : i32
    %cst_35 = arith.constant dense<0.000000e+00> : vector<4x32xf32>
    %81 = tpu.matmul %76, %0, %cst_35 {dimension_numbers = #tpu.dot_dimension_numbers<[1], [0], [0], [1], [0, 0, 1, 1], [], []>} : vector<4x32xf32>, vector<32x32xf32>, vector<4x32xf32> -> vector<4x32xf32>
    %cst_36 = arith.constant dense<0.000000e+00> : vector<4x32xf32>
    %82 = tpu.matmul %76, %1, %cst_36 {dimension_numbers = #tpu.dot_dimension_numbers<[1], [0], [0], [1], [0, 0, 1, 1], [], []>} : vector<4x32xf32>, vector<32x32xf32>, vector<4x32xf32> -> vector<4x32xf32>
    %cst_37 = arith.constant dense<0.000000e+00> : vector<4x32xf32>
    %83 = tpu.matmul %76, %2, %cst_37 {dimension_numbers = #tpu.dot_dimension_numbers<[1], [0], [0], [1], [0, 0, 1, 1], [], []>} : vector<4x32xf32>, vector<32x32xf32>, vector<4x32xf32> -> vector<4x32xf32>
    %84 = arith.addf %83, %5 : vector<4x32xf32>
    %85 = arith.index_cast %c2_i32 : i32 to index
    %c0_38 = arith.constant 0 : index
    %c0_39 = arith.constant 0 : index
    %86 = vector.load %arg0[%85, %c0_38, %c0_39] : memref<4x4x32xf32, #tpu.memory_space<vmem>>, vector<1x4x32xf32>
    %87 = vector.shape_cast %86 : vector<1x4x32xf32> to vector<4x32xf32>
    %88 = arith.addf %87, %81 : vector<4x32xf32>
    %89 = arith.negf %88 : vector<4x32xf32>
    %90 = math.exp %89 : vector<4x32xf32>
    %cst_40 = arith.constant 1.000000e+00 : f32
    %91 = vector.broadcast %cst_40 : f32 to vector<4x32xf32>
    %92 = arith.addf %91, %90 : vector<4x32xf32>
    %93 = arith.divf %91, %92 : vector<4x32xf32>
    %94 = arith.index_cast %c2_i32 : i32 to index
    %c0_41 = arith.constant 0 : index
    %c0_42 = arith.constant 0 : index
    %95 = vector.load %arg1[%94, %c0_41, %c0_42] : memref<4x4x32xf32, #tpu.memory_space<vmem>>, vector<1x4x32xf32>
    %96 = vector.shape_cast %95 : vector<1x4x32xf32> to vector<4x32xf32>
    %97 = arith.addf %96, %82 : vector<4x32xf32>
    %98 = arith.negf %97 : vector<4x32xf32>
    %99 = math.exp %98 : vector<4x32xf32>
    %cst_43 = arith.constant 1.000000e+00 : f32
    %100 = vector.broadcast %cst_43 : f32 to vector<4x32xf32>
    %101 = arith.addf %100, %99 : vector<4x32xf32>
    %102 = arith.divf %100, %101 : vector<4x32xf32>
    %103 = arith.index_cast %c2_i32 : i32 to index
    %c0_44 = arith.constant 0 : index
    %c0_45 = arith.constant 0 : index
    %104 = vector.load %arg2[%103, %c0_44, %c0_45] : memref<4x4x32xf32, #tpu.memory_space<vmem>>, vector<1x4x32xf32>
    %105 = vector.shape_cast %104 : vector<1x4x32xf32> to vector<4x32xf32>
    %106 = arith.mulf %93, %84 : vector<4x32xf32>
    %107 = arith.addf %105, %106 : vector<4x32xf32>
    %108 = math.tanh %107 : vector<4x32xf32>
    %cst_46 = arith.constant 1.000000e+00 : f32
    %109 = vector.broadcast %cst_46 : f32 to vector<4x32xf32>
    %110 = arith.subf %109, %102 : vector<4x32xf32>
    %111 = arith.mulf %110, %108 : vector<4x32xf32>
    %112 = arith.mulf %102, %76 : vector<4x32xf32>
    %113 = arith.addf %111, %112 : vector<4x32xf32>
    %114 = arith.index_cast %c2_i32 : i32 to index
    %c0_47 = arith.constant 0 : index
    %c0_48 = arith.constant 0 : index
    %115 = vector.load %arg7[%114, %c0_47, %c0_48] : memref<4x4x32xf32, #tpu.memory_space<vmem>>, vector<1x4x32xf32>
    %116 = vector.shape_cast %115 : vector<1x4x32xf32> to vector<4x32xf32>
    %117 = vector.shape_cast %113 : vector<4x32xf32> to vector<1x4x32xf32>
    tpu.vector_store %arg7[%114, %c0_47, %c0_48], %117 {strides = array<i32>} : memref<4x4x32xf32, #tpu.memory_space<vmem>>, vector<1x4x32xf32>,
    %c3_i32 = arith.constant 3 : i32
    %cst_49 = arith.constant dense<0.000000e+00> : vector<4x32xf32>
    %118 = tpu.matmul %113, %0, %cst_49 {dimension_numbers = #tpu.dot_dimension_numbers<[1], [0], [0], [1], [0, 0, 1, 1], [], []>} : vector<4x32xf32>, vector<32x32xf32>, vector<4x32xf32> -> vector<4x32xf32>
    %cst_50 = arith.constant dense<0.000000e+00> : vector<4x32xf32>
    %119 = tpu.matmul %113, %1, %cst_50 {dimension_numbers = #tpu.dot_dimension_numbers<[1], [0], [0], [1], [0, 0, 1, 1], [], []>} : vector<4x32xf32>, vector<32x32xf32>, vector<4x32xf32> -> vector<4x32xf32>
    %cst_51 = arith.constant dense<0.000000e+00> : vector<4x32xf32>
    %120 = tpu.matmul %113, %2, %cst_51 {dimension_numbers = #tpu.dot_dimension_numbers<[1], [0], [0], [1], [0, 0, 1, 1], [], []>} : vector<4x32xf32>, vector<32x32xf32>, vector<4x32xf32> -> vector<4x32xf32>
    %121 = arith.addf %120, %5 : vector<4x32xf32>
    %122 = arith.index_cast %c3_i32 : i32 to index
    %c0_52 = arith.constant 0 : index
    %c0_53 = arith.constant 0 : index
    %123 = vector.load %arg0[%122, %c0_52, %c0_53] : memref<4x4x32xf32, #tpu.memory_space<vmem>>, vector<1x4x32xf32>
    %124 = vector.shape_cast %123 : vector<1x4x32xf32> to vector<4x32xf32>
    %125 = arith.addf %124, %118 : vector<4x32xf32>
    %126 = arith.negf %125 : vector<4x32xf32>
    %127 = math.exp %126 : vector<4x32xf32>
    %cst_54 = arith.constant 1.000000e+00 : f32
    %128 = vector.broadcast %cst_54 : f32 to vector<4x32xf32>
    %129 = arith.addf %128, %127 : vector<4x32xf32>
    %130 = arith.divf %128, %129 : vector<4x32xf32>
    %131 = arith.index_cast %c3_i32 : i32 to index
    %c0_55 = arith.constant 0 : index
    %c0_56 = arith.constant 0 : index
    %132 = vector.load %arg1[%131, %c0_55, %c0_56] : memref<4x4x32xf32, #tpu.memory_space<vmem>>, vector<1x4x32xf32>
    %133 = vector.shape_cast %132 : vector<1x4x32xf32> to vector<4x32xf32>
    %134 = arith.addf %133, %119 : vector<4x32xf32>
    %135 = arith.negf %134 : vector<4x32xf32>
    %136 = math.exp %135 : vector<4x32xf32>
    %cst_57 = arith.constant 1.000000e+00 : f32
    %137 = vector.broadcast %cst_57 : f32 to vector<4x32xf32>
    %138 = arith.addf %137, %136 : vector<4x32xf32>
    %139 = arith.divf %137, %138 : vector<4x32xf32>
    %140 = arith.index_cast %c3_i32 : i32 to index
    %c0_58 = arith.constant 0 : index
    %c0_59 = arith.constant 0 : index
    %141 = vector.load %arg2[%140, %c0_58, %c0_59] : memref<4x4x32xf32, #tpu.memory_space<vmem>>, vector<1x4x32xf32>
    %142 = vector.shape_cast %141 : vector<1x4x32xf32> to vector<4x32xf32>
    %143 = arith.mulf %130, %121 : vector<4x32xf32>
    %144 = arith.addf %142, %143 : vector<4x32xf32>
    %145 = math.tanh %144 : vector<4x32xf32>
    %cst_60 = arith.constant 1.000000e+00 : f32
    %146 = vector.broadcast %cst_60 : f32 to vector<4x32xf32>
    %147 = arith.subf %146, %139 : vector<4x32xf32>
    %148 = arith.mulf %147, %145 : vector<4x32xf32>
    %149 = arith.mulf %139, %113 : vector<4x32xf32>
    %150 = arith.addf %148, %149 : vector<4x32xf32>
    %151 = arith.index_cast %c3_i32 : i32 to index
    %c0_61 = arith.constant 0 : index
    %c0_62 = arith.constant 0 : index
    %152 = vector.load %arg7[%151, %c0_61, %c0_62] : memref<4x4x32xf32, #tpu.memory_space<vmem>>, vector<1x4x32xf32>
    %153 = vector.shape_cast %152 : vector<1x4x32xf32> to vector<4x32xf32>
    %154 = vector.shape_cast %150 : vector<4x32xf32> to vector<1x4x32xf32>
    tpu.vector_store %arg7[%151, %c0_61, %c0_62], %154 {strides = array<i32>} : memref<4x4x32xf32, #tpu.memory_space<vmem>>, vector<1x4x32xf32>,
    %c4_i32 = arith.constant 4 : i32
    return
  }
}

module attributes {stable_mosaic.version = 11 : i64} {
  func.func @_gru_recurrence_kernel(%arg0: memref<2x8x32xf32, #tpu.memory_space<vmem>>, %arg1: memref<2x8x32xf32, #tpu.memory_space<vmem>>, %arg2: memref<2x8x32xf32, #tpu.memory_space<vmem>>, %arg3: memref<32x32xf32, #tpu.memory_space<vmem>>, %arg4: memref<32x32xf32, #tpu.memory_space<vmem>>, %arg5: memref<32x32xf32, #tpu.memory_space<vmem>>, %arg6: memref<1x32xf32, #tpu.memory_space<vmem>>, %arg7: memref<2x8x32xf32, #tpu.memory_space<vmem>>) attributes {dimension_semantics = [], scalar_prefetch = 0 : i64, scratch_operands = 0 : i64, tpu.core_type = #tpu.core_type<tc>} {
    %c0 = arith.constant 0 : index
    %c0_0 = arith.constant 0 : index
    %0 = vector.load %arg3[%c0, %c0_0] : memref<32x32xf32, #tpu.memory_space<vmem>>, vector<32x32xf32>
    %c0_1 = arith.constant 0 : index
    %c0_2 = arith.constant 0 : index
    %1 = vector.load %arg4[%c0_1, %c0_2] : memref<32x32xf32, #tpu.memory_space<vmem>>, vector<32x32xf32>
    %c0_3 = arith.constant 0 : index
    %c0_4 = arith.constant 0 : index
    %2 = vector.load %arg5[%c0_3, %c0_4] : memref<32x32xf32, #tpu.memory_space<vmem>>, vector<32x32xf32>
    %c0_5 = arith.constant 0 : index
    %c0_6 = arith.constant 0 : index
    %3 = vector.load %arg6[%c0_5, %c0_6] : memref<1x32xf32, #tpu.memory_space<vmem>>, vector<1x32xf32>
    %4 = vector.shape_cast %3 : vector<1x32xf32> to vector<1x32xf32>
    %5 = vector.broadcast %4 : vector<1x32xf32> to vector<8x32xf32>
    %cst = arith.constant 0.000000e+00 : f32
    %6 = vector.broadcast %cst : f32 to vector<8x32xf32>
    %c0_i32 = arith.constant 0 : i32
    %cst_7 = arith.constant dense<0.000000e+00> : vector<8x32xf32>
    %7 = tpu.matmul %6, %0, %cst_7 {dimension_numbers = #tpu.dot_dimension_numbers<[1], [0], [0], [1], [0, 0, 1, 1], [], []>} : vector<8x32xf32>, vector<32x32xf32>, vector<8x32xf32> -> vector<8x32xf32>
    %cst_8 = arith.constant dense<0.000000e+00> : vector<8x32xf32>
    %8 = tpu.matmul %6, %1, %cst_8 {dimension_numbers = #tpu.dot_dimension_numbers<[1], [0], [0], [1], [0, 0, 1, 1], [], []>} : vector<8x32xf32>, vector<32x32xf32>, vector<8x32xf32> -> vector<8x32xf32>
    %cst_9 = arith.constant dense<0.000000e+00> : vector<8x32xf32>
    %9 = tpu.matmul %6, %2, %cst_9 {dimension_numbers = #tpu.dot_dimension_numbers<[1], [0], [0], [1], [0, 0, 1, 1], [], []>} : vector<8x32xf32>, vector<32x32xf32>, vector<8x32xf32> -> vector<8x32xf32>
    %10 = arith.addf %9, %5 : vector<8x32xf32>
    %11 = arith.index_cast %c0_i32 : i32 to index
    %c0_10 = arith.constant 0 : index
    %c0_11 = arith.constant 0 : index
    %12 = vector.load %arg0[%11, %c0_10, %c0_11] : memref<2x8x32xf32, #tpu.memory_space<vmem>>, vector<1x8x32xf32>
    %13 = vector.shape_cast %12 : vector<1x8x32xf32> to vector<8x32xf32>
    %14 = arith.addf %13, %7 : vector<8x32xf32>
    %15 = arith.negf %14 : vector<8x32xf32>
    %16 = math.exp %15 : vector<8x32xf32>
    %cst_12 = arith.constant 1.000000e+00 : f32
    %17 = vector.broadcast %cst_12 : f32 to vector<8x32xf32>
    %18 = arith.addf %17, %16 : vector<8x32xf32>
    %19 = arith.divf %17, %18 : vector<8x32xf32>
    %20 = arith.index_cast %c0_i32 : i32 to index
    %c0_13 = arith.constant 0 : index
    %c0_14 = arith.constant 0 : index
    %21 = vector.load %arg1[%20, %c0_13, %c0_14] : memref<2x8x32xf32, #tpu.memory_space<vmem>>, vector<1x8x32xf32>
    %22 = vector.shape_cast %21 : vector<1x8x32xf32> to vector<8x32xf32>
    %23 = arith.addf %22, %8 : vector<8x32xf32>
    %24 = arith.negf %23 : vector<8x32xf32>
    %25 = math.exp %24 : vector<8x32xf32>
    %cst_15 = arith.constant 1.000000e+00 : f32
    %26 = vector.broadcast %cst_15 : f32 to vector<8x32xf32>
    %27 = arith.addf %26, %25 : vector<8x32xf32>
    %28 = arith.divf %26, %27 : vector<8x32xf32>
    %29 = arith.index_cast %c0_i32 : i32 to index
    %c0_16 = arith.constant 0 : index
    %c0_17 = arith.constant 0 : index
    %30 = vector.load %arg2[%29, %c0_16, %c0_17] : memref<2x8x32xf32, #tpu.memory_space<vmem>>, vector<1x8x32xf32>
    %31 = vector.shape_cast %30 : vector<1x8x32xf32> to vector<8x32xf32>
    %32 = arith.mulf %19, %10 : vector<8x32xf32>
    %33 = arith.addf %31, %32 : vector<8x32xf32>
    %34 = math.tanh %33 : vector<8x32xf32>
    %cst_18 = arith.constant 1.000000e+00 : f32
    %35 = vector.broadcast %cst_18 : f32 to vector<8x32xf32>
    %36 = arith.subf %35, %28 : vector<8x32xf32>
    %37 = arith.mulf %36, %34 : vector<8x32xf32>
    %38 = arith.mulf %28, %6 : vector<8x32xf32>
    %39 = arith.addf %37, %38 : vector<8x32xf32>
    %40 = arith.index_cast %c0_i32 : i32 to index
    %c0_19 = arith.constant 0 : index
    %c0_20 = arith.constant 0 : index
    %41 = vector.load %arg7[%40, %c0_19, %c0_20] : memref<2x8x32xf32, #tpu.memory_space<vmem>>, vector<1x8x32xf32>
    %42 = vector.shape_cast %41 : vector<1x8x32xf32> to vector<8x32xf32>
    %43 = vector.shape_cast %39 : vector<8x32xf32> to vector<1x8x32xf32>
    tpu.vector_store %arg7[%40, %c0_19, %c0_20], %43 {strides = array<i32>} : memref<2x8x32xf32, #tpu.memory_space<vmem>>, vector<1x8x32xf32>,
    %c1_i32 = arith.constant 1 : i32
    %cst_21 = arith.constant dense<0.000000e+00> : vector<8x32xf32>
    %44 = tpu.matmul %39, %0, %cst_21 {dimension_numbers = #tpu.dot_dimension_numbers<[1], [0], [0], [1], [0, 0, 1, 1], [], []>} : vector<8x32xf32>, vector<32x32xf32>, vector<8x32xf32> -> vector<8x32xf32>
    %cst_22 = arith.constant dense<0.000000e+00> : vector<8x32xf32>
    %45 = tpu.matmul %39, %1, %cst_22 {dimension_numbers = #tpu.dot_dimension_numbers<[1], [0], [0], [1], [0, 0, 1, 1], [], []>} : vector<8x32xf32>, vector<32x32xf32>, vector<8x32xf32> -> vector<8x32xf32>
    %cst_23 = arith.constant dense<0.000000e+00> : vector<8x32xf32>
    %46 = tpu.matmul %39, %2, %cst_23 {dimension_numbers = #tpu.dot_dimension_numbers<[1], [0], [0], [1], [0, 0, 1, 1], [], []>} : vector<8x32xf32>, vector<32x32xf32>, vector<8x32xf32> -> vector<8x32xf32>
    %47 = arith.addf %46, %5 : vector<8x32xf32>
    %48 = arith.index_cast %c1_i32 : i32 to index
    %c0_24 = arith.constant 0 : index
    %c0_25 = arith.constant 0 : index
    %49 = vector.load %arg0[%48, %c0_24, %c0_25] : memref<2x8x32xf32, #tpu.memory_space<vmem>>, vector<1x8x32xf32>
    %50 = vector.shape_cast %49 : vector<1x8x32xf32> to vector<8x32xf32>
    %51 = arith.addf %50, %44 : vector<8x32xf32>
    %52 = arith.negf %51 : vector<8x32xf32>
    %53 = math.exp %52 : vector<8x32xf32>
    %cst_26 = arith.constant 1.000000e+00 : f32
    %54 = vector.broadcast %cst_26 : f32 to vector<8x32xf32>
    %55 = arith.addf %54, %53 : vector<8x32xf32>
    %56 = arith.divf %54, %55 : vector<8x32xf32>
    %57 = arith.index_cast %c1_i32 : i32 to index
    %c0_27 = arith.constant 0 : index
    %c0_28 = arith.constant 0 : index
    %58 = vector.load %arg1[%57, %c0_27, %c0_28] : memref<2x8x32xf32, #tpu.memory_space<vmem>>, vector<1x8x32xf32>
    %59 = vector.shape_cast %58 : vector<1x8x32xf32> to vector<8x32xf32>
    %60 = arith.addf %59, %45 : vector<8x32xf32>
    %61 = arith.negf %60 : vector<8x32xf32>
    %62 = math.exp %61 : vector<8x32xf32>
    %cst_29 = arith.constant 1.000000e+00 : f32
    %63 = vector.broadcast %cst_29 : f32 to vector<8x32xf32>
    %64 = arith.addf %63, %62 : vector<8x32xf32>
    %65 = arith.divf %63, %64 : vector<8x32xf32>
    %66 = arith.index_cast %c1_i32 : i32 to index
    %c0_30 = arith.constant 0 : index
    %c0_31 = arith.constant 0 : index
    %67 = vector.load %arg2[%66, %c0_30, %c0_31] : memref<2x8x32xf32, #tpu.memory_space<vmem>>, vector<1x8x32xf32>
    %68 = vector.shape_cast %67 : vector<1x8x32xf32> to vector<8x32xf32>
    %69 = arith.mulf %56, %47 : vector<8x32xf32>
    %70 = arith.addf %68, %69 : vector<8x32xf32>
    %71 = math.tanh %70 : vector<8x32xf32>
    %cst_32 = arith.constant 1.000000e+00 : f32
    %72 = vector.broadcast %cst_32 : f32 to vector<8x32xf32>
    %73 = arith.subf %72, %65 : vector<8x32xf32>
    %74 = arith.mulf %73, %71 : vector<8x32xf32>
    %75 = arith.mulf %65, %39 : vector<8x32xf32>
    %76 = arith.addf %74, %75 : vector<8x32xf32>
    %77 = arith.index_cast %c1_i32 : i32 to index
    %c0_33 = arith.constant 0 : index
    %c0_34 = arith.constant 0 : index
    %78 = vector.load %arg7[%77, %c0_33, %c0_34] : memref<2x8x32xf32, #tpu.memory_space<vmem>>, vector<1x8x32xf32>
    %79 = vector.shape_cast %78 : vector<1x8x32xf32> to vector<8x32xf32>
    %80 = vector.shape_cast %76 : vector<8x32xf32> to vector<1x8x32xf32>
    tpu.vector_store %arg7[%77, %c0_33, %c0_34], %80 {strides = array<i32>} : memref<2x8x32xf32, #tpu.memory_space<vmem>>, vector<1x8x32xf32>,
    %c2_i32 = arith.constant 2 : i32
    return
  }
}

</mosaic_0001>

<llo_original>
// kernel: classifier_forward.5
$region0: #{classifier_forward.5}
  #allocation0 [shape = 'u32[]', space=smem, size = 0x4, offset = 0x4, fixed_abs, tag = 'smem constant byte address 0x4 - core index']
  #allocation1 [shape = 'u32[144,128]{1,0:T(1,128)}', space=vmem, size = 0x12000, scoped, tag = 'internal scratch']
  %s0 = inlined_call_operand.vmem [shape: f32[2,8,32], index: 0, kind: input, shape index: {}]
  %s1 = inlined_call_operand.vmem [shape: f32[2,8,32], index: 1, kind: input, shape index: {}]
  %s2 = inlined_call_operand.vmem [shape: f32[2,8,32], index: 2, kind: input, shape index: {}]
  %s3 = inlined_call_operand.vmem [shape: f32[32,32], index: 3, kind: input, shape index: {}]
  %s4 = inlined_call_operand.vmem [shape: f32[32,32], index: 4, kind: input, shape index: {}]
  %s5 = inlined_call_operand.vmem [shape: f32[32,32], index: 5, kind: input, shape index: {}]
  %s6 = inlined_call_operand.vmem [shape: f32[1,32], index: 6, kind: input, shape index: {}]
  %s7 = inlined_call_operand.vmem [shape: f32[2,8,32], index: 7, kind: output, shape index: {}]
  %s8 = sld [smem:[#allocation0]]
  $region38: #{classifier_forward.5} parent=0
    _
  %s10 = ssub.s32 1, %s8
  %s11 = scalar_select 0, %s10, %s8
  // Predicated region
  $region2: #{classifier_forward.5} parent=0 // pred_check
    _
  $region3: #{classifier_forward.5} parent=0 // pred_check_branch
    %13 = sbr.rel (0) target = $region5
  $region4: #{classifier_forward.5} parent=0 // pred_region
    _
  $region5: #{classifier_forward.5} parent=0 // pred_fallthru
    _
  // Predicated region
  $region6: #{classifier_forward.5} parent=0 // pred_check
    _
  $region7: #{classifier_forward.5} parent=0 // pred_check_branch
    %15 = sbr.rel (0) target = $region9
  $region8: #{classifier_forward.5} parent=0 // pred_region
    _
  $region9: #{classifier_forward.5} parent=0 // pred_fallthru
    _
  // Predicated region
  $region10: #{classifier_forward.5} parent=0 // pred_check
    _
  $region11: #{classifier_forward.5} parent=0 // pred_check_branch
    %17 = sbr.rel (0) target = $region13
  $region12: #{classifier_forward.5} parent=0 // pred_region
    _
  $region13: #{classifier_forward.5} parent=0 // pred_fallthru
    _
  // Predicated region
  $region14: #{classifier_forward.5} parent=0 // pred_check
    _
  $region15: #{classifier_forward.5} parent=0 // pred_check_branch
    %19 = sbr.rel (0) target = $region17
  $region16: #{classifier_forward.5} parent=0 // pred_region
    _
  $region17: #{classifier_forward.5} parent=0 // pred_fallthru
    _
  // Predicated region
  $region18: #{classifier_forward.5} parent=0 // pred_check
    _
  $region19: #{classifier_forward.5} parent=0 // pred_check_branch
    %21 = sbr.rel (0) target = $region21
  $region20: #{classifier_forward.5} parent=0 // pred_region
    _
  $region21: #{classifier_forward.5} parent=0 // pred_fallthru
    _
  // Predicated region
  $region22: #{classifier_forward.5} parent=0 // pred_check
    _
  $region23: #{classifier_forward.5} parent=0 // pred_check_branch
    %23 = sbr.rel (0) target = $region25
  $region24: #{classifier_forward.5} parent=0 // pred_region
    _
  $region25: #{classifier_forward.5} parent=0 // pred_fallthru
    _
  // Predicated region
  $region26: #{classifier_forward.5} parent=0 // pred_check
    _
  $region27: #{classifier_forward.5} parent=0 // pred_check_branch
    %25 = sbr.rel (0) target = $region29
  $region28: #{classifier_forward.5} parent=0 // pred_region
    _
  $region29: #{classifier_forward.5} parent=0 // pred_fallthru
    _
  %v26 = vld [vmem:[%s3] sm:$0xff]
  %v27 = vld [vmem:[%s3 + $0x8] sm:$0xff]
  %v28 = vld [vmem:[%s3 + $0x10] sm:$0xff]
  %v29 = vld [vmem:[%s3 + $0x18] sm:$0xff]
  %v30 = vld [vmem:[%s4] sm:$0xff]
  %v31 = vld [vmem:[%s4 + $0x8] sm:$0xff]
  %v32 = vld [vmem:[%s4 + $0x10] sm:$0xff]
  %v33 = vld [vmem:[%s4 + $0x18] sm:$0xff]
  %v34 = vld [vmem:[%s5] sm:$0xff]
  %v35 = vld [vmem:[%s5 + $0x8] sm:$0xff]
  %v36 = vld [vmem:[%s5 + $0x10] sm:$0xff]
  %v37 = vld [vmem:[%s5 + $0x18] sm:$0xff]
  %v38 = vld [vmem:[%s6] sm:$0x1]
  %v40 = vlaneseq
  %v41 = vshrl.u32 %v40, 7
  %v42 = vsub.s32 0, %v41
  %v43 = vrot.slane %v38, %v42
  %vm45 = vcmask 261120
  %v47 = vsel %vm45, 0.0, 0
  %49 = vmatprep.subr.mxu0 0.0
  %50 = vmatpush1.msra.mxu0 0.0
  %51 = vmatprep.subr.mxu0 0.0
  %52 = vmatpush1.msra.mxu0 0.0
  %53 = vmatprep.subr.mxu0 0.0
  %54 = vmatpush1.msra.mxu0 0.0
  %55 = vmatprep.subr.mxu0 0.0
  %56 = vmatpush1.msra.mxu0 0.0
  %57 = vmatprep.subr.mxu0 0.0
  %58 = vmatpush1.msra.mxu0 0.0
  %59 = vmatprep.subr.mxu0 0.0
  %60 = vmatpush1.msra.mxu0 0.0
  %61 = vmatprep.subr.mxu0 0.0
  %62 = vmatpush1.msra.mxu0 0.0
  %63 = vmatprep.subr.mxu0 0.0
  %64 = vmatpush1.msra.mxu0 0.0
  %65 = vmatprep.subr.mxu0 0.0
  %66 = vmatpush1.msra.mxu0 0.0
  %67 = vmatprep.subr.mxu0 0.0
  %68 = vmatpush1.msra.mxu0 0.0
  %69 = vmatprep.subr.mxu0 0.0
  %70 = vmatpush1.msra.mxu0 0.0
  %71 = vmatprep.subr.mxu0 0.0
  %72 = vmatpush1.msra.mxu0 0.0
  %73 = vmatprep.subr.mxu0 0.0
  %74 = vmatpush1.msra.mxu0 %v29
  %75 = vmatprep.subr.mxu0 0.0
  %76 = vmatpush1.msra.mxu0 %v28
  %77 = vmatprep.subr.mxu0 0.0
  %78 = vmatpush1.msra.mxu0 %v27
  %79 = vmatprep.subr.mxu0 0.0
  %80 = vmatpush1.msra.mxu0 %v26
  %81 = vmatprep.subr.mxu0 0.0
  %82 = vmatpush2.msra.mxu0 0.0
  %83 = vmatprep.subr.mxu0 0.0
  %84 = vmatpush2.msra.mxu0 0.0
  %85 = vmatprep.subr.mxu0 0.0
  %86 = vmatpush2.msra.mxu0 0.0
  %87 = vmatprep.subr.mxu0 0.0
  %88 = vmatpush2.msra.mxu0 0.0
  %89 = vmatprep.subr.mxu0 0.0
  %90 = vmatpush2.msra.mxu0 0.0
  %91 = vmatprep.subr.mxu0 0.0
  %92 = vmatpush2.msra.mxu0 0.0
  %93 = vmatprep.subr.mxu0 0.0
  %94 = vmatpush2.msra.mxu0 0.0
  %95 = vmatprep.subr.mxu0 0.0
  %96 = vmatpush2.msra.mxu0 0.0
  %97 = vmatprep.subr.mxu0 0.0
  %98 = vmatpush2.msra.mxu0 0.0
  %99 = vmatprep.subr.mxu0 0.0
  %100 = vmatpush2.msra.mxu0 0.0
  %101 = vmatprep.subr.mxu0 0.0
  %102 = vmatpush2.msra.mxu0 0.0
  %103 = vmatprep.subr.mxu0 0.0
  %104 = vmatpush2.msra.mxu0 0.0
  %105 = vmatprep.subr.mxu0 0.0
  %106 = vmatpush2.msra.mxu0 0.0
  %107 = vmatprep.subr.mxu0 0.0
  %108 = vmatpush2.msra.mxu0 0.0
  %109 = vmatprep.subr.mxu0 0.0
  %110 = vmatpush2.msra.mxu0 0.0
  %111 = vmatprep.subr.mxu0 0.0
  %112 = vmatpush2.msra.mxu0 0.0
  %113 = vmatprep.mubr.f32.mxu0 0.0
  %114 = vmatmul.mubr.f32.gmra.mxu0 %v47
  %v115 = vpop.f32.mrf.mxu0
  %v116 = vadd.f32 0.0, %v115
  %v117 = vpop.f32.mrf.mxu0
  %118 = vdwg.mxu0
  %119 = vmatprep.subr.mxu0 0.0
  %120 = vmatpush1.msra.mxu0 0.0
  %121 = vmatprep.subr.mxu0 0.0
  %122 = vmatpush1.msra.mxu0 0.0
  %123 = vmatprep.subr.mxu0 0.0
  %124 = vmatpush1.msra.mxu0 0.0
  %125 = vmatprep.subr.mxu0 0.0
  %126 = vmatpush1.msra.mxu0 0.0
  %127 = vmatprep.subr.mxu0 0.0
  %128 = vmatpush1.msra.mxu0 0.0
  %129 = vmatprep.subr.mxu0 0.0
  %130 = vmatpush1.msra.mxu0 0.0
  %131 = vmatprep.subr.mxu0 0.0
  %132 = vmatpush1.msra.mxu0 0.0
  %133 = vmatprep.subr.mxu0 0.0
  %134 = vmatpush1.msra.mxu0 0.0
  %135 = vmatprep.subr.mxu0 0.0
  %136 = vmatpush1.msra.mxu0 0.0
  %137 = vmatprep.subr.mxu0 0.0
  %138 = vmatpush1.msra.mxu0 0.0
  %139 = vmatprep.subr.mxu0 0.0
  %140 = vmatpush1.msra.mxu0 0.0
  %141 = vmatprep.subr.mxu0 0.0
  %142 = vmatpush1.msra.mxu0 0.0
  %143 = vmatprep.subr.mxu0 0.0
  %144 = vmatpush1.msra.mxu0 %v33
  %145 = vmatprep.subr.mxu0 0.0
  %146 = vmatpush1.msra.mxu0 %v32
  %147 = vmatprep.subr.mxu0 0.0
  %148 = vmatpush1.msra.mxu0 %v31
  %149 = vmatprep.subr.mxu0 0.0
  %150 = vmatpush1.msra.mxu0 %v30
  %151 = vmatprep.subr.mxu0 0.0
  %152 = vmatpush2.msra.mxu0 0.0
  %153 = vmatprep.subr.mxu0 0.0
  %154 = vmatpush2.msra.mxu0 0.0
  %155 = vmatprep.subr.mxu0 0.0
  %156 = vmatpush2.msra.mxu0 0.0
  %157 = vmatprep.subr.mxu0 0.0
  %158 = vmatpush2.msra.mxu0 0.0
  %159 = vmatprep.subr.mxu0 0.0
  %160 = vmatpush2.msra.mxu0 0.0
  %161 = vmatprep.subr.mxu0 0.0
  %162 = vmatpush2.msra.mxu0 0.0
  %163 = vmatprep.subr.mxu0 0.0
  %164 = vmatpush2.msra.mxu0 0.0
  %165 = vmatprep.subr.mxu0 0.0
  %166 = vmatpush2.msra.mxu0 0.0
  %167 = vmatprep.subr.mxu0 0.0
  %168 = vmatpush2.msra.mxu0 0.0
  %169 = vmatprep.subr.mxu0 0.0
  %170 = vmatpush2.msra.mxu0 0.0
  %171 = vmatprep.subr.mxu0 0.0
  %172 = vmatpush2.msra.mxu0 0.0
  %173 = vmatprep.subr.mxu0 0.0
  %174 = vmatpush2.msra.mxu0 0.0
  %175 = vmatprep.subr.mxu0 0.0
  %176 = vmatpush2.msra.mxu0 0.0
  %177 = vmatprep.subr.mxu0 0.0
  %178 = vmatpush2.msra.mxu0 0.0
  %179 = vmatprep.subr.mxu0 0.0
  %180 = vmatpush2.msra.mxu0 0.0
  %181 = vmatprep.subr.mxu0 0.0
  %182 = vmatpush2.msra.mxu0 0.0
  %183 = vmatprep.mubr.f32.mxu0 0.0
  %184 = vmatmul.mubr.f32.gmra.mxu0 %v47
  %v185 = vpop.f32.mrf.mxu0
  %v186 = vadd.f32 0.0, %v185
  %v187 = vpop.f32.mrf.mxu0
  %188 = vdwg.mxu0
  %189 = vmatprep.subr.mxu0 0.0
  %190 = vmatpush1.msra.mxu0 0.0
  %191 = vmatprep.subr.mxu0 0.0
  %192 = vmatpush1.msra.mxu0 0.0
  %193 = vmatprep.subr.mxu0 0.0
  %194 = vmatpush1.msra.mxu0 0.0
  %195 = vmatprep.subr.mxu0 0.0
  %196 = vmatpush1.msra.mxu0 0.0
  %197 = vmatprep.subr.mxu0 0.0
  %198 = vmatpush1.msra.mxu0 0.0
  %199 = vmatprep.subr.mxu0 0.0
  %200 = vmatpush1.msra.mxu0 0.0
  %201 = vmatprep.subr.mxu0 0.0
  %202 = vmatpush1.msra.mxu0 0.0
  %203 = vmatprep.subr.mxu0 0.0
  %204 = vmatpush1.msra.mxu0 0.0
  %205 = vmatprep.subr.mxu0 0.0
  %206 = vmatpush1.msra.mxu0 0.0
  %207 = vmatprep.subr.mxu0 0.0
  %208 = vmatpush1.msra.mxu0 0.0
  %209 = vmatprep.subr.mxu0 0.0
  %210 = vmatpush1.msra.mxu0 0.0
  %211 = vmatprep.subr.mxu0 0.0
  %212 = vmatpush1.msra.mxu0 0.0
  %213 = vmatprep.subr.mxu0 0.0
  %214 = vmatpush1.msra.mxu0 %v37
  %215 = vmatprep.subr.mxu0 0.0
  %216 = vmatpush1.msra.mxu0 %v36
  %217 = vmatprep.subr.mxu0 0.0
  %218 = vmatpush1.msra.mxu0 %v35
  %219 = vmatprep.subr.mxu0 0.0
  %220 = vmatpush1.msra.mxu0 %v34
  %221 = vmatprep.subr.mxu0 0.0
  %222 = vmatpush2.msra.mxu0 0.0
  %223 = vmatprep.subr.mxu0 0.0
  %224 = vmatpush2.msra.mxu0 0.0
  %225 = vmatprep.subr.mxu0 0.0
  %226 = vmatpush2.msra.mxu0 0.0
  %227 = vmatprep.subr.mxu0 0.0
  %228 = vmatpush2.msra.mxu0 0.0
  %229 = vmatprep.subr.mxu0 0.0
  %230 = vmatpush2.msra.mxu0 0.0
  %231 = vmatprep.subr.mxu0 0.0
  %232 = vmatpush2.msra.mxu0 0.0
  %233 = vmatprep.subr.mxu0 0.0
  %234 = vmatpush2.msra.mxu0 0.0
  %235 = vmatprep.subr.mxu0 0.0
  %236 = vmatpush2.msra.mxu0 0.0
  %237 = vmatprep.subr.mxu0 0.0
  %238 = vmatpush2.msra.mxu0 0.0
  %239 = vmatprep.subr.mxu0 0.0
  %240 = vmatpush2.msra.mxu0 0.0
  %241 = vmatprep.subr.mxu0 0.0
  %242 = vmatpush2.msra.mxu0 0.0
  %243 = vmatprep.subr.mxu0 0.0
  %244 = vmatpush2.msra.mxu0 0.0
  %245 = vmatprep.subr.mxu0 0.0
  %246 = vmatpush2.msra.mxu0 0.0
  %247 = vmatprep.subr.mxu0 0.0
  %248 = vmatpush2.msra.mxu0 0.0
  %249 = vmatprep.subr.mxu0 0.0
  %250 = vmatpush2.msra.mxu0 0.0
  %251 = vmatprep.subr.mxu0 0.0
  %252 = vmatpush2.msra.mxu0 0.0
  %253 = vmatprep.mubr.f32.mxu0 0.0
  %254 = vmatmul.mubr.f32.gmra.mxu0 %v47
  %v255 = vpop.f32.mrf.mxu0
  %v256 = vadd.f32 %v43, %v255
  %v257 = vpop.f32.mrf.mxu0
  %258 = vdwg.mxu0
  %v259 = vld [vmem:[%s0] sm:$0xff]
  %v260 = vadd.f32 %v259, %v116
  %v261 = vxor.u32 %v260, 2147483648
  %v262 = vmul.f32 %v261, 1.442695
  %v263 = vpow.pop %v262
  %v264 = vadd.f32 %v263, 1.0
  %v265 = vrcp.pop %v264
  %v266 = vmul.f32 1.0, %v265
  %v267 = vld [vmem:[%s1] sm:$0xff]
  %v268 = vadd.f32 %v267, %v186
  %v269 = vxor.u32 %v268, 2147483648
  %v270 = vmul.f32 %v269, 1.442695
  %v271 = vpow.pop %v270
  %v272 = vadd.f32 %v271, 1.0
  %v273 = vrcp.pop %v272
  %v274 = vmul.f32 1.0, %v273
  %v275 = vld [vmem:[%s2] sm:$0xff]
  %v276 = vmul.f32 %v266, %v256
  %v277 = vadd.f32 %v275, %v276
  %v278 = vtanh.pop %v277
  %v279 = vsub.f32 1.0, %v274
  %v280 = vmul.f32 %v279, %v278
  %v281 = vmul.f32 %v274, 0.0
  %v282 = vadd.f32 %v280, %v281
  %283 = vst.msk [vmem:[%s7] sm:$0xff] %vm45, %v282
  %v285 = vsel %vm45, %v282, 0
  %287 = vmatprep.subr.mxu0 0.0
  %288 = vmatpush1.msra.mxu0 0.0
  %289 = vmatprep.subr.mxu0 0.0
  %290 = vmatpush1.msra.mxu0 0.0
  %291 = vmatprep.subr.mxu0 0.0
  %292 = vmatpush1.msra.mxu0 0.0
  %293 = vmatprep.subr.mxu0 0.0
  %294 = vmatpush1.msra.mxu0 0.0
  %295 = vmatprep.subr.mxu0 0.0
  %296 = vmatpush1.msra.mxu0 0.0
  %297 = vmatprep.subr.mxu0 0.0
  %298 = vmatpush1.msra.mxu0 0.0
  %299 = vmatprep.subr.mxu0 0.0
  %300 = vmatpush1.msra.mxu0 0.0
  %301 = vmatprep.subr.mxu0 0.0
  %302 = vmatpush1.msra.mxu0 0.0
  %303 = vmatprep.subr.mxu0 0.0
  %304 = vmatpush1.msra.mxu0 0.0
  %305 = vmatprep.subr.mxu0 0.0
  %306 = vmatpush1.msra.mxu0 0.0
  %307 = vmatprep.subr.mxu0 0.0
  %308 = vmatpush1.msra.mxu0 0.0
  %309 = vmatprep.subr.mxu0 0.0
  %310 = vmatpush1.msra.mxu0 0.0
  %311 = vmatprep.subr.mxu0 0.0
  %312 = vmatpush1.msra.mxu0 %v29
  %313 = vmatprep.subr.mxu0 0.0
  %314 = vmatpush1.msra.mxu0 %v28
  %315 = vmatprep.subr.mxu0 0.0
  %316 = vmatpush1.msra.mxu0 %v27
  %317 = vmatprep.subr.mxu0 0.0
  %318 = vmatpush1.msra.mxu0 %v26
  %319 = vmatprep.subr.mxu0 0.0
  %320 = vmatpush2.msra.mxu0 0.0
  %321 = vmatprep.subr.mxu0 0.0
  %322 = vmatpush2.msra.mxu0 0.0
  %323 = vmatprep.subr.mxu0 0.0
  %324 = vmatpush2.msra.mxu0 0.0
  %325 = vmatprep.subr.mxu0 0.0
  %326 = vmatpush2.msra.mxu0 0.0
  %327 = vmatprep.subr.mxu0 0.0
  %328 = vmatpush2.msra.mxu0 0.0
  %329 = vmatprep.subr.mxu0 0.0
  %330 = vmatpush2.msra.mxu0 0.0
  %331 = vmatprep.subr.mxu0 0.0
  %332 = vmatpush2.msra.mxu0 0.0
  %333 = vmatprep.subr.mxu0 0.0
  %334 = vmatpush2.msra.mxu0 0.0
  %335 = vmatprep.subr.mxu0 0.0
  %336 = vmatpush2.msra.mxu0 0.0
  %337 = vmatprep.subr.mxu0 0.0
  %338 = vmatpush2.msra.mxu0 0.0
  %339 = vmatprep.subr.mxu0 0.0
  %340 = vmatpush2.msra.mxu0 0.0
  %341 = vmatprep.subr.mxu0 0.0
  %342 = vmatpush2.msra.mxu0 0.0
  %343 = vmatprep.subr.mxu0 0.0
  %344 = vmatpush2.msra.mxu0 0.0
  %345 = vmatprep.subr.mxu0 0.0
  %346 = vmatpush2.msra.mxu0 0.0
  %347 = vmatprep.subr.mxu0 0.0
  %348 = vmatpush2.msra.mxu0 0.0
  %349 = vmatprep.subr.mxu0 0.0
  %350 = vmatpush2.msra.mxu0 0.0
  %351 = vmatprep.mubr.f32.mxu0 0.0
  %352 = vmatmul.mubr.f32.gmra.mxu0 %v285
  %v353 = vpop.f32.mrf.mxu0
  %v354 = vadd.f32 0.0, %v353
  %v355 = vpop.f32.mrf.mxu0
  %356 = vdwg.mxu0
  %357 = vmatprep.subr.mxu0 0.0
  %358 = vmatpush1.msra.mxu0 0.0
  %359 = vmatprep.subr.mxu0 0.0
  %360 = vmatpush1.msra.mxu0 0.0
  %361 = vmatprep.subr.mxu0 0.0
  %362 = vmatpush1.msra.mxu0 0.0
  %363 = vmatprep.subr.mxu0 0.0
  %364 = vmatpush1.msra.mxu0 0.0
  %365 = vmatprep.subr.mxu0 0.0
  %366 = vmatpush1.msra.mxu0 0.0
  %367 = vmatprep.subr.mxu0 0.0
  %368 = vmatpush1.msra.mxu0 0.0
  %369 = vmatprep.subr.mxu0 0.0
  %370 = vmatpush1.msra.mxu0 0.0
  %371 = vmatprep.subr.mxu0 0.0
  %372 = vmatpush1.msra.mxu0 0.0
  %373 = vmatprep.subr.mxu0 0.0
  %374 = vmatpush1.msra.mxu0 0.0
  %375 = vmatprep.subr.mxu0 0.0
  %376 = vmatpush1.msra.mxu0 0.0
  %377 = vmatprep.subr.mxu0 0.0
  %378 = vmatpush1.msra.mxu0 0.0
  %379 = vmatprep.subr.mxu0 0.0
  %380 = vmatpush1.msra.mxu0 0.0
  %381 = vmatprep.subr.mxu0 0.0
  %382 = vmatpush1.msra.mxu0 %v33
  %383 = vmatprep.subr.mxu0 0.0
  %384 = vmatpush1.msra.mxu0 %v32
  %385 = vmatprep.subr.mxu0 0.0
  %386 = vmatpush1.msra.mxu0 %v31
  %387 = vmatprep.subr.mxu0 0.0
  %388 = vmatpush1.msra.mxu0 %v30
  %389 = vmatprep.subr.mxu0 0.0
  %390 = vmatpush2.msra.mxu0 0.0
  %391 = vmatprep.subr.mxu0 0.0
  %392 = vmatpush2.msra.mxu0 0.0
  %393 = vmatprep.subr.mxu0 0.0
  %394 = vmatpush2.msra.mxu0 0.0
  %395 = vmatprep.subr.mxu0 0.0
  %396 = vmatpush2.msra.mxu0 0.0
  %397 = vmatprep.subr.mxu0 0.0
  %398 = vmatpush2.msra.mxu0 0.0
  %399 = vmatprep.subr.mxu0 0.0
  %400 = vmatpush2.msra.mxu0 0.0
  %401 = vmatprep.subr.mxu0 0.0
  %402 = vmatpush2.msra.mxu0 0.0
  %403 = vmatprep.subr.mxu0 0.0
  %404 = vmatpush2.msra.mxu0 0.0
  %405 = vmatprep.subr.mxu0 0.0
  %406 = vmatpush2.msra.mxu0 0.0
  %407 = vmatprep.subr.mxu0 0.0
  %408 = vmatpush2.msra.mxu0 0.0
  %409 = vmatprep.subr.mxu0 0.0
  %410 = vmatpush2.msra.mxu0 0.0
  %411 = vmatprep.subr.mxu0 0.0
  %412 = vmatpush2.msra.mxu0 0.0
  %413 = vmatprep.subr.mxu0 0.0
  %414 = vmatpush2.msra.mxu0 0.0
  %415 = vmatprep.subr.mxu0 0.0
  %416 = vmatpush2.msra.mxu0 0.0
  %417 = vmatprep.subr.mxu0 0.0
  %418 = vmatpush2.msra.mxu0 0.0
  %419 = vmatprep.subr.mxu0 0.0
  %420 = vmatpush2.msra.mxu0 0.0
  %421 = vmatprep.mubr.f32.mxu0 0.0
  %422 = vmatmul.mubr.f32.gmra.mxu0 %v285
  %v423 = vpop.f32.mrf.mxu0
  %v424 = vadd.f32 0.0, %v423
  %v425 = vpop.f32.mrf.mxu0
  %426 = vdwg.mxu0
  %427 = vmatprep.subr.mxu0 0.0
  %428 = vmatpush1.msra.mxu0 0.0
  %429 = vmatprep.subr.mxu0 0.0
  %430 = vmatpush1.msra.mxu0 0.0
  %431 = vmatprep.subr.mxu0 0.0
  %432 = vmatpush1.msra.mxu0 0.0
  %433 = vmatprep.subr.mxu0 0.0
  %434 = vmatpush1.msra.mxu0 0.0
  %435 = vmatprep.subr.mxu0 0.0
  %436 = vmatpush1.msra.mxu0 0.0
  %437 = vmatprep.subr.mxu0 0.0
  %438 = vmatpush1.msra.mxu0 0.0
  %439 = vmatprep.subr.mxu0 0.0
  %440 = vmatpush1.msra.mxu0 0.0
  %441 = vmatprep.subr.mxu0 0.0
  %442 = vmatpush1.msra.mxu0 0.0
  %443 = vmatprep.subr.mxu0 0.0
  %444 = vmatpush1.msra.mxu0 0.0
  %445 = vmatprep.subr.mxu0 0.0
  %446 = vmatpush1.msra.mxu0 0.0
  %447 = vmatprep.subr.mxu0 0.0
  %448 = vmatpush1.msra.mxu0 0.0
  %449 = vmatprep.subr.mxu0 0.0
  %450 = vmatpush1.msra.mxu0 0.0
  %451 = vmatprep.subr.mxu0 0.0
  %452 = vmatpush1.msra.mxu0 %v37
  %453 = vmatprep.subr.mxu0 0.0
  %454 = vmatpush1.msra.mxu0 %v36
  %455 = vmatprep.subr.mxu0 0.0
  %456 = vmatpush1.msra.mxu0 %v35
  %457 = vmatprep.subr.mxu0 0.0
  %458 = vmatpush1.msra.mxu0 %v34
  %459 = vmatprep.subr.mxu0 0.0
  %460 = vmatpush2.msra.mxu0 0.0
  %461 = vmatprep.subr.mxu0 0.0
  %462 = vmatpush2.msra.mxu0 0.0
  %463 = vmatprep.subr.mxu0 0.0
  %464 = vmatpush2.msra.mxu0 0.0
  %465 = vmatprep.subr.mxu0 0.0
  %466 = vmatpush2.msra.mxu0 0.0
  %467 = vmatprep.subr.mxu0 0.0
  %468 = vmatpush2.msra.mxu0 0.0
  %469 = vmatprep.subr.mxu0 0.0
  %470 = vmatpush2.msra.mxu0 0.0
  %471 = vmatprep.subr.mxu0 0.0
  %472 = vmatpush2.msra.mxu0 0.0
  %473 = vmatprep.subr.mxu0 0.0
  %474 = vmatpush2.msra.mxu0 0.0
  %475 = vmatprep.subr.mxu0 0.0
  %476 = vmatpush2.msra.mxu0 0.0
  %477 = vmatprep.subr.mxu0 0.0
  %478 = vmatpush2.msra.mxu0 0.0
  %479 = vmatprep.subr.mxu0 0.0
  %480 = vmatpush2.msra.mxu0 0.0
  %481 = vmatprep.subr.mxu0 0.0
  %482 = vmatpush2.msra.mxu0 0.0
  %483 = vmatprep.subr.mxu0 0.0
  %484 = vmatpush2.msra.mxu0 0.0
  %485 = vmatprep.subr.mxu0 0.0
  %486 = vmatpush2.msra.mxu0 0.0
  %487 = vmatprep.subr.mxu0 0.0
  %488 = vmatpush2.msra.mxu0 0.0
  %489 = vmatprep.subr.mxu0 0.0
  %490 = vmatpush2.msra.mxu0 0.0
  %491 = vmatprep.mubr.f32.mxu0 0.0
  %492 = vmatmul.mubr.f32.gmra.mxu0 %v285
  %v493 = vpop.f32.mrf.mxu0
  %v494 = vadd.f32 %v43, %v493
  %v495 = vpop.f32.mrf.mxu0
  %496 = vdwg.mxu0
  %s497 = scalar_lea.vmem %s0, 8
  %v498 = vld [vmem:[%s497] sm:$0xff]
  %v499 = vadd.f32 %v498, %v354
  %v500 = vxor.u32 %v499, 2147483648
  %v501 = vmul.f32 %v500, 1.442695
  %v502 = vpow.pop %v501
  %v503 = vadd.f32 %v502, 1.0
  %v504 = vrcp.pop %v503
  %v505 = vmul.f32 1.0, %v504
  %s506 = scalar_lea.vmem %s1, 8
  %v507 = vld [vmem:[%s506] sm:$0xff]
  %v508 = vadd.f32 %v507, %v424
  %v509 = vxor.u32 %v508, 2147483648
  %v510 = vmul.f32 %v509, 1.442695
  %v511 = vpow.pop %v510
  %v512 = vadd.f32 %v511, 1.0
  %v513 = vrcp.pop %v512
  %v514 = vmul.f32 1.0, %v513
  %s515 = scalar_lea.vmem %s2, 8
  %v516 = vld [vmem:[%s515] sm:$0xff]
  %v517 = vmul.f32 %v505, %v494
  %v518 = vadd.f32 %v516, %v517
  %v519 = vtanh.pop %v518
  %v520 = vsub.f32 1.0, %v514
  %v521 = vmul.f32 %v520, %v519
  %v522 = vmul.f32 %v514, %v282
  %v523 = vadd.f32 %v521, %v522
  %s524 = scalar_lea.vmem %s7, 8
  %525 = vst.msk [vmem:[%s524] sm:$0xff] %vm45, %v523
  // Predicated region
  $region30: #{classifier_forward.5} parent=0 // pred_check
    _
  $region31: #{classifier_forward.5} parent=0 // pred_check_branch
    %527 = sbr.rel (0) target = $region33
  $region32: #{classifier_forward.5} parent=0 // pred_region
    _
  $region33: #{classifier_forward.5} parent=0 // pred_fallthru
    _
  // Predicated region
  $region34: #{classifier_forward.5} parent=0 // pred_check
    _
  $region35: #{classifier_forward.5} parent=0 // pred_check_branch
    %529 = sbr.rel (0) target = $region37
  $region36: #{classifier_forward.5} parent=0 // pred_region
    _
  $region37: #{classifier_forward.5} parent=0 // pred_fallthru
    _

// kernel: classifier_forward.4
$region0: #{classifier_forward.4}
  #allocation0 [shape = 'u32[]', space=smem, size = 0x4, offset = 0x4, fixed_abs, tag = 'smem constant byte address 0x4 - core index']
  #allocation1 [shape = 'u32[144,128]{1,0:T(1,128)}', space=vmem, size = 0x12000, scoped, tag = 'internal scratch']
  %s0 = inlined_call_operand.vmem [shape: f32[4,4,32], index: 0, kind: input, shape index: {}]
  %s1 = inlined_call_operand.vmem [shape: f32[4,4,32], index: 1, kind: input, shape index: {}]
  %s2 = inlined_call_operand.vmem [shape: f32[4,4,32], index: 2, kind: input, shape index: {}]
  %s3 = inlined_call_operand.vmem [shape: f32[32,32], index: 3, kind: input, shape index: {}]
  %s4 = inlined_call_operand.vmem [shape: f32[32,32], index: 4, kind: input, shape index: {}]
  %s5 = inlined_call_operand.vmem [shape: f32[32,32], index: 5, kind: input, shape index: {}]
  %s6 = inlined_call_operand.vmem [shape: f32[1,32], index: 6, kind: input, shape index: {}]
  %s7 = inlined_call_operand.vmem [shape: f32[4,4,32], index: 7, kind: output, shape index: {}]
  %s8 = sld [smem:[#allocation0]]
  $region38: #{classifier_forward.4} parent=0
    _
  %s10 = ssub.s32 1, %s8
  %s11 = scalar_select 0, %s10, %s8
  // Predicated region
  $region2: #{classifier_forward.4} parent=0 // pred_check
    _
  $region3: #{classifier_forward.4} parent=0 // pred_check_branch
    %13 = sbr.rel (0) target = $region5
  $region4: #{classifier_forward.4} parent=0 // pred_region
    _
  $region5: #{classifier_forward.4} parent=0 // pred_fallthru
    _
  // Predicated region
  $region6: #{classifier_forward.4} parent=0 // pred_check
    _
  $region7: #{classifier_forward.4} parent=0 // pred_check_branch
    %15 = sbr.rel (0) target = $region9
  $region8: #{classifier_forward.4} parent=0 // pred_region
    _
  $region9: #{classifier_forward.4} parent=0 // pred_fallthru
    _
  // Predicated region
  $region10: #{classifier_forward.4} parent=0 // pred_check
    _
  $region11: #{classifier_forward.4} parent=0 // pred_check_branch
    %17 = sbr.rel (0) target = $region13
  $region12: #{classifier_forward.4} parent=0 // pred_region
    _
  $region13: #{classifier_forward.4} parent=0 // pred_fallthru
    _
  // Predicated region
  $region14: #{classifier_forward.4} parent=0 // pred_check
    _
  $region15: #{classifier_forward.4} parent=0 // pred_check_branch
    %19 = sbr.rel (0) target = $region17
  $region16: #{classifier_forward.4} parent=0 // pred_region
    _
  $region17: #{classifier_forward.4} parent=0 // pred_fallthru
    _
  // Predicated region
  $region18: #{classifier_forward.4} parent=0 // pred_check
    _
  $region19: #{classifier_forward.4} parent=0 // pred_check_branch
    %21 = sbr.rel (0) target = $region21
  $region20: #{classifier_forward.4} parent=0 // pred_region
    _
  $region21: #{classifier_forward.4} parent=0 // pred_fallthru
    _
  // Predicated region
  $region22: #{classifier_forward.4} parent=0 // pred_check
    _
  $region23: #{classifier_forward.4} parent=0 // pred_check_branch
    %23 = sbr.rel (0) target = $region25
  $region24: #{classifier_forward.4} parent=0 // pred_region
    _
  $region25: #{classifier_forward.4} parent=0 // pred_fallthru
    _
  // Predicated region
  $region26: #{classifier_forward.4} parent=0 // pred_check
    _
  $region27: #{classifier_forward.4} parent=0 // pred_check_branch
    %25 = sbr.rel (0) target = $region29
  $region28: #{classifier_forward.4} parent=0 // pred_region
    _
  $region29: #{classifier_forward.4} parent=0 // pred_fallthru
    _
  %v26 = vld [vmem:[%s3] sm:$0xff]
  %v27 = vld [vmem:[%s3 + $0x8] sm:$0xff]
  %v28 = vld [vmem:[%s3 + $0x10] sm:$0xff]
  %v29 = vld [vmem:[%s3 + $0x18] sm:$0xff]
  %v30 = vld [vmem:[%s4] sm:$0xff]
  %v31 = vld [vmem:[%s4 + $0x8] sm:$0xff]
  %v32 = vld [vmem:[%s4 + $0x10] sm:$0xff]
  %v33 = vld [vmem:[%s4 + $0x18] sm:$0xff]
  %v34 = vld [vmem:[%s5] sm:$0xff]
  %v35 = vld [vmem:[%s5 + $0x8] sm:$0xff]
  %v36 = vld [vmem:[%s5 + $0x10] sm:$0xff]
  %v37 = vld [vmem:[%s5 + $0x18] sm:$0xff]
  %v38 = vld [vmem:[%s6] sm:$0x1]
  %v40 = vlaneseq
  %v41 = vshrl.u32 %v40, 7
  %v42 = vsub.s32 0, %v41
  %v43 = vrot.slane %v38, %v42
  %vm45 = vcmask 261120
  %v47 = vsel %vm45, 0.0, 0
  %49 = vmatprep.subr.mxu0 0.0
  %50 = vmatpush1.msra.mxu0 0.0
  %51 = vmatprep.subr.mxu0 0.0
  %52 = vmatpush1.msra.mxu0 0.0
  %53 = vmatprep.subr.mxu0 0.0
  %54 = vmatpush1.msra.mxu0 0.0
  %55 = vmatprep.subr.mxu0 0.0
  %56 = vmatpush1.msra.mxu0 0.0
  %57 = vmatprep.subr.mxu0 0.0
  %58 = vmatpush1.msra.mxu0 0.0
  %59 = vmatprep.subr.mxu0 0.0
  %60 = vmatpush1.msra.mxu0 0.0
  %61 = vmatprep.subr.mxu0 0.0
  %62 = vmatpush1.msra.mxu0 0.0
  %63 = vmatprep.subr.mxu0 0.0
  %64 = vmatpush1.msra.mxu0 0.0
  %65 = vmatprep.subr.mxu0 0.0
  %66 = vmatpush1.msra.mxu0 0.0
  %67 = vmatprep.subr.mxu0 0.0
  %68 = vmatpush1.msra.mxu0 0.0
  %69 = vmatprep.subr.mxu0 0.0
  %70 = vmatpush1.msra.mxu0 0.0
  %71 = vmatprep.subr.mxu0 0.0
  %72 = vmatpush1.msra.mxu0 0.0
  %73 = vmatprep.subr.mxu0 0.0
  %74 = vmatpush1.msra.mxu0 %v29
  %75 = vmatprep.subr.mxu0 0.0
  %76 = vmatpush1.msra.mxu0 %v28
  %77 = vmatprep.subr.mxu0 0.0
  %78 = vmatpush1.msra.mxu0 %v27
  %79 = vmatprep.subr.mxu0 0.0
  %80 = vmatpush1.msra.mxu0 %v26
  %81 = vmatprep.subr.mxu0 0.0
  %82 = vmatpush2.msra.mxu0 0.0
  %83 = vmatprep.subr.mxu0 0.0
  %84 = vmatpush2.msra.mxu0 0.0
  %85 = vmatprep.subr.mxu0 0.0
  %86 = vmatpush2.msra.mxu0 0.0
  %87 = vmatprep.subr.mxu0 0.0
  %88 = vmatpush2.msra.mxu0 0.0
  %89 = vmatprep.subr.mxu0 0.0
  %90 = vmatpush2.msra.mxu0 0.0
  %91 = vmatprep.subr.mxu0 0.0
  %92 = vmatpush2.msra.mxu0 0.0
  %93 = vmatprep.subr.mxu0 0.0
  %94 = vmatpush2.msra.mxu0 0.0
  %95 = vmatprep.subr.mxu0 0.0
  %96 = vmatpush2.msra.mxu0 0.0
  %97 = vmatprep.subr.mxu0 0.0
  %98 = vmatpush2.msra.mxu0 0.0
  %99 = vmatprep.subr.mxu0 0.0
  %100 = vmatpush2.msra.mxu0 0.0
  %101 = vmatprep.subr.mxu0 0.0
  %102 = vmatpush2.msra.mxu0 0.0
  %103 = vmatprep.subr.mxu0 0.0
  %104 = vmatpush2.msra.mxu0 0.0
  %105 = vmatprep.subr.mxu0 0.0
  %106 = vmatpush2.msra.mxu0 0.0
  %107 = vmatprep.subr.mxu0 0.0
  %108 = vmatpush2.msra.mxu0 0.0
  %109 = vmatprep.subr.mxu0 0.0
  %110 = vmatpush2.msra.mxu0 0.0
  %111 = vmatprep.subr.mxu0 0.0
  %112 = vmatpush2.msra.mxu0 0.0
  %113 = vmatprep.mubr.f32.mxu0 0.0
  %114 = vmatmul.mubr.f32.gmra.mxu0 %v47
  %v115 = vpop.f32.mrf.mxu0
  %v116 = vadd.f32 0.0, %v115
  %v117 = vpop.f32.mrf.mxu0
  %118 = vdwg.mxu0
  %119 = vmatprep.subr.mxu0 0.0
  %120 = vmatpush1.msra.mxu0 0.0
  %121 = vmatprep.subr.mxu0 0.0
  %122 = vmatpush1.msra.mxu0 0.0
  %123 = vmatprep.subr.mxu0 0.0
  %124 = vmatpush1.msra.mxu0 0.0
  %125 = vmatprep.subr.mxu0 0.0
  %126 = vmatpush1.msra.mxu0 0.0
  %127 = vmatprep.subr.mxu0 0.0
  %128 = vmatpush1.msra.mxu0 0.0
  %129 = vmatprep.subr.mxu0 0.0
  %130 = vmatpush1.msra.mxu0 0.0
  %131 = vmatprep.subr.mxu0 0.0
  %132 = vmatpush1.msra.mxu0 0.0
  %133 = vmatprep.subr.mxu0 0.0
  %134 = vmatpush1.msra.mxu0 0.0
  %135 = vmatprep.subr.mxu0 0.0
  %136 = vmatpush1.msra.mxu0 0.0
  %137 = vmatprep.subr.mxu0 0.0
  %138 = vmatpush1.msra.mxu0 0.0
  %139 = vmatprep.subr.mxu0 0.0
  %140 = vmatpush1.msra.mxu0 0.0
  %141 = vmatprep.subr.mxu0 0.0
  %142 = vmatpush1.msra.mxu0 0.0
  %143 = vmatprep.subr.mxu0 0.0
  %144 = vmatpush1.msra.mxu0 %v33
  %145 = vmatprep.subr.mxu0 0.0
  %146 = vmatpush1.msra.mxu0 %v32
  %147 = vmatprep.subr.mxu0 0.0
  %148 = vmatpush1.msra.mxu0 %v31
  %149 = vmatprep.subr.mxu0 0.0
  %150 = vmatpush1.msra.mxu0 %v30
  %151 = vmatprep.subr.mxu0 0.0
  %152 = vmatpush2.msra.mxu0 0.0
  %153 = vmatprep.subr.mxu0 0.0
  %154 = vmatpush2.msra.mxu0 0.0
  %155 = vmatprep.subr.mxu0 0.0
  %156 = vmatpush2.msra.mxu0 0.0
  %157 = vmatprep.subr.mxu0 0.0
  %158 = vmatpush2.msra.mxu0 0.0
  %159 = vmatprep.subr.mxu0 0.0
  %160 = vmatpush2.msra.mxu0 0.0
  %161 = vmatprep.subr.mxu0 0.0
  %162 = vmatpush2.msra.mxu0 0.0
  %163 = vmatprep.subr.mxu0 0.0
  %164 = vmatpush2.msra.mxu0 0.0
  %165 = vmatprep.subr.mxu0 0.0
  %166 = vmatpush2.msra.mxu0 0.0
  %167 = vmatprep.subr.mxu0 0.0
  %168 = vmatpush2.msra.mxu0 0.0
  %169 = vmatprep.subr.mxu0 0.0
  %170 = vmatpush2.msra.mxu0 0.0
  %171 = vmatprep.subr.mxu0 0.0
  %172 = vmatpush2.msra.mxu0 0.0
  %173 = vmatprep.subr.mxu0 0.0
  %174 = vmatpush2.msra.mxu0 0.0
  %175 = vmatprep.subr.mxu0 0.0
  %176 = vmatpush2.msra.mxu0 0.0
  %177 = vmatprep.subr.mxu0 0.0
  %178 = vmatpush2.msra.mxu0 0.0
  %179 = vmatprep.subr.mxu0 0.0
  %180 = vmatpush2.msra.mxu0 0.0
  %181 = vmatprep.subr.mxu0 0.0
  %182 = vmatpush2.msra.mxu0 0.0
  %183 = vmatprep.mubr.f32.mxu0 0.0
  %184 = vmatmul.mubr.f32.gmra.mxu0 %v47
  %v185 = vpop.f32.mrf.mxu0
  %v186 = vadd.f32 0.0, %v185
  %v187 = vpop.f32.mrf.mxu0
  %188 = vdwg.mxu0
  %189 = vmatprep.subr.mxu0 0.0
  %190 = vmatpush1.msra.mxu0 0.0
  %191 = vmatprep.subr.mxu0 0.0
  %192 = vmatpush1.msra.mxu0 0.0
  %193 = vmatprep.subr.mxu0 0.0
  %194 = vmatpush1.msra.mxu0 0.0
  %195 = vmatprep.subr.mxu0 0.0
  %196 = vmatpush1.msra.mxu0 0.0
  %197 = vmatprep.subr.mxu0 0.0
  %198 = vmatpush1.msra.mxu0 0.0
  %199 = vmatprep.subr.mxu0 0.0
  %200 = vmatpush1.msra.mxu0 0.0
  %201 = vmatprep.subr.mxu0 0.0
  %202 = vmatpush1.msra.mxu0 0.0
  %203 = vmatprep.subr.mxu0 0.0
  %204 = vmatpush1.msra.mxu0 0.0
  %205 = vmatprep.subr.mxu0 0.0
  %206 = vmatpush1.msra.mxu0 0.0
  %207 = vmatprep.subr.mxu0 0.0
  %208 = vmatpush1.msra.mxu0 0.0
  %209 = vmatprep.subr.mxu0 0.0
  %210 = vmatpush1.msra.mxu0 0.0
  %211 = vmatprep.subr.mxu0 0.0
  %212 = vmatpush1.msra.mxu0 0.0
  %213 = vmatprep.subr.mxu0 0.0
  %214 = vmatpush1.msra.mxu0 %v37
  %215 = vmatprep.subr.mxu0 0.0
  %216 = vmatpush1.msra.mxu0 %v36
  %217 = vmatprep.subr.mxu0 0.0
  %218 = vmatpush1.msra.mxu0 %v35
  %219 = vmatprep.subr.mxu0 0.0
  %220 = vmatpush1.msra.mxu0 %v34
  %221 = vmatprep.subr.mxu0 0.0
  %222 = vmatpush2.msra.mxu0 0.0
  %223 = vmatprep.subr.mxu0 0.0
  %224 = vmatpush2.msra.mxu0 0.0
  %225 = vmatprep.subr.mxu0 0.0
  %226 = vmatpush2.msra.mxu0 0.0
  %227 = vmatprep.subr.mxu0 0.0
  %228 = vmatpush2.msra.mxu0 0.0
  %229 = vmatprep.subr.mxu0 0.0
  %230 = vmatpush2.msra.mxu0 0.0
  %231 = vmatprep.subr.mxu0 0.0
  %232 = vmatpush2.msra.mxu0 0.0
  %233 = vmatprep.subr.mxu0 0.0
  %234 = vmatpush2.msra.mxu0 0.0
  %235 = vmatprep.subr.mxu0 0.0
  %236 = vmatpush2.msra.mxu0 0.0
  %237 = vmatprep.subr.mxu0 0.0
  %238 = vmatpush2.msra.mxu0 0.0
  %239 = vmatprep.subr.mxu0 0.0
  %240 = vmatpush2.msra.mxu0 0.0
  %241 = vmatprep.subr.mxu0 0.0
  %242 = vmatpush2.msra.mxu0 0.0
  %243 = vmatprep.subr.mxu0 0.0
  %244 = vmatpush2.msra.mxu0 0.0
  %245 = vmatprep.subr.mxu0 0.0
  %246 = vmatpush2.msra.mxu0 0.0
  %247 = vmatprep.subr.mxu0 0.0
  %248 = vmatpush2.msra.mxu0 0.0
  %249 = vmatprep.subr.mxu0 0.0
  %250 = vmatpush2.msra.mxu0 0.0
  %251 = vmatprep.subr.mxu0 0.0
  %252 = vmatpush2.msra.mxu0 0.0
  %253 = vmatprep.mubr.f32.mxu0 0.0
  %254 = vmatmul.mubr.f32.gmra.mxu0 %v47
  %v255 = vpop.f32.mrf.mxu0
  %v256 = vadd.f32 %v43, %v255
  %v257 = vpop.f32.mrf.mxu0
  %258 = vdwg.mxu0
  %v259 = vld [vmem:[%s0] sm:$0xf]
  %v260 = vadd.f32 %v259, %v116
  %v261 = vxor.u32 %v260, 2147483648
  %v262 = vmul.f32 %v261, 1.442695
  %v263 = vpow.pop %v262
  %v264 = vadd.f32 %v263, 1.0
  %v265 = vrcp.pop %v264
  %v266 = vmul.f32 1.0, %v265
  %v267 = vld [vmem:[%s1] sm:$0xf]
  %v268 = vadd.f32 %v267, %v186
  %v269 = vxor.u32 %v268, 2147483648
  %v270 = vmul.f32 %v269, 1.442695
  %v271 = vpow.pop %v270
  %v272 = vadd.f32 %v271, 1.0
  %v273 = vrcp.pop %v272
  %v274 = vmul.f32 1.0, %v273
  %v275 = vld [vmem:[%s2] sm:$0xf]
  %v276 = vmul.f32 %v266, %v256
  %v277 = vadd.f32 %v275, %v276
  %v278 = vtanh.pop %v277
  %v279 = vsub.f32 1.0, %v274
  %v280 = vmul.f32 %v279, %v278
  %v281 = vmul.f32 %v274, 0.0
  %v282 = vadd.f32 %v280, %v281
  %vm283 = vcmask 257024
  %284 = vst.msk [vmem:[%s7] sm:$0xf] %vm283, %v282
  %v286 = vsel %vm45, %v282, 0
  %288 = vmatprep.subr.mxu0 0.0
  %289 = vmatpush1.msra.mxu0 0.0
  %290 = vmatprep.subr.mxu0 0.0
  %291 = vmatpush1.msra.mxu0 0.0
  %292 = vmatprep.subr.mxu0 0.0
  %293 = vmatpush1.msra.mxu0 0.0
  %294 = vmatprep.subr.mxu0 0.0
  %295 = vmatpush1.msra.mxu0 0.0
  %296 = vmatprep.subr.mxu0 0.0
  %297 = vmatpush1.msra.mxu0 0.0
  %298 = vmatprep.subr.mxu0 0.0
  %299 = vmatpush1.msra.mxu0 0.0
  %300 = vmatprep.subr.mxu0 0.0
  %301 = vmatpush1.msra.mxu0 0.0
  %302 = vmatprep.subr.mxu0 0.0
  %303 = vmatpush1.msra.mxu0 0.0
  %304 = vmatprep.subr.mxu0 0.0
  %305 = vmatpush1.msra.mxu0 0.0
  %306 = vmatprep.subr.mxu0 0.0
  %307 = vmatpush1.msra.mxu0 0.0
  %308 = vmatprep.subr.mxu0 0.0
  %309 = vmatpush1.msra.mxu0 0.0
  %310 = vmatprep.subr.mxu0 0.0
  %311 = vmatpush1.msra.mxu0 0.0
  %312 = vmatprep.subr.mxu0 0.0
  %313 = vmatpush1.msra.mxu0 %v29
  %314 = vmatprep.subr.mxu0 0.0
  %315 = vmatpush1.msra.mxu0 %v28
  %316 = vmatprep.subr.mxu0 0.0
  %317 = vmatpush1.msra.mxu0 %v27
  %318 = vmatprep.subr.mxu0 0.0
  %319 = vmatpush1.msra.mxu0 %v26
  %320 = vmatprep.subr.mxu0 0.0
  %321 = vmatpush2.msra.mxu0 0.0
  %322 = vmatprep.subr.mxu0 0.0
  %323 = vmatpush2.msra.mxu0 0.0
  %324 = vmatprep.subr.mxu0 0.0
  %325 = vmatpush2.msra.mxu0 0.0
  %326 = vmatprep.subr.mxu0 0.0
  %327 = vmatpush2.msra.mxu0 0.0
  %328 = vmatprep.subr.mxu0 0.0
  %329 = vmatpush2.msra.mxu0 0.0
  %330 = vmatprep.subr.mxu0 0.0
  %331 = vmatpush2.msra.mxu0 0.0
  %332 = vmatprep.subr.mxu0 0.0
  %333 = vmatpush2.msra.mxu0 0.0
  %334 = vmatprep.subr.mxu0 0.0
  %335 = vmatpush2.msra.mxu0 0.0
  %336 = vmatprep.subr.mxu0 0.0
  %337 = vmatpush2.msra.mxu0 0.0
  %338 = vmatprep.subr.mxu0 0.0
  %339 = vmatpush2.msra.mxu0 0.0
  %340 = vmatprep.subr.mxu0 0.0
  %341 = vmatpush2.msra.mxu0 0.0
  %342 = vmatprep.subr.mxu0 0.0
  %343 = vmatpush2.msra.mxu0 0.0
  %344 = vmatprep.subr.mxu0 0.0
  %345 = vmatpush2.msra.mxu0 0.0
  %346 = vmatprep.subr.mxu0 0.0
  %347 = vmatpush2.msra.mxu0 0.0
  %348 = vmatprep.subr.mxu0 0.0
  %349 = vmatpush2.msra.mxu0 0.0
  %350 = vmatprep.subr.mxu0 0.0
  %351 = vmatpush2.msra.mxu0 0.0
  %352 = vmatprep.mubr.f32.mxu0 0.0
  %353 = vmatmul.mubr.f32.gmra.mxu0 %v286
  %v354 = vpop.f32.mrf.mxu0
  %v355 = vadd.f32 0.0, %v354
  %v356 = vpop.f32.mrf.mxu0
  %357 = vdwg.mxu0
  %358 = vmatprep.subr.mxu0 0.0
  %359 = vmatpush1.msra.mxu0 0.0
  %360 = vmatprep.subr.mxu0 0.0
  %361 = vmatpush1.msra.mxu0 0.0
  %362 = vmatprep.subr.mxu0 0.0
  %363 = vmatpush1.msra.mxu0 0.0
  %364 = vmatprep.subr.mxu0 0.0
  %365 = vmatpush1.msra.mxu0 0.0
  %366 = vmatprep.subr.mxu0 0.0
  %367 = vmatpush1.msra.mxu0 0.0
  %368 = vmatprep.subr.mxu0 0.0
  %369 = vmatpush1.msra.mxu0 0.0
  %370 = vmatprep.subr.mxu0 0.0
  %371 = vmatpush1.msra.mxu0 0.0
  %372 = vmatprep.subr.mxu0 0.0
  %373 = vmatpush1.msra.mxu0 0.0
  %374 = vmatprep.subr.mxu0 0.0
  %375 = vmatpush1.msra.mxu0 0.0
  %376 = vmatprep.subr.mxu0 0.0
  %377 = vmatpush1.msra.mxu0 0.0
  %378 = vmatprep.subr.mxu0 0.0
  %379 = vmatpush1.msra.mxu0 0.0
  %380 = vmatprep.subr.mxu0 0.0
  %381 = vmatpush1.msra.mxu0 0.0
  %382 = vmatprep.subr.mxu0 0.0
  %383 = vmatpush1.msra.mxu0 %v33
  %384 = vmatprep.subr.mxu0 0.0
  %385 = vmatpush1.msra.mxu0 %v32
  %386 = vmatprep.subr.mxu0 0.0
  %387 = vmatpush1.msra.mxu0 %v31
  %388 = vmatprep.subr.mxu0 0.0
  %389 = vmatpush1.msra.mxu0 %v30
  %390 = vmatprep.subr.mxu0 0.0
  %391 = vmatpush2.msra.mxu0 0.0
  %392 = vmatprep.subr.mxu0 0.0
  %393 = vmatpush2.msra.mxu0 0.0
  %394 = vmatprep.subr.mxu0 0.0
  %395 = vmatpush2.msra.mxu0 0.0
  %396 = vmatprep.subr.mxu0 0.0
  %397 = vmatpush2.msra.mxu0 0.0
  %398 = vmatprep.subr.mxu0 0.0
  %399 = vmatpush2.msra.mxu0 0.0
  %400 = vmatprep.subr.mxu0 0.0
  %401 = vmatpush2.msra.mxu0 0.0
  %402 = vmatprep.subr.mxu0 0.0
  %403 = vmatpush2.msra.mxu0 0.0
  %404 = vmatprep.subr.mxu0 0.0
  %405 = vmatpush2.msra.mxu0 0.0
  %406 = vmatprep.subr.mxu0 0.0
  %407 = vmatpush2.msra.mxu0 0.0
  %408 = vmatprep.subr.mxu0 0.0
  %409 = vmatpush2.msra.mxu0 0.0
  %410 = vmatprep.subr.mxu0 0.0
  %411 = vmatpush2.msra.mxu0 0.0
  %412 = vmatprep.subr.mxu0 0.0
  %413 = vmatpush2.msra.mxu0 0.0
  %414 = vmatprep.subr.mxu0 0.0
  %415 = vmatpush2.msra.mxu0 0.0
  %416 = vmatprep.subr.mxu0 0.0
  %417 = vmatpush2.msra.mxu0 0.0
  %418 = vmatprep.subr.mxu0 0.0
  %419 = vmatpush2.msra.mxu0 0.0
  %420 = vmatprep.subr.mxu0 0.0
  %421 = vmatpush2.msra.mxu0 0.0
  %422 = vmatprep.mubr.f32.mxu0 0.0
  %423 = vmatmul.mubr.f32.gmra.mxu0 %v286
  %v424 = vpop.f32.mrf.mxu0
  %v425 = vadd.f32 0.0, %v424
  %v426 = vpop.f32.mrf.mxu0
  %427 = vdwg.mxu0
  %428 = vmatprep.subr.mxu0 0.0
  %429 = vmatpush1.msra.mxu0 0.0
  %430 = vmatprep.subr.mxu0 0.0
  %431 = vmatpush1.msra.mxu0 0.0
  %432 = vmatprep.subr.mxu0 0.0
  %433 = vmatpush1.msra.mxu0 0.0
  %434 = vmatprep.subr.mxu0 0.0
  %435 = vmatpush1.msra.mxu0 0.0
  %436 = vmatprep.subr.mxu0 0.0
  %437 = vmatpush1.msra.mxu0 0.0
  %438 = vmatprep.subr.mxu0 0.0
  %439 = vmatpush1.msra.mxu0 0.0
  %440 = vmatprep.subr.mxu0 0.0
  %441 = vmatpush1.msra.mxu0 0.0
  %442 = vmatprep.subr.mxu0 0.0
  %443 = vmatpush1.msra.mxu0 0.0
  %444 = vmatprep.subr.mxu0 0.0
  %445 = vmatpush1.msra.mxu0 0.0
  %446 = vmatprep.subr.mxu0 0.0
  %447 = vmatpush1.msra.mxu0 0.0
  %448 = vmatprep.subr.mxu0 0.0
  %449 = vmatpush1.msra.mxu0 0.0
  %450 = vmatprep.subr.mxu0 0.0
  %451 = vmatpush1.msra.mxu0 0.0
  %452 = vmatprep.subr.mxu0 0.0
  %453 = vmatpush1.msra.mxu0 %v37
  %454 = vmatprep.subr.mxu0 0.0
  %455 = vmatpush1.msra.mxu0 %v36
  %456 = vmatprep.subr.mxu0 0.0
  %457 = vmatpush1.msra.mxu0 %v35
  %458 = vmatprep.subr.mxu0 0.0
  %459 = vmatpush1.msra.mxu0 %v34
  %460 = vmatprep.subr.mxu0 0.0
  %461 = vmatpush2.msra.mxu0 0.0
  %462 = vmatprep.subr.mxu0 0.0
  %463 = vmatpush2.msra.mxu0 0.0
  %464 = vmatprep.subr.mxu0 0.0
  %465 = vmatpush2.msra.mxu0 0.0
  %466 = vmatprep.subr.mxu0 0.0
  %467 = vmatpush2.msra.mxu0 0.0
  %468 = vmatprep.subr.mxu0 0.0
  %469 = vmatpush2.msra.mxu0 0.0
  %470 = vmatprep.subr.mxu0 0.0
  %471 = vmatpush2.msra.mxu0 0.0
  %472 = vmatprep.subr.mxu0 0.0
  %473 = vmatpush2.msra.mxu0 0.0
  %474 = vmatprep.subr.mxu0 0.0
  %475 = vmatpush2.msra.mxu0 0.0
  %476 = vmatprep.subr.mxu0 0.0
  %477 = vmatpush2.msra.mxu0 0.0
  %478 = vmatprep.subr.mxu0 0.0
  %479 = vmatpush2.msra.mxu0 0.0
  %480 = vmatprep.subr.mxu0 0.0
  %481 = vmatpush2.msra.mxu0 0.0
  %482 = vmatprep.subr.mxu0 0.0
  %483 = vmatpush2.msra.mxu0 0.0
  %484 = vmatprep.subr.mxu0 0.0
  %485 = vmatpush2.msra.mxu0 0.0
  %486 = vmatprep.subr.mxu0 0.0
  %487 = vmatpush2.msra.mxu0 0.0
  %488 = vmatprep.subr.mxu0 0.0
  %489 = vmatpush2.msra.mxu0 0.0
  %490 = vmatprep.subr.mxu0 0.0
  %491 = vmatpush2.msra.mxu0 0.0
  %492 = vmatprep.mubr.f32.mxu0 0.0
  %493 = vmatmul.mubr.f32.gmra.mxu0 %v286
  %v494 = vpop.f32.mrf.mxu0
  %v495 = vadd.f32 %v43, %v494
  %v496 = vpop.f32.mrf.mxu0
  %497 = vdwg.mxu0
  %s498 = scalar_lea.vmem %s0, 4
  %v499 = vld [vmem:[%s498] sm:$0xf]
  %v500 = vadd.f32 %v499, %v355
  %v501 = vxor.u32 %v500, 2147483648
  %v502 = vmul.f32 %v501, 1.442695
  %v503 = vpow.pop %v502
  %v504 = vadd.f32 %v503, 1.0
  %v505 = vrcp.pop %v504
  %v506 = vmul.f32 1.0, %v505
  %s507 = scalar_lea.vmem %s1, 4
  %v508 = vld [vmem:[%s507] sm:$0xf]
  %v509 = vadd.f32 %v508, %v425
  %v510 = vxor.u32 %v509, 2147483648
  %v511 = vmul.f32 %v510, 1.442695
  %v512 = vpow.pop %v511
  %v513 = vadd.f32 %v512, 1.0
  %v514 = vrcp.pop %v513
  %v515 = vmul.f32 1.0, %v514
  %s516 = scalar_lea.vmem %s2, 4
  %v517 = vld [vmem:[%s516] sm:$0xf]
  %v518 = vmul.f32 %v506, %v495
  %v519 = vadd.f32 %v517, %v518
  %v520 = vtanh.pop %v519
  %v521 = vsub.f32 1.0, %v515
  %v522 = vmul.f32 %v521, %v520
  %v523 = vmul.f32 %v515, %v282
  %v524 = vadd.f32 %v522, %v523
  %s525 = scalar_lea.vmem %s7, 4
  %526 = vst.msk [vmem:[%s525] sm:$0xf] %vm283, %v524
  %v528 = vsel %vm45, %v524, 0
  %530 = vmatprep.subr.mxu0 0.0
  %531 = vmatpush1.msra.mxu0 0.0
  %532 = vmatprep.subr.mxu0 0.0
  %533 = vmatpush1.msra.mxu0 0.0
  %534 = vmatprep.subr.mxu0 0.0
  %535 = vmatpush1.msra.mxu0 0.0
  %536 = vmatprep.subr.mxu0 0.0
  %537 = vmatpush1.msra.mxu0 0.0
  %538 = vmatprep.subr.mxu0 0.0
  %539 = vmatpush1.msra.mxu0 0.0
  %540 = vmatprep.subr.mxu0 0.0
  %541 = vmatpush1.msra.mxu0 0.0
  %542 = vmatprep.subr.mxu0 0.0
  %543 = vmatpush1.msra.mxu0 0.0
  %544 = vmatprep.subr.mxu0 0.0
  %545 = vmatpush1.msra.mxu0 0.0
  %546 = vmatprep.subr.mxu0 0.0
  %547 = vmatpush1.msra.mxu0 0.0
  %548 = vmatprep.subr.mxu0 0.0
  %549 = vmatpush1.msra.mxu0 0.0
  %550 = vmatprep.subr.mxu0 0.0
  %551 = vmatpush1.msra.mxu0 0.0
  %552 = vmatprep.subr.mxu0 0.0
  %553 = vmatpush1.msra.mxu0 0.0
  %554 = vmatprep.subr.mxu0 0.0
  %555 = vmatpush1.msra.mxu0 %v29
  %556 = vmatprep.subr.mxu0 0.0
  %557 = vmatpush1.msra.mxu0 %v28
  %558 = vmatprep.subr.mxu0 0.0
  %559 = vmatpush1.msra.mxu0 %v27
  %560 = vmatprep.subr.mxu0 0.0
  %561 = vmatpush1.msra.mxu0 %v26
  %562 = vmatprep.subr.mxu0 0.0
  %563 = vmatpush2.msra.mxu0 0.0
  %564 = vmatprep.subr.mxu0 0.0
  %565 = vmatpush2.msra.mxu0 0.0
  %566 = vmatprep.subr.mxu0 0.0
  %567 = vmatpush2.msra.mxu0 0.0
  %568 = vmatprep.subr.mxu0 0.0
  %569 = vmatpush2.msra.mxu0 0.0
  %570 = vmatprep.subr.mxu0 0.0
  %571 = vmatpush2.msra.mxu0 0.0
  %572 = vmatprep.subr.mxu0 0.0
  %573 = vmatpush2.msra.mxu0 0.0
  %574 = vmatprep.subr.mxu0 0.0
  %575 = vmatpush2.msra.mxu0 0.0
  %576 = vmatprep.subr.mxu0 0.0
  %577 = vmatpush2.msra.mxu0 0.0
  %578 = vmatprep.subr.mxu0 0.0
  %579 = vmatpush2.msra.mxu0 0.0
  %580 = vmatprep.subr.mxu0 0.0
  %581 = vmatpush2.msra.mxu0 0.0
  %582 = vmatprep.subr.mxu0 0.0
  %583 = vmatpush2.msra.mxu0 0.0
  %584 = vmatprep.subr.mxu0 0.0
  %585 = vmatpush2.msra.mxu0 0.0
  %586 = vmatprep.subr.mxu0 0.0
  %587 = vmatpush2.msra.mxu0 0.0
  %588 = vmatprep.subr.mxu0 0.0
  %589 = vmatpush2.msra.mxu0 0.0
  %590 = vmatprep.subr.mxu0 0.0
  %591 = vmatpush2.msra.mxu0 0.0
  %592 = vmatprep.subr.mxu0 0.0
  %593 = vmatpush2.msra.mxu0 0.0
  %594 = vmatprep.mubr.f32.mxu0 0.0
  %595 = vmatmul.mubr.f32.gmra.mxu0 %v528
  %v596 = vpop.f32.mrf.mxu0
  %v597 = vadd.f32 0.0, %v596
  %v598 = vpop.f32.mrf.mxu0
  %599 = vdwg.mxu0
  %600 = vmatprep.subr.mxu0 0.0
  %601 = vmatpush1.msra.mxu0 0.0
  %602 = vmatprep.subr.mxu0 0.0
  %603 = vmatpush1.msra.mxu0 0.0
  %604 = vmatprep.subr.mxu0 0.0
  %605 = vmatpush1.msra.mxu0 0.0
  %606 = vmatprep.subr.mxu0 0.0
  %607 = vmatpush1.msra.mxu0 0.0
  %608 = vmatprep.subr.mxu0 0.0
  %609 = vmatpush1.msra.mxu0 0.0
  %610 = vmatprep.subr.mxu0 0.0
  %611 = vmatpush1.msra.mxu0 0.0
  %612 = vmatprep.subr.mxu0 0.0
  %613 = vmatpush1.msra.mxu0 0.0
  %614 = vmatprep.subr.mxu0 0.0
  %615 = vmatpush1.msra.mxu0 0.0
  %616 = vmatprep.subr.mxu0 0.0
  %617 = vmatpush1.msra.mxu0 0.0
  %618 = vmatprep.subr.mxu0 0.0
  %619 = vmatpush1.msra.mxu0 0.0
  %620 = vmatprep.subr.mxu0 0.0
  %621 = vmatpush1.msra.mxu0 0.0
  %622 = vmatprep.subr.mxu0 0.0
  %623 = vmatpush1.msra.mxu0 0.0
  %624 = vmatprep.subr.mxu0 0.0
  %625 = vmatpush1.msra.mxu0 %v33
  %626 = vmatprep.subr.mxu0 0.0
  %627 = vmatpush1.msra.mxu0 %v32
  %628 = vmatprep.subr.mxu0 0.0
  %629 = vmatpush1.msra.mxu0 %v31
  %630 = vmatprep.subr.mxu0 0.0
  %631 = vmatpush1.msra.mxu0 %v30
  %632 = vmatprep.subr.mxu0 0.0
  %633 = vmatpush2.msra.mxu0 0.0
  %634 = vmatprep.subr.mxu0 0.0
  %635 = vmatpush2.msra.mxu0 0.0
  %636 = vmatprep.subr.mxu0 0.0
  %637 = vmatpush2.msra.mxu0 0.0
  %638 = vmatprep.subr.mxu0 0.0
  %639 = vmatpush2.msra.mxu0 0.0
  %640 = vmatprep.subr.mxu0 0.0
  %641 = vmatpush2.msra.mxu0 0.0
  %642 = vmatprep.subr.mxu0 0.0
  %643 = vmatpush2.msra.mxu0 0.0
  %644 = vmatprep.subr.mxu0 0.0
  %645 = vmatpush2.msra.mxu0 0.0
  %646 = vmatprep.subr.mxu0 0.0
  %647 = vmatpush2.msra.mxu0 0.0
  %648 = vmatprep.subr.mxu0 0.0
  %649 = vmatpush2.msra.mxu0 0.0
  %650 = vmatprep.subr.mxu0 0.0
  %651 = vmatpush2.msra.mxu0 0.0
  %652 = vmatprep.subr.mxu0 0.0
  %653 = vmatpush2.msra.mxu0 0.0
  %654 = vmatprep.subr.mxu0 0.0
  %655 = vmatpush2.msra.mxu0 0.0
  %656 = vmatprep.subr.mxu0 0.0
  %657 = vmatpush2.msra.mxu0 0.0
  %658 = vmatprep.subr.mxu0 0.0
  %659 = vmatpush2.msra.mxu0 0.0
  %660 = vmatprep.subr.mxu0 0.0
  %661 = vmatpush2.msra.mxu0 0.0
  %662 = vmatprep.subr.mxu0 0.0
  %663 = vmatpush2.msra.mxu0 0.0
  %664 = vmatprep.mubr.f32.mxu0 0.0
  %665 = vmatmul.mubr.f32.gmra.mxu0 %v528
  %v666 = vpop.f32.mrf.mxu0
  %v667 = vadd.f32 0.0, %v666
  %v668 = vpop.f32.mrf.mxu0
  %669 = vdwg.mxu0
  %670 = vmatprep.subr.mxu0 0.0
  %671 = vmatpush1.msra.mxu0 0.0
  %672 = vmatprep.subr.mxu0 0.0
  %673 = vmatpush1.msra.mxu0 0.0
  %674 = vmatprep.subr.mxu0 0.0
  %675 = vmatpush1.msra.mxu0 0.0
  %676 = vmatprep.subr.mxu0 0.0
  %677 = vmatpush1.msra.mxu0 0.0
  %678 = vmatprep.subr.mxu0 0.0
  %679 = vmatpush1.msra.mxu0 0.0
  %680 = vmatprep.subr.mxu0 0.0
  %681 = vmatpush1.msra.mxu0 0.0
  %682 = vmatprep.subr.mxu0 0.0
  %683 = vmatpush1.msra.mxu0 0.0
  %684 = vmatprep.subr.mxu0 0.0
  %685 = vmatpush1.msra.mxu0 0.0
  %686 = vmatprep.subr.mxu0 0.0
  %687 = vmatpush1.msra.mxu0 0.0
  %688 = vmatprep.subr.mxu0 0.0
  %689 = vmatpush1.msra.mxu0 0.0
  %690 = vmatprep.subr.mxu0 0.0
  %691 = vmatpush1.msra.mxu0 0.0
  %692 = vmatprep.subr.mxu0 0.0
  %693 = vmatpush1.msra.mxu0 0.0
  %694 = vmatprep.subr.mxu0 0.0
  %695 = vmatpush1.msra.mxu0 %v37
  %696 = vmatprep.subr.mxu0 0.0
  %697 = vmatpush1.msra.mxu0 %v36
  %698 = vmatprep.subr.mxu0 0.0
  %699 = vmatpush1.msra.mxu0 %v35
  %700 = vmatprep.subr.mxu0 0.0
  %701 = vmatpush1.msra.mxu0 %v34
  %702 = vmatprep.subr.mxu0 0.0
  %703 = vmatpush2.msra.mxu0 0.0
  %704 = vmatprep.subr.mxu0 0.0
  %705 = vmatpush2.msra.mxu0 0.0
  %706 = vmatprep.subr.mxu0 0.0
  %707 = vmatpush2.msra.mxu0 0.0
  %708 = vmatprep.subr.mxu0 0.0
  %709 = vmatpush2.msra.mxu0 0.0
  %710 = vmatprep.subr.mxu0 0.0
  %711 = vmatpush2.msra.mxu0 0.0
  %712 = vmatprep.subr.mxu0 0.0
  %713 = vmatpush2.msra.mxu0 0.0
  %714 = vmatprep.subr.mxu0 0.0
  %715 = vmatpush2.msra.mxu0 0.0
  %716 = vmatprep.subr.mxu0 0.0
  %717 = vmatpush2.msra.mxu0 0.0
  %718 = vmatprep.subr.mxu0 0.0
  %719 = vmatpush2.msra.mxu0 0.0
  %720 = vmatprep.subr.mxu0 0.0
  %721 = vmatpush2.msra.mxu0 0.0
  %722 = vmatprep.subr.mxu0 0.0
  %723 = vmatpush2.msra.mxu0 0.0
  %724 = vmatprep.subr.mxu0 0.0
  %725 = vmatpush2.msra.mxu0 0.0
  %726 = vmatprep.subr.mxu0 0.0
  %727 = vmatpush2.msra.mxu0 0.0
  %728 = vmatprep.subr.mxu0 0.0
  %729 = vmatpush2.msra.mxu0 0.0
  %730 = vmatprep.subr.mxu0 0.0
  %731 = vmatpush2.msra.mxu0 0.0
  %732 = vmatprep.subr.mxu0 0.0
  %733 = vmatpush2.msra.mxu0 0.0
  %734 = vmatprep.mubr.f32.mxu0 0.0
  %735 = vmatmul.mubr.f32.gmra.mxu0 %v528
  %v736 = vpop.f32.mrf.mxu0
  %v737 = vadd.f32 %v43, %v736
  %v738 = vpop.f32.mrf.mxu0
  %739 = vdwg.mxu0
  %s740 = scalar_lea.vmem %s0, 8
  %v741 = vld [vmem:[%s740] sm:$0xf]
  %v742 = vadd.f32 %v741, %v597
  %v743 = vxor.u32 %v742, 2147483648
  %v744 = vmul.f32 %v743, 1.442695
  %v745 = vpow.pop %v744
  %v746 = vadd.f32 %v745, 1.0
  %v747 = vrcp.pop %v746
  %v748 = vmul.f32 1.0, %v747
  %s749 = scalar_lea.vmem %s1, 8
  %v750 = vld [vmem:[%s749] sm:$0xf]
  %v751 = vadd.f32 %v750, %v667
  %v752 = vxor.u32 %v751, 2147483648
  %v753 = vmul.f32 %v752, 1.442695
  %v754 = vpow.pop %v753
  %v755 = vadd.f32 %v754, 1.0
  %v756 = vrcp.pop %v755
  %v757 = vmul.f32 1.0, %v756
  %s758 = scalar_lea.vmem %s2, 8
  %v759 = vld [vmem:[%s758] sm:$0xf]
  %v760 = vmul.f32 %v748, %v737
  %v761 = vadd.f32 %v759, %v760
  %v762 = vtanh.pop %v761
  %v763 = vsub.f32 1.0, %v757
  %v764 = vmul.f32 %v763, %v762
  %v765 = vmul.f32 %v757, %v524
  %v766 = vadd.f32 %v764, %v765
  %s767 = scalar_lea.vmem %s7, 8
  %768 = vst.msk [vmem:[%s767] sm:$0xf] %vm283, %v766
  %v770 = vsel %vm45, %v766, 0
  %772 = vmatprep.subr.mxu0 0.0
  %773 = vmatpush1.msra.mxu0 0.0
  %774 = vmatprep.subr.mxu0 0.0
  %775 = vmatpush1.msra.mxu0 0.0
  %776 = vmatprep.subr.mxu0 0.0
  %777 = vmatpush1.msra.mxu0 0.0
  %778 = vmatprep.subr.mxu0 0.0
  %779 = vmatpush1.msra.mxu0 0.0
  %780 = vmatprep.subr.mxu0 0.0
  %781 = vmatpush1.msra.mxu0 0.0
  %782 = vmatprep.subr.mxu0 0.0
  %783 = vmatpush1.msra.mxu0 0.0
  %784 = vmatprep.subr.mxu0 0.0
  %785 = vmatpush1.msra.mxu0 0.0
  %786 = vmatprep.subr.mxu0 0.0
  %787 = vmatpush1.msra.mxu0 0.0
  %788 = vmatprep.subr.mxu0 0.0
  %789 = vmatpush1.msra.mxu0 0.0
  %790 = vmatprep.subr.mxu0 0.0
  %791 = vmatpush1.msra.mxu0 0.0
  %792 = vmatprep.subr.mxu0 0.0
  %793 = vmatpush1.msra.mxu0 0.0
  %794 = vmatprep.subr.mxu0 0.0
  %795 = vmatpush1.msra.mxu0 0.0
  %796 = vmatprep.subr.mxu0 0.0
  %797 = vmatpush1.msra.mxu0 %v29
  %798 = vmatprep.subr.mxu0 0.0
  %799 = vmatpush1.msra.mxu0 %v28
  %800 = vmatprep.subr.mxu0 0.0
  %801 = vmatpush1.msra.mxu0 %v27
  %802 = vmatprep.subr.mxu0 0.0
  %803 = vmatpush1.msra.mxu0 %v26
  %804 = vmatprep.subr.mxu0 0.0
  %805 = vmatpush2.msra.mxu0 0.0
  %806 = vmatprep.subr.mxu0 0.0
  %807 = vmatpush2.msra.mxu0 0.0
  %808 = vmatprep.subr.mxu0 0.0
  %809 = vmatpush2.msra.mxu0 0.0
  %810 = vmatprep.subr.mxu0 0.0
  %811 = vmatpush2.msra.mxu0 0.0
  %812 = vmatprep.subr.mxu0 0.0
  %813 = vmatpush2.msra.mxu0 0.0
  %814 = vmatprep.subr.mxu0 0.0
  %815 = vmatpush2.msra.mxu0 0.0
  %816 = vmatprep.subr.mxu0 0.0
  %817 = vmatpush2.msra.mxu0 0.0
  %818 = vmatprep.subr.mxu0 0.0
  %819 = vmatpush2.msra.mxu0 0.0
  %820 = vmatprep.subr.mxu0 0.0
  %821 = vmatpush2.msra.mxu0 0.0
  %822 = vmatprep.subr.mxu0 0.0
  %823 = vmatpush2.msra.mxu0 0.0
  %824 = vmatprep.subr.mxu0 0.0
  %825 = vmatpush2.msra.mxu0 0.0
  %826 = vmatprep.subr.mxu0 0.0
  %827 = vmatpush2.msra.mxu0 0.0
  %828 = vmatprep.subr.mxu0 0.0
  %829 = vmatpush2.msra.mxu0 0.0
  %830 = vmatprep.subr.mxu0 0.0
  %831 = vmatpush2.msra.mxu0 0.0
  %832 = vmatprep.subr.mxu0 0.0
  %833 = vmatpush2.msra.mxu0 0.0
  %834 = vmatprep.subr.mxu0 0.0
  %835 = vmatpush2.msra.mxu0 0.0
  %836 = vmatprep.mubr.f32.mxu0 0.0
  %837 = vmatmul.mubr.f32.gmra.mxu0 %v770
  %v838 = vpop.f32.mrf.mxu0
  %v839 = vadd.f32 0.0, %v838
  %v840 = vpop.f32.mrf.mxu0
  %841 = vdwg.mxu0
  %842 = vmatprep.subr.mxu0 0.0
  %843 = vmatpush1.msra.mxu0 0.0
  %844 = vmatprep.subr.mxu0 0.0
  %845 = vmatpush1.msra.mxu0 0.0
  %846 = vmatprep.subr.mxu0 0.0
  %847 = vmatpush1.msra.mxu0 0.0
  %848 = vmatprep.subr.mxu0 0.0
  %849 = vmatpush1.msra.mxu0 0.0
  %850 = vmatprep.subr.mxu0 0.0
  %851 = vmatpush1.msra.mxu0 0.0
  %852 = vmatprep.subr.mxu0 0.0
  %853 = vmatpush1.msra.mxu0 0.0
  %854 = vmatprep.subr.mxu0 0.0
  %855 = vmatpush1.msra.mxu0 0.0
  %856 = vmatprep.subr.mxu0 0.0
  %857 = vmatpush1.msra.mxu0 0.0
  %858 = vmatprep.subr.mxu0 0.0
  %859 = vmatpush1.msra.mxu0 0.0
  %860 = vmatprep.subr.mxu0 0.0
  %861 = vmatpush1.msra.mxu0 0.0
  %862 = vmatprep.subr.mxu0 0.0
  %863 = vmatpush1.msra.mxu0 0.0
  %864 = vmatprep.subr.mxu0 0.0
  %865 = vmatpush1.msra.mxu0 0.0
  %866 = vmatprep.subr.mxu0 0.0
  %867 = vmatpush1.msra.mxu0 %v33
  %868 = vmatprep.subr.mxu0 0.0
  %869 = vmatpush1.msra.mxu0 %v32
  %870 = vmatprep.subr.mxu0 0.0
  %871 = vmatpush1.msra.mxu0 %v31
  %872 = vmatprep.subr.mxu0 0.0
  %873 = vmatpush1.msra.mxu0 %v30
  %874 = vmatprep.subr.mxu0 0.0
  %875 = vmatpush2.msra.mxu0 0.0
  %876 = vmatprep.subr.mxu0 0.0
  %877 = vmatpush2.msra.mxu0 0.0
  %878 = vmatprep.subr.mxu0 0.0
  %879 = vmatpush2.msra.mxu0 0.0
  %880 = vmatprep.subr.mxu0 0.0
  %881 = vmatpush2.msra.mxu0 0.0
  %882 = vmatprep.subr.mxu0 0.0
  %883 = vmatpush2.msra.mxu0 0.0
  %884 = vmatprep.subr.mxu0 0.0
  %885 = vmatpush2.msra.mxu0 0.0
  %886 = vmatprep.subr.mxu0 0.0
  %887 = vmatpush2.msra.mxu0 0.0
  %888 = vmatprep.subr.mxu0 0.0
  %889 = vmatpush2.msra.mxu0 0.0
  %890 = vmatprep.subr.mxu0 0.0
  %891 = vmatpush2.msra.mxu0 0.0
  %892 = vmatprep.subr.mxu0 0.0
  %893 = vmatpush2.msra.mxu0 0.0
  %894 = vmatprep.subr.mxu0 0.0
  %895 = vmatpush2.msra.mxu0 0.0
  %896 = vmatprep.subr.mxu0 0.0
  %897 = vmatpush2.msra.mxu0 0.0
  %898 = vmatprep.subr.mxu0 0.0
  %899 = vmatpush2.msra.mxu0 0.0
  %900 = vmatprep.subr.mxu0 0.0
  %901 = vmatpush2.msra.mxu0 0.0
  %902 = vmatprep.subr.mxu0 0.0
  %903 = vmatpush2.msra.mxu0 0.0
  %904 = vmatprep.subr.mxu0 0.0
  %905 = vmatpush2.msra.mxu0 0.0
  %906 = vmatprep.mubr.f32.mxu0 0.0
  %907 = vmatmul.mubr.f32.gmra.mxu0 %v770
  %v908 = vpop.f32.mrf.mxu0
  %v909 = vadd.f32 0.0, %v908
  %v910 = vpop.f32.mrf.mxu0
  %911 = vdwg.mxu0
  %912 = vmatprep.subr.mxu0 0.0
  %913 = vmatpush1.msra.mxu0 0.0
  %914 = vmatprep.subr.mxu0 0.0
  %915 = vmatpush1.msra.mxu0 0.0
  %916 = vmatprep.subr.mxu0 0.0
  %917 = vmatpush1.msra.mxu0 0.0
  %918 = vmatprep.subr.mxu0 0.0
  %919 = vmatpush1.msra.mxu0 0.0
  %920 = vmatprep.subr.mxu0 0.0
  %921 = vmatpush1.msra.mxu0 0.0
  %922 = vmatprep.subr.mxu0 0.0
  %923 = vmatpush1.msra.mxu0 0.0
  %924 = vmatprep.subr.mxu0 0.0
  %925 = vmatpush1.msra.mxu0 0.0
  %926 = vmatprep.subr.mxu0 0.0
  %927 = vmatpush1.msra.mxu0 0.0
  %928 = vmatprep.subr.mxu0 0.0
  %929 = vmatpush1.msra.mxu0 0.0
  %930 = vmatprep.subr.mxu0 0.0
  %931 = vmatpush1.msra.mxu0 0.0
  %932 = vmatprep.subr.mxu0 0.0
  %933 = vmatpush1.msra.mxu0 0.0
  %934 = vmatprep.subr.mxu0 0.0
  %935 = vmatpush1.msra.mxu0 0.0
  %936 = vmatprep.subr.mxu0 0.0
  %937 = vmatpush1.msra.mxu0 %v37
  %938 = vmatprep.subr.mxu0 0.0
  %939 = vmatpush1.msra.mxu0 %v36
  %940 = vmatprep.subr.mxu0 0.0
  %941 = vmatpush1.msra.mxu0 %v35
  %942 = vmatprep.subr.mxu0 0.0
  %943 = vmatpush1.msra.mxu0 %v34
  %944 = vmatprep.subr.mxu0 0.0
  %945 = vmatpush2.msra.mxu0 0.0
  %946 = vmatprep.subr.mxu0 0.0
  %947 = vmatpush2.msra.mxu0 0.0
  %948 = vmatprep.subr.mxu0 0.0
  %949 = vmatpush2.msra.mxu0 0.0
  %950 = vmatprep.subr.mxu0 0.0
  %951 = vmatpush2.msra.mxu0 0.0
  %952 = vmatprep.subr.mxu0 0.0
  %953 = vmatpush2.msra.mxu0 0.0
  %954 = vmatprep.subr.mxu0 0.0
  %955 = vmatpush2.msra.mxu0 0.0
  %956 = vmatprep.subr.mxu0 0.0
  %957 = vmatpush2.msra.mxu0 0.0
  %958 = vmatprep.subr.mxu0 0.0
  %959 = vmatpush2.msra.mxu0 0.0
  %960 = vmatprep.subr.mxu0 0.0
  %961 = vmatpush2.msra.mxu0 0.0
  %962 = vmatprep.subr.mxu0 0.0
  %963 = vmatpush2.msra.mxu0 0.0
  %964 = vmatprep.subr.mxu0 0.0
  %965 = vmatpush2.msra.mxu0 0.0
  %966 = vmatprep.subr.mxu0 0.0
  %967 = vmatpush2.msra.mxu0 0.0
  %968 = vmatprep.subr.mxu0 0.0
  %969 = vmatpush2.msra.mxu0 0.0
  %970 = vmatprep.subr.mxu0 0.0
  %971 = vmatpush2.msra.mxu0 0.0
  %972 = vmatprep.subr.mxu0 0.0
  %973 = vmatpush2.msra.mxu0 0.0
  %974 = vmatprep.subr.mxu0 0.0
  %975 = vmatpush2.msra.mxu0 0.0
  %976 = vmatprep.mubr.f32.mxu0 0.0
  %977 = vmatmul.mubr.f32.gmra.mxu0 %v770
  %v978 = vpop.f32.mrf.mxu0
  %v979 = vadd.f32 %v43, %v978
  %v980 = vpop.f32.mrf.mxu0
  %981 = vdwg.mxu0
  %s982 = scalar_lea.vmem %s0, 12
  %v983 = vld [vmem:[%s982] sm:$0xf]
  %v984 = vadd.f32 %v983, %v839
  %v985 = vxor.u32 %v984, 2147483648
  %v986 = vmul.f32 %v985, 1.442695
  %v987 = vpow.pop %v986
  %v988 = vadd.f32 %v987, 1.0
  %v989 = vrcp.pop %v988
  %v990 = vmul.f32 1.0, %v989
  %s991 = scalar_lea.vmem %s1, 12
  %v992 = vld [vmem:[%s991] sm:$0xf]
  %v993 = vadd.f32 %v992, %v909
  %v994 = vxor.u32 %v993, 2147483648
  %v995 = vmul.f32 %v994, 1.442695
  %v996 = vpow.pop %v995
  %v997 = vadd.f32 %v996, 1.0
  %v998 = vrcp.pop %v997
  %v999 = vmul.f32 1.0, %v998
  %s1000 = scalar_lea.vmem %s2, 12
  %v1001 = vld [vmem:[%s1000] sm:$0xf]
  %v1002 = vmul.f32 %v990, %v979
  %v1003 = vadd.f32 %v1001, %v1002
  %v1004 = vtanh.pop %v1003
  %v1005 = vsub.f32 1.0, %v999
  %v1006 = vmul.f32 %v1005, %v1004
  %v1007 = vmul.f32 %v999, %v766
  %v1008 = vadd.f32 %v1006, %v1007
  %s1009 = scalar_lea.vmem %s7, 12
  %1010 = vst.msk [vmem:[%s1009] sm:$0xf] %vm283, %v1008
  // Predicated region
  $region30: #{classifier_forward.4} parent=0 // pred_check
    _
  $region31: #{classifier_forward.4} parent=0 // pred_check_branch
    %1012 = sbr.rel (0) target = $region33
  $region32: #{classifier_forward.4} parent=0 // pred_region
    _
  $region33: #{classifier_forward.4} parent=0 // pred_fallthru
    _
  // Predicated region
  $region34: #{classifier_forward.4} parent=0 // pred_check
    _
  $region35: #{classifier_forward.4} parent=0 // pred_check_branch
    %1014 = sbr.rel (0) target = $region37
  $region36: #{classifier_forward.4} parent=0 // pred_region
    _
  $region37: #{classifier_forward.4} parent=0 // pred_fallthru
    _

// kernel: classifier_forward.3
$region0: #{classifier_forward.3}
  #allocation0 [shape = 'u32[]', space=smem, size = 0x4, offset = 0x4, fixed_abs, tag = 'smem constant byte address 0x4 - core index']
  #allocation1 [shape = 'u32[144,128]{1,0:T(1,128)}', space=vmem, size = 0x12000, scoped, tag = 'internal scratch']
  %s0 = inlined_call_operand.vmem [shape: f32[8,2,32], index: 0, kind: input, shape index: {}]
  %s1 = inlined_call_operand.vmem [shape: f32[8,2,32], index: 1, kind: input, shape index: {}]
  %s2 = inlined_call_operand.vmem [shape: f32[8,2,32], index: 2, kind: input, shape index: {}]
  %s3 = inlined_call_operand.vmem [shape: f32[32,32], index: 3, kind: input, shape index: {}]
  %s4 = inlined_call_operand.vmem [shape: f32[32,32], index: 4, kind: input, shape index: {}]
  %s5 = inlined_call_operand.vmem [shape: f32[32,32], index: 5, kind: input, shape index: {}]
  %s6 = inlined_call_operand.vmem [shape: f32[1,32], index: 6, kind: input, shape index: {}]
  %s7 = inlined_call_operand.vmem [shape: f32[8,2,32], index: 7, kind: output, shape index: {}]
  %s8 = sld [smem:[#allocation0]]
  $region38: #{classifier_forward.3} parent=0
    _
  %s10 = ssub.s32 1, %s8
  %s11 = scalar_select 0, %s10, %s8
  // Predicated region
  $region2: #{classifier_forward.3} parent=0 // pred_check
    _
  $region3: #{classifier_forward.3} parent=0 // pred_check_branch
    %13 = sbr.rel (0) target = $region5
  $region4: #{classifier_forward.3} parent=0 // pred_region
    _
  $region5: #{classifier_forward.3} parent=0 // pred_fallthru
    _
  // Predicated region
  $region6: #{classifier_forward.3} parent=0 // pred_check
    _
  $region7: #{classifier_forward.3} parent=0 // pred_check_branch
    %15 = sbr.rel (0) target = $region9
  $region8: #{classifier_forward.3} parent=0 // pred_region
    _
  $region9: #{classifier_forward.3} parent=0 // pred_fallthru
    _
  // Predicated region
  $region10: #{classifier_forward.3} parent=0 // pred_check
    _
  $region11: #{classifier_forward.3} parent=0 // pred_check_branch
    %17 = sbr.rel (0) target = $region13
  $region12: #{classifier_forward.3} parent=0 // pred_region
    _
  $region13: #{classifier_forward.3} parent=0 // pred_fallthru
    _
  // Predicated region
  $region14: #{classifier_forward.3} parent=0 // pred_check
    _
  $region15: #{classifier_forward.3} parent=0 // pred_check_branch
    %19 = sbr.rel (0) target = $region17
  $region16: #{classifier_forward.3} parent=0 // pred_region
    _
  $region17: #{classifier_forward.3} parent=0 // pred_fallthru
    _
  // Predicated region
  $region18: #{classifier_forward.3} parent=0 // pred_check
    _
  $region19: #{classifier_forward.3} parent=0 // pred_check_branch
    %21 = sbr.rel (0) target = $region21
  $region20: #{classifier_forward.3} parent=0 // pred_region
    _
  $region21: #{classifier_forward.3} parent=0 // pred_fallthru
    _
  // Predicated region
  $region22: #{classifier_forward.3} parent=0 // pred_check
    _
  $region23: #{classifier_forward.3} parent=0 // pred_check_branch
    %23 = sbr.rel (0) target = $region25
  $region24: #{classifier_forward.3} parent=0 // pred_region
    _
  $region25: #{classifier_forward.3} parent=0 // pred_fallthru
    _
  // Predicated region
  $region26: #{classifier_forward.3} parent=0 // pred_check
    _
  $region27: #{classifier_forward.3} parent=0 // pred_check_branch
    %25 = sbr.rel (0) target = $region29
  $region28: #{classifier_forward.3} parent=0 // pred_region
    _
  $region29: #{classifier_forward.3} parent=0 // pred_fallthru
    _
  %v26 = vld [vmem:[%s3] sm:$0xff]
  %v27 = vld [vmem:[%s3 + $0x8] sm:$0xff]
  %v28 = vld [vmem:[%s3 + $0x10] sm:$0xff]
  %v29 = vld [vmem:[%s3 + $0x18] sm:$0xff]
  %v30 = vld [vmem:[%s4] sm:$0xff]
  %v31 = vld [vmem:[%s4 + $0x8] sm:$0xff]
  %v32 = vld [vmem:[%s4 + $0x10] sm:$0xff]
  %v33 = vld [vmem:[%s4 + $0x18] sm:$0xff]
  %v34 = vld [vmem:[%s5] sm:$0xff]
  %v35 = vld [vmem:[%s5 + $0x8] sm:$0xff]
  %v36 = vld [vmem:[%s5 + $0x10] sm:$0xff]
  %v37 = vld [vmem:[%s5 + $0x18] sm:$0xff]
  %v38 = vld [vmem:[%s6] sm:$0x1]
  %v40 = vlaneseq
  %v41 = vshrl.u32 %v40, 7
  %v42 = vsub.s32 0, %v41
  %v43 = vrot.slane %v38, %v42
  %vm45 = vcmask 261120
  %v47 = vsel %vm45, 0.0, 0
  %49 = vmatprep.subr.mxu0 0.0
  %50 = vmatpush1.msra.mxu0 0.0
  %51 = vmatprep.subr.mxu0 0.0
  %52 = vmatpush1.msra.mxu0 0.0
  %53 = vmatprep.subr.mxu0 0.0
  %54 = vmatpush1.msra.mxu0 0.0
  %55 = vmatprep.subr.mxu0 0.0
  %56 = vmatpush1.msra.mxu0 0.0
  %57 = vmatprep.subr.mxu0 0.0
  %58 = vmatpush1.msra.mxu0 0.0
  %59 = vmatprep.subr.mxu0 0.0
  %60 = vmatpush1.msra.mxu0 0.0
  %61 = vmatprep.subr.mxu0 0.0
  %62 = vmatpush1.msra.mxu0 0.0
  %63 = vmatprep.subr.mxu0 0.0
  %64 = vmatpush1.msra.mxu0 0.0
  %65 = vmatprep.subr.mxu0 0.0
  %66 = vmatpush1.msra.mxu0 0.0
  %67 = vmatprep.subr.mxu0 0.0
  %68 = vmatpush1.msra.mxu0 0.0
  %69 = vmatprep.subr.mxu0 0.0
  %70 = vmatpush1.msra.mxu0 0.0
  %71 = vmatprep.subr.mxu0 0.0
  %72 = vmatpush1.msra.mxu0 0.0
  %73 = vmatprep.subr.mxu0 0.0
  %74 = vmatpush1.msra.mxu0 %v29
  %75 = vmatprep.subr.mxu0 0.0
  %76 = vmatpush1.msra.mxu0 %v28
  %77 = vmatprep.subr.mxu0 0.0
  %78 = vmatpush1.msra.mxu0 %v27
  %79 = vmatprep.subr.mxu0 0.0
  %80 = vmatpush1.msra.mxu0 %v26
  %81 = vmatprep.subr.mxu0 0.0
  %82 = vmatpush2.msra.mxu0 0.0
  %83 = vmatprep.subr.mxu0 0.0
  %84 = vmatpush2.msra.mxu0 0.0
  %85 = vmatprep.subr.mxu0 0.0
  %86 = vmatpush2.msra.mxu0 0.0
  %87 = vmatprep.subr.mxu0 0.0
  %88 = vmatpush2.msra.mxu0 0.0
  %89 = vmatprep.subr.mxu0 0.0
  %90 = vmatpush2.msra.mxu0 0.0
  %91 = vmatprep.subr.mxu0 0.0
  %92 = vmatpush2.msra.mxu0 0.0
  %93 = vmatprep.subr.mxu0 0.0
  %94 = vmatpush2.msra.mxu0 0.0
  %95 = vmatprep.subr.mxu0 0.0
  %96 = vmatpush2.msra.mxu0 0.0
  %97 = vmatprep.subr.mxu0 0.0
  %98 = vmatpush2.msra.mxu0 0.0
  %99 = vmatprep.subr.mxu0 0.0
  %100 = vmatpush2.msra.mxu0 0.0
  %101 = vmatprep.subr.mxu0 0.0
  %102 = vmatpush2.msra.mxu0 0.0
  %103 = vmatprep.subr.mxu0 0.0
  %104 = vmatpush2.msra.mxu0 0.0
  %105 = vmatprep.subr.mxu0 0.0
  %106 = vmatpush2.msra.mxu0 0.0
  %107 = vmatprep.subr.mxu0 0.0
  %108 = vmatpush2.msra.mxu0 0.0
  %109 = vmatprep.subr.mxu0 0.0
  %110 = vmatpush2.msra.mxu0 0.0
  %111 = vmatprep.subr.mxu0 0.0
  %112 = vmatpush2.msra.mxu0 0.0
  %113 = vmatprep.mubr.f32.mxu0 0.0
  %114 = vmatmul.mubr.f32.gmra.mxu0 %v47
  %v115 = vpop.f32.mrf.mxu0
  %v116 = vadd.f32 0.0, %v115
  %v117 = vpop.f32.mrf.mxu0
  %118 = vdwg.mxu0
  %119 = vmatprep.subr.mxu0 0.0
  %120 = vmatpush1.msra.mxu0 0.0
  %121 = vmatprep.subr.mxu0 0.0
  %122 = vmatpush1.msra.mxu0 0.0
  %123 = vmatprep.subr.mxu0 0.0
  %124 = vmatpush1.msra.mxu0 0.0
  %125 = vmatprep.subr.mxu0 0.0
  %126 = vmatpush1.msra.mxu0 0.0
  %127 = vmatprep.subr.mxu0 0.0
  %128 = vmatpush1.msra.mxu0 0.0
  %129 = vmatprep.subr.mxu0 0.0
  %130 = vmatpush1.msra.mxu0 0.0
  %131 = vmatprep.subr.mxu0 0.0
  %132 = vmatpush1.msra.mxu0 0.0
  %133 = vmatprep.subr.mxu0 0.0
  %134 = vmatpush1.msra.mxu0 0.0
  %135 = vmatprep.subr.mxu0 0.0
  %136 = vmatpush1.msra.mxu0 0.0
  %137 = vmatprep.subr.mxu0 0.0
  %138 = vmatpush1.msra.mxu0 0.0
  %139 = vmatprep.subr.mxu0 0.0
  %140 = vmatpush1.msra.mxu0 0.0
  %141 = vmatprep.subr.mxu0 0.0
  %142 = vmatpush1.msra.mxu0 0.0
  %143 = vmatprep.subr.mxu0 0.0
  %144 = vmatpush1.msra.mxu0 %v33
  %145 = vmatprep.subr.mxu0 0.0
  %146 = vmatpush1.msra.mxu0 %v32
  %147 = vmatprep.subr.mxu0 0.0
  %148 = vmatpush1.msra.mxu0 %v31
  %149 = vmatprep.subr.mxu0 0.0
  %150 = vmatpush1.msra.mxu0 %v30
  %151 = vmatprep.subr.mxu0 0.0
  %152 = vmatpush2.msra.mxu0 0.0
  %153 = vmatprep.subr.mxu0 0.0
  %154 = vmatpush2.msra.mxu0 0.0
  %155 = vmatprep.subr.mxu0 0.0
  %156 = vmatpush2.msra.mxu0 0.0
  %157 = vmatprep.subr.mxu0 0.0
  %158 = vmatpush2.msra.mxu0 0.0
  %159 = vmatprep.subr.mxu0 0.0
  %160 = vmatpush2.msra.mxu0 0.0
  %161 = vmatprep.subr.mxu0 0.0
  %162 = vmatpush2.msra.mxu0 0.0
  %163 = vmatprep.subr.mxu0 0.0
  %164 = vmatpush2.msra.mxu0 0.0
  %165 = vmatprep.subr.mxu0 0.0
  %166 = vmatpush2.msra.mxu0 0.0
  %167 = vmatprep.subr.mxu0 0.0
  %168 = vmatpush2.msra.mxu0 0.0
  %169 = vmatprep.subr.mxu0 0.0
  %170 = vmatpush2.msra.mxu0 0.0
  %171 = vmatprep.subr.mxu0 0.0
  %172 = vmatpush2.msra.mxu0 0.0
  %173 = vmatprep.subr.mxu0 0.0
  %174 = vmatpush2.msra.mxu0 0.0
  %175 = vmatprep.subr.mxu0 0.0
  %176 = vmatpush2.msra.mxu0 0.0
  %177 = vmatprep.subr.mxu0 0.0
  %178 = vmatpush2.msra.mxu0 0.0
  %179 = vmatprep.subr.mxu0 0.0
  %180 = vmatpush2.msra.mxu0 0.0
  %181 = vmatprep.subr.mxu0 0.0
  %182 = vmatpush2.msra.mxu0 0.0
  %183 = vmatprep.mubr.f32.mxu0 0.0
  %184 = vmatmul.mubr.f32.gmra.mxu0 %v47
  %v185 = vpop.f32.mrf.mxu0
  %v186 = vadd.f32 0.0, %v185
  %v187 = vpop.f32.mrf.mxu0
  %188 = vdwg.mxu0
  %189 = vmatprep.subr.mxu0 0.0
  %190 = vmatpush1.msra.mxu0 0.0
  %191 = vmatprep.subr.mxu0 0.0
  %192 = vmatpush1.msra.mxu0 0.0
  %193 = vmatprep.subr.mxu0 0.0
  %194 = vmatpush1.msra.mxu0 0.0
  %195 = vmatprep.subr.mxu0 0.0
  %196 = vmatpush1.msra.mxu0 0.0
  %197 = vmatprep.subr.mxu0 0.0
  %198 = vmatpush1.msra.mxu0 0.0
  %199 = vmatprep.subr.mxu0 0.0
  %200 = vmatpush1.msra.mxu0 0.0
  %201 = vmatprep.subr.mxu0 0.0
  %202 = vmatpush1.msra.mxu0 0.0
  %203 = vmatprep.subr.mxu0 0.0
  %204 = vmatpush1.msra.mxu0 0.0
  %205 = vmatprep.subr.mxu0 0.0
  %206 = vmatpush1.msra.mxu0 0.0
  %207 = vmatprep.subr.mxu0 0.0
  %208 = vmatpush1.msra.mxu0 0.0
  %209 = vmatprep.subr.mxu0 0.0
  %210 = vmatpush1.msra.mxu0 0.0
  %211 = vmatprep.subr.mxu0 0.0
  %212 = vmatpush1.msra.mxu0 0.0
  %213 = vmatprep.subr.mxu0 0.0
  %214 = vmatpush1.msra.mxu0 %v37
  %215 = vmatprep.subr.mxu0 0.0
  %216 = vmatpush1.msra.mxu0 %v36
  %217 = vmatprep.subr.mxu0 0.0
  %218 = vmatpush1.msra.mxu0 %v35
  %219 = vmatprep.subr.mxu0 0.0
  %220 = vmatpush1.msra.mxu0 %v34
  %221 = vmatprep.subr.mxu0 0.0
  %222 = vmatpush2.msra.mxu0 0.0
  %223 = vmatprep.subr.mxu0 0.0
  %224 = vmatpush2.msra.mxu0 0.0
  %225 = vmatprep.subr.mxu0 0.0
  %226 = vmatpush2.msra.mxu0 0.0
  %227 = vmatprep.subr.mxu0 0.0
  %228 = vmatpush2.msra.mxu0 0.0
  %229 = vmatprep.subr.mxu0 0.0
  %230 = vmatpush2.msra.mxu0 0.0
  %231 = vmatprep.subr.mxu0 0.0
  %232 = vmatpush2.msra.mxu0 0.0
  %233 = vmatprep.subr.mxu0 0.0
  %234 = vmatpush2.msra.mxu0 0.0
  %235 = vmatprep.subr.mxu0 0.0
  %236 = vmatpush2.msra.mxu0 0.0
  %237 = vmatprep.subr.mxu0 0.0
  %238 = vmatpush2.msra.mxu0 0.0
  %239 = vmatprep.subr.mxu0 0.0
  %240 = vmatpush2.msra.mxu0 0.0
  %241 = vmatprep.subr.mxu0 0.0
  %242 = vmatpush2.msra.mxu0 0.0
  %243 = vmatprep.subr.mxu0 0.0
  %244 = vmatpush2.msra.mxu0 0.0
  %245 = vmatprep.subr.mxu0 0.0
  %246 = vmatpush2.msra.mxu0 0.0
  %247 = vmatprep.subr.mxu0 0.0
  %248 = vmatpush2.msra.mxu0 0.0
  %249 = vmatprep.subr.mxu0 0.0
  %250 = vmatpush2.msra.mxu0 0.0
  %251 = vmatprep.subr.mxu0 0.0
  %252 = vmatpush2.msra.mxu0 0.0
  %253 = vmatprep.mubr.f32.mxu0 0.0
  %254 = vmatmul.mubr.f32.gmra.mxu0 %v47
  %v255 = vpop.f32.mrf.mxu0
  %v256 = vadd.f32 %v43, %v255
  %v257 = vpop.f32.mrf.mxu0
  %258 = vdwg.mxu0
  %v259 = vld [vmem:[%s0] sm:$0x3]
  %v260 = vadd.f32 %v259, %v116
  %v261 = vxor.u32 %v260, 2147483648
  %v262 = vmul.f32 %v261, 1.442695
  %v263 = vpow.pop %v262
  %v264 = vadd.f32 %v263, 1.0
  %v265 = vrcp.pop %v264
  %v266 = vmul.f32 1.0, %v265
  %v267 = vld [vmem:[%s1] sm:$0x3]
  %v268 = vadd.f32 %v267, %v186
  %v269 = vxor.u32 %v268, 2147483648
  %v270 = vmul.f32 %v269, 1.442695
  %v271 = vpow.pop %v270
  %v272 = vadd.f32 %v271, 1.0
  %v273 = vrcp.pop %v272
  %v274 = vmul.f32 1.0, %v273
  %v275 = vld [vmem:[%s2] sm:$0x3]
  %v276 = vmul.f32 %v266, %v256
  %v277 = vadd.f32 %v275, %v276
  %v278 = vtanh.pop %v277
  %v279 = vsub.f32 1.0, %v274
  %v280 = vmul.f32 %v279, %v278
  %v281 = vmul.f32 %v274, 0.0
  %v282 = vadd.f32 %v280, %v281
  %vm283 = vcmask 254976
  %284 = vst.msk [vmem:[%s7] sm:$0x3] %vm283, %v282
  %v286 = vsel %vm45, %v282, 0
  %288 = vmatprep.subr.mxu0 0.0
  %289 = vmatpush1.msra.mxu0 0.0
  %290 = vmatprep.subr.mxu0 0.0
  %291 = vmatpush1.msra.mxu0 0.0
  %292 = vmatprep.subr.mxu0 0.0
  %293 = vmatpush1.msra.mxu0 0.0
  %294 = vmatprep.subr.mxu0 0.0
  %295 = vmatpush1.msra.mxu0 0.0
  %296 = vmatprep.subr.mxu0 0.0
  %297 = vmatpush1.msra.mxu0 0.0
  %298 = vmatprep.subr.mxu0 0.0
  %299 = vmatpush1.msra.mxu0 0.0
  %300 = vmatprep.subr.mxu0 0.0
  %301 = vmatpush1.msra.mxu0 0.0
  %302 = vmatprep.subr.mxu0 0.0
  %303 = vmatpush1.msra.mxu0 0.0
  %304 = vmatprep.subr.mxu0 0.0
  %305 = vmatpush1.msra.mxu0 0.0
  %306 = vmatprep.subr.mxu0 0.0
  %307 = vmatpush1.msra.mxu0 0.0
  %308 = vmatprep.subr.mxu0 0.0
  %309 = vmatpush1.msra.mxu0 0.0
  %310 = vmatprep.subr.mxu0 0.0
  %311 = vmatpush1.msra.mxu0 0.0
  %312 = vmatprep.subr.mxu0 0.0
  %313 = vmatpush1.msra.mxu0 %v29
  %314 = vmatprep.subr.mxu0 0.0
  %315 = vmatpush1.msra.mxu0 %v28
  %316 = vmatprep.subr.mxu0 0.0
  %317 = vmatpush1.msra.mxu0 %v27
  %318 = vmatprep.subr.mxu0 0.0
  %319 = vmatpush1.msra.mxu0 %v26
  %320 = vmatprep.subr.mxu0 0.0
  %321 = vmatpush2.msra.mxu0 0.0
  %322 = vmatprep.subr.mxu0 0.0
  %323 = vmatpush2.msra.mxu0 0.0
  %324 = vmatprep.subr.mxu0 0.0
  %325 = vmatpush2.msra.mxu0 0.0
  %326 = vmatprep.subr.mxu0 0.0
  %327 = vmatpush2.msra.mxu0 0.0
  %328 = vmatprep.subr.mxu0 0.0
  %329 = vmatpush2.msra.mxu0 0.0
  %330 = vmatprep.subr.mxu0 0.0
  %331 = vmatpush2.msra.mxu0 0.0
  %332 = vmatprep.subr.mxu0 0.0
  %333 = vmatpush2.msra.mxu0 0.0
  %334 = vmatprep.subr.mxu0 0.0
  %335 = vmatpush2.msra.mxu0 0.0
  %336 = vmatprep.subr.mxu0 0.0
  %337 = vmatpush2.msra.mxu0 0.0
  %338 = vmatprep.subr.mxu0 0.0
  %339 = vmatpush2.msra.mxu0 0.0
  %340 = vmatprep.subr.mxu0 0.0
  %341 = vmatpush2.msra.mxu0 0.0
  %342 = vmatprep.subr.mxu0 0.0
  %343 = vmatpush2.msra.mxu0 0.0
  %344 = vmatprep.subr.mxu0 0.0
  %345 = vmatpush2.msra.mxu0 0.0
  %346 = vmatprep.subr.mxu0 0.0
  %347 = vmatpush2.msra.mxu0 0.0
  %348 = vmatprep.subr.mxu0 0.0
  %349 = vmatpush2.msra.mxu0 0.0
  %350 = vmatprep.subr.mxu0 0.0
  %351 = vmatpush2.msra.mxu0 0.0
  %352 = vmatprep.mubr.f32.mxu0 0.0
  %353 = vmatmul.mubr.f32.gmra.mxu0 %v286
  %v354 = vpop.f32.mrf.mxu0
  %v355 = vadd.f32 0.0, %v354
  %v356 = vpop.f32.mrf.mxu0
  %357 = vdwg.mxu0
  %358 = vmatprep.subr.mxu0 0.0
  %359 = vmatpush1.msra.mxu0 0.0
  %360 = vmatprep.subr.mxu0 0.0
  %361 = vmatpush1.msra.mxu0 0.0
  %362 = vmatprep.subr.mxu0 0.0
  %363 = vmatpush1.msra.mxu0 0.0
  %364 = vmatprep.subr.mxu0 0.0
  %365 = vmatpush1.msra.mxu0 0.0
  %366 = vmatprep.subr.mxu0 0.0
  %367 = vmatpush1.msra.mxu0 0.0
  %368 = vmatprep.subr.mxu0 0.0
  %369 = vmatpush1.msra.mxu0 0.0
  %370 = vmatprep.subr.mxu0 0.0
  %371 = vmatpush1.msra.mxu0 0.0
  %372 = vmatprep.subr.mxu0 0.0
  %373 = vmatpush1.msra.mxu0 0.0
  %374 = vmatprep.subr.mxu0 0.0
  %375 = vmatpush1.msra.mxu0 0.0
  %376 = vmatprep.subr.mxu0 0.0
  %377 = vmatpush1.msra.mxu0 0.0
  %378 = vmatprep.subr.mxu0 0.0
  %379 = vmatpush1.msra.mxu0 0.0
  %380 = vmatprep.subr.mxu0 0.0
  %381 = vmatpush1.msra.mxu0 0.0
  %382 = vmatprep.subr.mxu0 0.0
  %383 = vmatpush1.msra.mxu0 %v33
  %384 = vmatprep.subr.mxu0 0.0
  %385 = vmatpush1.msra.mxu0 %v32
  %386 = vmatprep.subr.mxu0 0.0
  %387 = vmatpush1.msra.mxu0 %v31
  %388 = vmatprep.subr.mxu0 0.0
  %389 = vmatpush1.msra.mxu0 %v30
  %390 = vmatprep.subr.mxu0 0.0
  %391 = vmatpush2.msra.mxu0 0.0
  %392 = vmatprep.subr.mxu0 0.0
  %393 = vmatpush2.msra.mxu0 0.0
  %394 = vmatprep.subr.mxu0 0.0
  %395 = vmatpush2.msra.mxu0 0.0
  %396 = vmatprep.subr.mxu0 0.0
  %397 = vmatpush2.msra.mxu0 0.0
  %398 = vmatprep.subr.mxu0 0.0
  %399 = vmatpush2.msra.mxu0 0.0
  %400 = vmatprep.subr.mxu0 0.0
  %401 = vmatpush2.msra.mxu0 0.0
  %402 = vmatprep.subr.mxu0 0.0
  %403 = vmatpush2.msra.mxu0 0.0
  %404 = vmatprep.subr.mxu0 0.0
  %405 = vmatpush2.msra.mxu0 0.0
  %406 = vmatprep.subr.mxu0 0.0
  %407 = vmatpush2.msra.mxu0 0.0
  %408 = vmatprep.subr.mxu0 0.0
  %409 = vmatpush2.msra.mxu0 0.0
  %410 = vmatprep.subr.mxu0 0.0
  %411 = vmatpush2.msra.mxu0 0.0
  %412 = vmatprep.subr.mxu0 0.0
  %413 = vmatpush2.msra.mxu0 0.0
  %414 = vmatprep.subr.mxu0 0.0
  %415 = vmatpush2.msra.mxu0 0.0
  %416 = vmatprep.subr.mxu0 0.0
  %417 = vmatpush2.msra.mxu0 0.0
  %418 = vmatprep.subr.mxu0 0.0
  %419 = vmatpush2.msra.mxu0 0.0
  %420 = vmatprep.subr.mxu0 0.0
  %421 = vmatpush2.msra.mxu0 0.0
  %422 = vmatprep.mubr.f32.mxu0 0.0
  %423 = vmatmul.mubr.f32.gmra.mxu0 %v286
  %v424 = vpop.f32.mrf.mxu0
  %v425 = vadd.f32 0.0, %v424
  %v426 = vpop.f32.mrf.mxu0
  %427 = vdwg.mxu0
  %428 = vmatprep.subr.mxu0 0.0
  %429 = vmatpush1.msra.mxu0 0.0
  %430 = vmatprep.subr.mxu0 0.0
  %431 = vmatpush1.msra.mxu0 0.0
  %432 = vmatprep.subr.mxu0 0.0
  %433 = vmatpush1.msra.mxu0 0.0
  %434 = vmatprep.subr.mxu0 0.0
  %435 = vmatpush1.msra.mxu0 0.0
  %436 = vmatprep.subr.mxu0 0.0
  %437 = vmatpush1.msra.mxu0 0.0
  %438 = vmatprep.subr.mxu0 0.0
  %439 = vmatpush1.msra.mxu0 0.0
  %440 = vmatprep.subr.mxu0 0.0
  %441 = vmatpush1.msra.mxu0 0.0
  %442 = vmatprep.subr.mxu0 0.0
  %443 = vmatpush1.msra.mxu0 0.0
  %444 = vmatprep.subr.mxu0 0.0
  %445 = vmatpush1.msra.mxu0 0.0
  %446 = vmatprep.subr.mxu0 0.0
  %447 = vmatpush1.msra.mxu0 0.0
  %448 = vmatprep.subr.mxu0 0.0
  %449 = vmatpush1.msra.mxu0 0.0
  %450 = vmatprep.subr.mxu0 0.0
  %451 = vmatpush1.msra.mxu0 0.0
  %452 = vmatprep.subr.mxu0 0.0
  %453 = vmatpush1.msra.mxu0 %v37
  %454 = vmatprep.subr.mxu0 0.0
  %455 = vmatpush1.msra.mxu0 %v36
  %456 = vmatprep.subr.mxu0 0.0
  %457 = vmatpush1.msra.mxu0 %v35
  %458 = vmatprep.subr.mxu0 0.0
  %459 = vmatpush1.msra.mxu0 %v34
  %460 = vmatprep.subr.mxu0 0.0
  %461 = vmatpush2.msra.mxu0 0.0
  %462 = vmatprep.subr.mxu0 0.0
  %463 = vmatpush2.msra.mxu0 0.0
  %464 = vmatprep.subr.mxu0 0.0
  %465 = vmatpush2.msra.mxu0 0.0
  %466 = vmatprep.subr.mxu0 0.0
  %467 = vmatpush2.msra.mxu0 0.0
  %468 = vmatprep.subr.mxu0 0.0
  %469 = vmatpush2.msra.mxu0 0.0
  %470 = vmatprep.subr.mxu0 0.0
  %471 = vmatpush2.msra.mxu0 0.0
  %472 = vmatprep.subr.mxu0 0.0
  %473 = vmatpush2.msra.mxu0 0.0
  %474 = vmatprep.subr.mxu0 0.0
  %475 = vmatpush2.msra.mxu0 0.0
  %476 = vmatprep.subr.mxu0 0.0
  %477 = vmatpush2.msra.mxu0 0.0
  %478 = vmatprep.subr.mxu0 0.0
  %479 = vmatpush2.msra.mxu0 0.0
  %480 = vmatprep.subr.mxu0 0.0
  %481 = vmatpush2.msra.mxu0 0.0
  %482 = vmatprep.subr.mxu0 0.0
  %483 = vmatpush2.msra.mxu0 0.0
  %484 = vmatprep.subr.mxu0 0.0
  %485 = vmatpush2.msra.mxu0 0.0
  %486 = vmatprep.subr.mxu0 0.0
  %487 = vmatpush2.msra.mxu0 0.0
  %488 = vmatprep.subr.mxu0 0.0
  %489 = vmatpush2.msra.mxu0 0.0
  %490 = vmatprep.subr.mxu0 0.0
  %491 = vmatpush2.msra.mxu0 0.0
  %492 = vmatprep.mubr.f32.mxu0 0.0
  %493 = vmatmul.mubr.f32.gmra.mxu0 %v286
  %v494 = vpop.f32.mrf.mxu0
  %v495 = vadd.f32 %v43, %v494
  %v496 = vpop.f32.mrf.mxu0
  %497 = vdwg.mxu0
  %s498 = scalar_lea.vmem %s0, 2
  %v499 = vld [vmem:[%s498] sm:$0x3]
  %v500 = vadd.f32 %v499, %v355
  %v501 = vxor.u32 %v500, 2147483648
  %v502 = vmul.f32 %v501, 1.442695
  %v503 = vpow.pop %v502
  %v504 = vadd.f32 %v503, 1.0
  %v505 = vrcp.pop %v504
  %v506 = vmul.f32 1.0, %v505
  %s507 = scalar_lea.vmem %s1, 2
  %v508 = vld [vmem:[%s507] sm:$0x3]
  %v509 = vadd.f32 %v508, %v425
  %v510 = vxor.u32 %v509, 2147483648
  %v511 = vmul.f32 %v510, 1.442695
  %v512 = vpow.pop %v511
  %v513 = vadd.f32 %v512, 1.0
  %v514 = vrcp.pop %v513
  %v515 = vmul.f32 1.0, %v514
  %s516 = scalar_lea.vmem %s2, 2
  %v517 = vld [vmem:[%s516] sm:$0x3]
  %v518 = vmul.f32 %v506, %v495
  %v519 = vadd.f32 %v517, %v518
  %v520 = vtanh.pop %v519
  %v521 = vsub.f32 1.0, %v515
  %v522 = vmul.f32 %v521, %v520
  %v523 = vmul.f32 %v515, %v282
  %v524 = vadd.f32 %v522, %v523
  %s525 = scalar_lea.vmem %s7, 2
  %526 = vst.msk [vmem:[%s525] sm:$0x3] %vm283, %v524
  %v528 = vsel %vm45, %v524, 0
  %530 = vmatprep.subr.mxu0 0.0
  %531 = vmatpush1.msra.mxu0 0.0
  %532 = vmatprep.subr.mxu0 0.0
  %533 = vmatpush1.msra.mxu0 0.0
  %534 = vmatprep.subr.mxu0 0.0
  %535 = vmatpush1.msra.mxu0 0.0
  %536 = vmatprep.subr.mxu0 0.0
  %537 = vmatpush1.msra.mxu0 0.0
  %538 = vmatprep.subr.mxu0 0.0
  %539 = vmatpush1.msra.mxu0 0.0
  %540 = vmatprep.subr.mxu0 0.0
  %541 = vmatpush1.msra.mxu0 0.0
  %542 = vmatprep.subr.mxu0 0.0
  %543 = vmatpush1.msra.mxu0 0.0
  %544 = vmatprep.subr.mxu0 0.0
  %545 = vmatpush1.msra.mxu0 0.0
  %546 = vmatprep.subr.mxu0 0.0
  %547 = vmatpush1.msra.mxu0 0.0
  %548 = vmatprep.subr.mxu0 0.0
  %549 = vmatpush1.msra.mxu0 0.0
  %550 = vmatprep.subr.mxu0 0.0
  %551 = vmatpush1.msra.mxu0 0.0
  %552 = vmatprep.subr.mxu0 0.0
  %553 = vmatpush1.msra.mxu0 0.0
  %554 = vmatprep.subr.mxu0 0.0
  %555 = vmatpush1.msra.mxu0 %v29
  %556 = vmatprep.subr.mxu0 0.0
  %557 = vmatpush1.msra.mxu0 %v28
  %558 = vmatprep.subr.mxu0 0.0
  %559 = vmatpush1.msra.mxu0 %v27
  %560 = vmatprep.subr.mxu0 0.0
  %561 = vmatpush1.msra.mxu0 %v26
  %562 = vmatprep.subr.mxu0 0.0
  %563 = vmatpush2.msra.mxu0 0.0
  %564 = vmatprep.subr.mxu0 0.0
  %565 = vmatpush2.msra.mxu0 0.0
  %566 = vmatprep.subr.mxu0 0.0
  %567 = vmatpush2.msra.mxu0 0.0
  %568 = vmatprep.subr.mxu0 0.0
  %569 = vmatpush2.msra.mxu0 0.0
  %570 = vmatprep.subr.mxu0 0.0
  %571 = vmatpush2.msra.mxu0 0.0
  %572 = vmatprep.subr.mxu0 0.0
  %573 = vmatpush2.msra.mxu0 0.0
  %574 = vmatprep.subr.mxu0 0.0
  %575 = vmatpush2.msra.mxu0 0.0
  %576 = vmatprep.subr.mxu0 0.0
  %577 = vmatpush2.msra.mxu0 0.0
  %578 = vmatprep.subr.mxu0 0.0
  %579 = vmatpush2.msra.mxu0 0.0
  %580 = vmatprep.subr.mxu0 0.0
  %581 = vmatpush2.msra.mxu0 0.0
  %582 = vmatprep.subr.mxu0 0.0
  %583 = vmatpush2.msra.mxu0 0.0
  %584 = vmatprep.subr.mxu0 0.0
  %585 = vmatpush2.msra.mxu0 0.0
  %586 = vmatprep.subr.mxu0 0.0
  %587 = vmatpush2.msra.mxu0 0.0
  %588 = vmatprep.subr.mxu0 0.0
  %589 = vmatpush2.msra.mxu0 0.0
  %590 = vmatprep.subr.mxu0 0.0
  %591 = vmatpush2.msra.mxu0 0.0
  %592 = vmatprep.subr.mxu0 0.0
  %593 = vmatpush2.msra.mxu0 0.0
  %594 = vmatprep.mubr.f32.mxu0 0.0
  %595 = vmatmul.mubr.f32.gmra.mxu0 %v528
  %v596 = vpop.f32.mrf.mxu0
  %v597 = vadd.f32 0.0, %v596
  %v598 = vpop.f32.mrf.mxu0
  %599 = vdwg.mxu0
  %600 = vmatprep.subr.mxu0 0.0
  %601 = vmatpush1.msra.mxu0 0.0
  %602 = vmatprep.subr.mxu0 0.0
  %603 = vmatpush1.msra.mxu0 0.0
  %604 = vmatprep.subr.mxu0 0.0
  %605 = vmatpush1.msra.mxu0 0.0
  %606 = vmatprep.subr.mxu0 0.0
  %607 = vmatpush1.msra.mxu0 0.0
  %608 = vmatprep.subr.mxu0 0.0
  %609 = vmatpush1.msra.mxu0 0.0
  %610 = vmatprep.subr.mxu0 0.0
  %611 = vmatpush1.msra.mxu0 0.0
  %612 = vmatprep.subr.mxu0 0.0
  %613 = vmatpush1.msra.mxu0 0.0
  %614 = vmatprep.subr.mxu0 0.0
  %615 = vmatpush1.msra.mxu0 0.0
  %616 = vmatprep.subr.mxu0 0.0
  %617 = vmatpush1.msra.mxu0 0.0
  %618 = vmatprep.subr.mxu0 0.0
  %619 = vmatpush1.msra.mxu0 0.0
  %620 = vmatprep.subr.mxu0 0.0
  %621 = vmatpush1.msra.mxu0 0.0
  %622 = vmatprep.subr.mxu0 0.0
  %623 = vmatpush1.msra.mxu0 0.0
  %624 = vmatprep.subr.mxu0 0.0
  %625 = vmatpush1.msra.mxu0 %v33
  %626 = vmatprep.subr.mxu0 0.0
  %627 = vmatpush1.msra.mxu0 %v32
  %628 = vmatprep.subr.mxu0 0.0
  %629 = vmatpush1.msra.mxu0 %v31
  %630 = vmatprep.subr.mxu0 0.0
  %631 = vmatpush1.msra.mxu0 %v30
  %632 = vmatprep.subr.mxu0 0.0
  %633 = vmatpush2.msra.mxu0 0.0
  %634 = vmatprep.subr.mxu0 0.0
  %635 = vmatpush2.msra.mxu0 0.0
  %636 = vmatprep.subr.mxu0 0.0
  %637 = vmatpush2.msra.mxu0 0.0
  %638 = vmatprep.subr.mxu0 0.0
  %639 = vmatpush2.msra.mxu0 0.0
  %640 = vmatprep.subr.mxu0 0.0
  %641 = vmatpush2.msra.mxu0 0.0
  %642 = vmatprep.subr.mxu0 0.0
  %643 = vmatpush2.msra.mxu0 0.0
  %644 = vmatprep.subr.mxu0 0.0
  %645 = vmatpush2.msra.mxu0 0.0
  %646 = vmatprep.subr.mxu0 0.0
  %647 = vmatpush2.msra.mxu0 0.0
  %648 = vmatprep.subr.mxu0 0.0
  %649 = vmatpush2.msra.mxu0 0.0
  %650 = vmatprep.subr.mxu0 0.0
  %651 = vmatpush2.msra.mxu0 0.0
  %652 = vmatprep.subr.mxu0 0.0
  %653 = vmatpush2.msra.mxu0 0.0
  %654 = vmatprep.subr.mxu0 0.0
  %655 = vmatpush2.msra.mxu0 0.0
  %656 = vmatprep.subr.mxu0 0.0
  %657 = vmatpush2.msra.mxu0 0.0
  %658 = vmatprep.subr.mxu0 0.0
  %659 = vmatpush2.msra.mxu0 0.0
  %660 = vmatprep.subr.mxu0 0.0
  %661 = vmatpush2.msra.mxu0 0.0
  %662 = vmatprep.subr.mxu0 0.0
  %663 = vmatpush2.msra.mxu0 0.0
  %664 = vmatprep.mubr.f32.mxu0 0.0
  %665 = vmatmul.mubr.f32.gmra.mxu0 %v528
  %v666 = vpop.f32.mrf.mxu0
  %v667 = vadd.f32 0.0, %v666
  %v668 = vpop.f32.mrf.mxu0
  %669 = vdwg.mxu0
  %670 = vmatprep.subr.mxu0 0.0
  %671 = vmatpush1.msra.mxu0 0.0
  %672 = vmatprep.subr.mxu0 0.0
  %673 = vmatpush1.msra.mxu0 0.0
  %674 = vmatprep.subr.mxu0 0.0
  %675 = vmatpush1.msra.mxu0 0.0
  %676 = vmatprep.subr.mxu0 0.0
  %677 = vmatpush1.msra.mxu0 0.0
  %678 = vmatprep.subr.mxu0 0.0
  %679 = vmatpush1.msra.mxu0 0.0
  %680 = vmatprep.subr.mxu0 0.0
  %681 = vmatpush1.msra.mxu0 0.0
  %682 = vmatprep.subr.mxu0 0.0
  %683 = vmatpush1.msra.mxu0 0.0
  %684 = vmatprep.subr.mxu0 0.0
  %685 = vmatpush1.msra.mxu0 0.0
  %686 = vmatprep.subr.mxu0 0.0
  %687 = vmatpush1.msra.mxu0 0.0
  %688 = vmatprep.subr.mxu0 0.0
  %689 = vmatpush1.msra.mxu0 0.0
  %690 = vmatprep.subr.mxu0 0.0
  %691 = vmatpush1.msra.mxu0 0.0
  %692 = vmatprep.subr.mxu0 0.0
  %693 = vmatpush1.msra.mxu0 0.0
  %694 = vmatprep.subr.mxu0 0.0
  %695 = vmatpush1.msra.mxu0 %v37
  %696 = vmatprep.subr.mxu0 0.0
  %697 = vmatpush1.msra.mxu0 %v36
  %698 = vmatprep.subr.mxu0 0.0
  %699 = vmatpush1.msra.mxu0 %v35
  %700 = vmatprep.subr.mxu0 0.0
  %701 = vmatpush1.msra.mxu0 %v34
  %702 = vmatprep.subr.mxu0 0.0
  %703 = vmatpush2.msra.mxu0 0.0
  %704 = vmatprep.subr.mxu0 0.0
  %705 = vmatpush2.msra.mxu0 0.0
  %706 = vmatprep.subr.mxu0 0.0
  %707 = vmatpush2.msra.mxu0 0.0
  %708 = vmatprep.subr.mxu0 0.0
  %709 = vmatpush2.msra.mxu0 0.0
  %710 = vmatprep.subr.mxu0 0.0
  %711 = vmatpush2.msra.mxu0 0.0
  %712 = vmatprep.subr.mxu0 0.0
  %713 = vmatpush2.msra.mxu0 0.0
  %714 = vmatprep.subr.mxu0 0.0
  %715 = vmatpush2.msra.mxu0 0.0
  %716 = vmatprep.subr.mxu0 0.0
  %717 = vmatpush2.msra.mxu0 0.0
  %718 = vmatprep.subr.mxu0 0.0
  %719 = vmatpush2.msra.mxu0 0.0
  %720 = vmatprep.subr.mxu0 0.0
  %721 = vmatpush2.msra.mxu0 0.0
  %722 = vmatprep.subr.mxu0 0.0
  %723 = vmatpush2.msra.mxu0 0.0
  %724 = vmatprep.subr.mxu0 0.0
  %725 = vmatpush2.msra.mxu0 0.0
  %726 = vmatprep.subr.mxu0 0.0
  %727 = vmatpush2.msra.mxu0 0.0
  %728 = vmatprep.subr.mxu0 0.0
  %729 = vmatpush2.msra.mxu0 0.0
  %730 = vmatprep.subr.mxu0 0.0
  %731 = vmatpush2.msra.mxu0 0.0
  %732 = vmatprep.subr.mxu0 0.0
  %733 = vmatpush2.msra.mxu0 0.0
  %734 = vmatprep.mubr.f32.mxu0 0.0
  %735 = vmatmul.mubr.f32.gmra.mxu0 %v528
  %v736 = vpop.f32.mrf.mxu0
  %v737 = vadd.f32 %v43, %v736
  %v738 = vpop.f32.mrf.mxu0
  %739 = vdwg.mxu0
  %s740 = scalar_lea.vmem %s0, 4
  %v741 = vld [vmem:[%s740] sm:$0x3]
  %v742 = vadd.f32 %v741, %v597
  %v743 = vxor.u32 %v742, 2147483648
  %v744 = vmul.f32 %v743, 1.442695
  %v745 = vpow.pop %v744
  %v746 = vadd.f32 %v745, 1.0
  %v747 = vrcp.pop %v746
  %v748 = vmul.f32 1.0, %v747
  %s749 = scalar_lea.vmem %s1, 4
  %v750 = vld [vmem:[%s749] sm:$0x3]
  %v751 = vadd.f32 %v750, %v667
  %v752 = vxor.u32 %v751, 2147483648
  %v753 = vmul.f32 %v752, 1.442695
  %v754 = vpow.pop %v753
  %v755 = vadd.f32 %v754, 1.0
  %v756 = vrcp.pop %v755
  %v757 = vmul.f32 1.0, %v756
  %s758 = scalar_lea.vmem %s2, 4
  %v759 = vld [vmem:[%s758] sm:$0x3]
  %v760 = vmul.f32 %v748, %v737
  %v761 = vadd.f32 %v759, %v760
  %v762 = vtanh.pop %v761
  %v763 = vsub.f32 1.0, %v757
  %v764 = vmul.f32 %v763, %v762
  %v765 = vmul.f32 %v757, %v524
  %v766 = vadd.f32 %v764, %v765
  %s767 = scalar_lea.vmem %s7, 4
  %768 = vst.msk [vmem:[%s767] sm:$0x3] %vm283, %v766
  %v770 = vsel %vm45, %v766, 0
  %772 = vmatprep.subr.mxu0 0.0
  %773 = vmatpush1.msra.mxu0 0.0
  %774 = vmatprep.subr.mxu0 0.0
  %775 = vmatpush1.msra.mxu0 0.0
  %776 = vmatprep.subr.mxu0 0.0
  %777 = vmatpush1.msra.mxu0 0.0
  %778 = vmatprep.subr.mxu0 0.0
  %779 = vmatpush1.msra.mxu0 0.0
  %780 = vmatprep.subr.mxu0 0.0
  %781 = vmatpush1.msra.mxu0 0.0
  %782 = vmatprep.subr.mxu0 0.0
  %783 = vmatpush1.msra.mxu0 0.0
  %784 = vmatprep.subr.mxu0 0.0
  %785 = vmatpush1.msra.mxu0 0.0
  %786 = vmatprep.subr.mxu0 0.0
  %787 = vmatpush1.msra.mxu0 0.0
  %788 = vmatprep.subr.mxu0 0.0
  %789 = vmatpush1.msra.mxu0 0.0
  %790 = vmatprep.subr.mxu0 0.0
  %791 = vmatpush1.msra.mxu0 0.0
  %792 = vmatprep.subr.mxu0 0.0
  %793 = vmatpush1.msra.mxu0 0.0
  %794 = vmatprep.subr.mxu0 0.0
  %795 = vmatpush1.msra.mxu0 0.0
  %796 = vmatprep.subr.mxu0 0.0
  %797 = vmatpush1.msra.mxu0 %v29
  %798 = vmatprep.subr.mxu0 0.0
  %799 = vmatpush1.msra.mxu0 %v28
  %800 = vmatprep.subr.mxu0 0.0
  %801 = vmatpush1.msra.mxu0 %v27
  %802 = vmatprep.subr.mxu0 0.0
  %803 = vmatpush1.msra.mxu0 %v26
  %804 = vmatprep.subr.mxu0 0.0
  %805 = vmatpush2.msra.mxu0 0.0
  %806 = vmatprep.subr.mxu0 0.0
  %807 = vmatpush2.msra.mxu0 0.0
  %808 = vmatprep.subr.mxu0 0.0
  %809 = vmatpush2.msra.mxu0 0.0
  %810 = vmatprep.subr.mxu0 0.0
  %811 = vmatpush2.msra.mxu0 0.0
  %812 = vmatprep.subr.mxu0 0.0
  %813 = vmatpush2.msra.mxu0 0.0
  %814 = vmatprep.subr.mxu0 0.0
  %815 = vmatpush2.msra.mxu0 0.0
  %816 = vmatprep.subr.mxu0 0.0
  %817 = vmatpush2.msra.mxu0 0.0
  %818 = vmatprep.subr.mxu0 0.0
  %819 = vmatpush2.msra.mxu0 0.0
  %820 = vmatprep.subr.mxu0 0.0
  %821 = vmatpush2.msra.mxu0 0.0
  %822 = vmatprep.subr.mxu0 0.0
  %823 = vmatpush2.msra.mxu0 0.0
  %824 = vmatprep.subr.mxu0 0.0
  %825 = vmatpush2.msra.mxu0 0.0
  %826 = vmatprep.subr.mxu0 0.0
  %827 = vmatpush2.msra.mxu0 0.0
  %828 = vmatprep.subr.mxu0 0.0
  %829 = vmatpush2.msra.mxu0 0.0
  %830 = vmatprep.subr.mxu0 0.0
  %831 = vmatpush2.msra.mxu0 0.0
  %832 = vmatprep.subr.mxu0 0.0
  %833 = vmatpush2.msra.mxu0 0.0
  %834 = vmatprep.subr.mxu0 0.0
  %835 = vmatpush2.msra.mxu0 0.0
  %836 = vmatprep.mubr.f32.mxu0 0.0
  %837 = vmatmul.mubr.f32.gmra.mxu0 %v770
  %v838 = vpop.f32.mrf.mxu0
  %v839 = vadd.f32 0.0, %v838
  %v840 = vpop.f32.mrf.mxu0
  %841 = vdwg.mxu0
  %842 = vmatprep.subr.mxu0 0.0
  %843 = vmatpush1.msra.mxu0 0.0
  %844 = vmatprep.subr.mxu0 0.0
  %845 = vmatpush1.msra.mxu0 0.0
  %846 = vmatprep.subr.mxu0 0.0
  %847 = vmatpush1.msra.mxu0 0.0
  %848 = vmatprep.subr.mxu0 0.0
  %849 = vmatpush1.msra.mxu0 0.0
  %850 = vmatprep.subr.mxu0 0.0
  %851 = vmatpush1.msra.mxu0 0.0
  %852 = vmatprep.subr.mxu0 0.0
  %853 = vmatpush1.msra.mxu0 0.0
  %854 = vmatprep.subr.mxu0 0.0
  %855 = vmatpush1.msra.mxu0 0.0
  %856 = vmatprep.subr.mxu0 0.0
  %857 = vmatpush1.msra.mxu0 0.0
  %858 = vmatprep.subr.mxu0 0.0
  %859 = vmatpush1.msra.mxu0 0.0
  %860 = vmatprep.subr.mxu0 0.0
  %861 = vmatpush1.msra.mxu0 0.0
  %862 = vmatprep.subr.mxu0 0.0
  %863 = vmatpush1.msra.mxu0 0.0
  %864 = vmatprep.subr.mxu0 0.0
  %865 = vmatpush1.msra.mxu0 0.0
  %866 = vmatprep.subr.mxu0 0.0
  %867 = vmatpush1.msra.mxu0 %v33
  %868 = vmatprep.subr.mxu0 0.0
  %869 = vmatpush1.msra.mxu0 %v32
  %870 = vmatprep.subr.mxu0 0.0
  %871 = vmatpush1.msra.mxu0 %v31
  %872 = vmatprep.subr.mxu0 0.0
  %873 = vmatpush1.msra.mxu0 %v30
  %874 = vmatprep.subr.mxu0 0.0
  %875 = vmatpush2.msra.mxu0 0.0
  %876 = vmatprep.subr.mxu0 0.0
  %877 = vmatpush2.msra.mxu0 0.0
  %878 = vmatprep.subr.mxu0 0.0
  %879 = vmatpush2.msra.mxu0 0.0
  %880 = vmatprep.subr.mxu0 0.0
  %881 = vmatpush2.msra.mxu0 0.0
  %882 = vmatprep.subr.mxu0 0.0
  %883 = vmatpush2.msra.mxu0 0.0
  %884 = vmatprep.subr.mxu0 0.0
  %885 = vmatpush2.msra.mxu0 0.0
  %886 = vmatprep.subr.mxu0 0.0
  %887 = vmatpush2.msra.mxu0 0.0
  %888 = vmatprep.subr.mxu0 0.0
  %889 = vmatpush2.msra.mxu0 0.0
  %890 = vmatprep.subr.mxu0 0.0
  %891 = vmatpush2.msra.mxu0 0.0
  %892 = vmatprep.subr.mxu0 0.0
  %893 = vmatpush2.msra.mxu0 0.0
  %894 = vmatprep.subr.mxu0 0.0
  %895 = vmatpush2.msra.mxu0 0.0
  %896 = vmatprep.subr.mxu0 0.0
  %897 = vmatpush2.msra.mxu0 0.0
  %898 = vmatprep.subr.mxu0 0.0
  %899 = vmatpush2.msra.mxu0 0.0
  %900 = vmatprep.subr.mxu0 0.0
  %901 = vmatpush2.msra.mxu0 0.0
  %902 = vmatprep.subr.mxu0 0.0
  %903 = vmatpush2.msra.mxu0 0.0
  %904 = vmatprep.subr.mxu0 0.0
  %905 = vmatpush2.msra.mxu0 0.0
  %906 = vmatprep.mubr.f32.mxu0 0.0
  %907 = vmatmul.mubr.f32.gmra.mxu0 %v770
  %v908 = vpop.f32.mrf.mxu0
  %v909 = vadd.f32 0.0, %v908
  %v910 = vpop.f32.mrf.mxu0
  %911 = vdwg.mxu0
  %912 = vmatprep.subr.mxu0 0.0
  %913 = vmatpush1.msra.mxu0 0.0
  %914 = vmatprep.subr.mxu0 0.0
  %915 = vmatpush1.msra.mxu0 0.0
  %916 = vmatprep.subr.mxu0 0.0
  %917 = vmatpush1.msra.mxu0 0.0
  %918 = vmatprep.subr.mxu0 0.0
  %919 = vmatpush1.msra.mxu0 0.0
  %920 = vmatprep.subr.mxu0 0.0
  %921 = vmatpush1.msra.mxu0 0.0
  %922 = vmatprep.subr.mxu0 0.0
  %923 = vmatpush1.msra.mxu0 0.0
  %924 = vmatprep.subr.mxu0 0.0
  %925 = vmatpush1.msra.mxu0 0.0
  %926 = vmatprep.subr.mxu0 0.0
  %927 = vmatpush1.msra.mxu0 0.0
  %928 = vmatprep.subr.mxu0 0.0
  %929 = vmatpush1.msra.mxu0 0.0
  %930 = vmatprep.subr.mxu0 0.0
  %931 = vmatpush1.msra.mxu0 0.0
  %932 = vmatprep.subr.mxu0 0.0
  %933 = vmatpush1.msra.mxu0 0.0
  %934 = vmatprep.subr.mxu0 0.0
  %935 = vmatpush1.msra.mxu0 0.0
  %936 = vmatprep.subr.mxu0 0.0
  %937 = vmatpush1.msra.mxu0 %v37
  %938 = vmatprep.subr.mxu0 0.0
  %939 = vmatpush1.msra.mxu0 %v36
  %940 = vmatprep.subr.mxu0 0.0
  %941 = vmatpush1.msra.mxu0 %v35
  %942 = vmatprep.subr.mxu0 0.0
  %943 = vmatpush1.msra.mxu0 %v34
  %944 = vmatprep.subr.mxu0 0.0
  %945 = vmatpush2.msra.mxu0 0.0
  %946 = vmatprep.subr.mxu0 0.0
  %947 = vmatpush2.msra.mxu0 0.0
  %948 = vmatprep.subr.mxu0 0.0
  %949 = vmatpush2.msra.mxu0 0.0
  %950 = vmatprep.subr.mxu0 0.0
  %951 = vmatpush2.msra.mxu0 0.0
  %952 = vmatprep.subr.mxu0 0.0
  %953 = vmatpush2.msra.mxu0 0.0
  %954 = vmatprep.subr.mxu0 0.0
  %955 = vmatpush2.msra.mxu0 0.0
  %956 = vmatprep.subr.mxu0 0.0
  %957 = vmatpush2.msra.mxu0 0.0
  %958 = vmatprep.subr.mxu0 0.0
  %959 = vmatpush2.msra.mxu0 0.0
  %960 = vmatprep.subr.mxu0 0.0
  %961 = vmatpush2.msra.mxu0 0.0
  %962 = vmatprep.subr.mxu0 0.0
  %963 = vmatpush2.msra.mxu0 0.0
  %964 = vmatprep.subr.mxu0 0.0
  %965 = vmatpush2.msra.mxu0 0.0
  %966 = vmatprep.subr.mxu0 0.0
  %967 = vmatpush2.msra.mxu0 0.0
  %968 = vmatprep.subr.mxu0 0.0
  %969 = vmatpush2.msra.mxu0 0.0
  %970 = vmatprep.subr.mxu0 0.0
  %971 = vmatpush2.msra.mxu0 0.0
  %972 = vmatprep.subr.mxu0 0.0
  %973 = vmatpush2.msra.mxu0 0.0
  %974 = vmatprep.subr.mxu0 0.0
  %975 = vmatpush2.msra.mxu0 0.0
  %976 = vmatprep.mubr.f32.mxu0 0.0
  %977 = vmatmul.mubr.f32.gmra.mxu0 %v770
  %v978 = vpop.f32.mrf.mxu0
  %v979 = vadd.f32 %v43, %v978
  %v980 = vpop.f32.mrf.mxu0
  %981 = vdwg.mxu0
  %s982 = scalar_lea.vmem %s0, 6
  %v983 = vld [vmem:[%s982] sm:$0x3]
  %v984 = vadd.f32 %v983, %v839
  %v985 = vxor.u32 %v984, 2147483648
  %v986 = vmul.f32 %v985, 1.442695
  %v987 = vpow.pop %v986
  %v988 = vadd.f32 %v987, 1.0
  %v989 = vrcp.pop %v988
  %v990 = vmul.f32 1.0, %v989
  %s991 = scalar_lea.vmem %s1, 6
  %v992 = vld [vmem:[%s991] sm:$0x3]
  %v993 = vadd.f32 %v992, %v909
  %v994 = vxor.u32 %v993, 2147483648
  %v995 = vmul.f32 %v994, 1.442695
  %v996 = vpow.pop %v995
  %v997 = vadd.f32 %v996, 1.0
  %v998 = vrcp.pop %v997
  %v999 = vmul.f32 1.0, %v998
  %s1000 = scalar_lea.vmem %s2, 6
  %v1001 = vld [vmem:[%s1000] sm:$0x3]
  %v1002 = vmul.f32 %v990, %v979
  %v1003 = vadd.f32 %v1001, %v1002
  %v1004 = vtanh.pop %v1003
  %v1005 = vsub.f32 1.0, %v999
  %v1006 = vmul.f32 %v1005, %v1004
  %v1007 = vmul.f32 %v999, %v766
  %v1008 = vadd.f32 %v1006, %v1007
  %s1009 = scalar_lea.vmem %s7, 6
  %1010 = vst.msk [vmem:[%s1009] sm:$0x3] %vm283, %v1008
  %v1012 = vsel %vm45, %v1008, 0
  %1014 = vmatprep.subr.mxu0 0.0
  %1015 = vmatpush1.msra.mxu0 0.0
  %1016 = vmatprep.subr.mxu0 0.0
  %1017 = vmatpush1.msra.mxu0 0.0
  %1018 = vmatprep.subr.mxu0 0.0
  %1019 = vmatpush1.msra.mxu0 0.0
  %1020 = vmatprep.subr.mxu0 0.0
  %1021 = vmatpush1.msra.mxu0 0.0
  %1022 = vmatprep.subr.mxu0 0.0
  %1023 = vmatpush1.msra.mxu0 0.0
  %1024 = vmatprep.subr.mxu0 0.0
  %1025 = vmatpush1.msra.mxu0 0.0
  %1026 = vmatprep.subr.mxu0 0.0
  %1027 = vmatpush1.msra.mxu0 0.0
  %1028 = vmatprep.subr.mxu0 0.0
  %1029 = vmatpush1.msra.mxu0 0.0
  %1030 = vmatprep.subr.mxu0 0.0
  %1031 = vmatpush1.msra.mxu0 0.0
  %1032 = vmatprep.subr.mxu0 0.0
  %1033 = vmatpush1.msra.mxu0 0.0
  %1034 = vmatprep.subr.mxu0 0.0
  %1035 = vmatpush1.msra.mxu0 0.0
  %1036 = vmatprep.subr.mxu0 0.0
  %1037 = vmatpush1.msra.mxu0 0.0
  %1038 = vmatprep.subr.mxu0 0.0
  %1039 = vmatpush1.msra.mxu0 %v29
  %1040 = vmatprep.subr.mxu0 0.0
  %1041 = vmatpush1.msra.mxu0 %v28
  %1042 = vmatprep.subr.mxu0 0.0
  %1043 = vmatpush1.msra.mxu0 %v27
  %1044 = vmatprep.subr.mxu0 0.0
  %1045 = vmatpush1.msra.mxu0 %v26
  %1046 = vmatprep.subr.mxu0 0.0
  %1047 = vmatpush2.msra.mxu0 0.0
  %1048 = vmatprep.subr.mxu0 0.0
  %1049 = vmatpush2.msra.mxu0 0.0
  %1050 = vmatprep.subr.mxu0 0.0
  %1051 = vmatpush2.msra.mxu0 0.0
  %1052 = vmatprep.subr.mxu0 0.0
  %1053 = vmatpush2.msra.mxu0 0.0
  %1054 = vmatprep.subr.mxu0 0.0
  %1055 = vmatpush2.msra.mxu0 0.0
  %1056 = vmatprep.subr.mxu0 0.0
  %1057 = vmatpush2.msra.mxu0 0.0
  %1058 = vmatprep.subr.mxu0 0.0
  %1059 = vmatpush2.msra.mxu0 0.0
  %1060 = vmatprep.subr.mxu0 0.0
  %1061 = vmatpush2.msra.mxu0 0.0
  %1062 = vmatprep.subr.mxu0 0.0
  %1063 = vmatpush2.msra.mxu0 0.0
  %1064 = vmatprep.subr.mxu0 0.0
  %1065 = vmatpush2.msra.mxu0 0.0
  %1066 = vmatprep.subr.mxu0 0.0
  %1067 = vmatpush2.msra.mxu0 0.0
  %1068 = vmatprep.subr.mxu0 0.0
  %1069 = vmatpush2.msra.mxu0 0.0
  %1070 = vmatprep.subr.mxu0 0.0
  %1071 = vmatpush2.msra.mxu0 0.0
  %1072 = vmatprep.subr.mxu0 0.0
  %1073 = vmatpush2.msra.mxu0 0.0
  %1074 = vmatprep.subr.mxu0 0.0
  %1075 = vmatpush2.msra.mxu0 0.0
  %1076 = vmatprep.subr.mxu0 0.0
  %1077 = vmatpush2.msra.mxu0 0.0
  %1078 = vmatprep.mubr.f32.mxu0 0.0
  %1079 = vmatmul.mubr.f32.gmra.mxu0 %v1012
  %v1080 = vpop.f32.mrf.mxu0
  %v1081 = vadd.f32 0.0, %v1080
  %v1082 = vpop.f32.mrf.mxu0
  %1083 = vdwg.mxu0
  %1084 = vmatprep.subr.mxu0 0.0
  %1085 = vmatpush1.msra.mxu0 0.0
  %1086 = vmatprep.subr.mxu0 0.0
  %1087 = vmatpush1.msra.mxu0 0.0
  %1088 = vmatprep.subr.mxu0 0.0
  %1089 = vmatpush1.msra.mxu0 0.0
  %1090 = vmatprep.subr.mxu0 0.0
  %1091 = vmatpush1.msra.mxu0 0.0
  %1092 = vmatprep.subr.mxu0 0.0
  %1093 = vmatpush1.msra.mxu0 0.0
  %1094 = vmatprep.subr.mxu0 0.0
  %1095 = vmatpush1.msra.mxu0 0.0
  %1096 = vmatprep.subr.mxu0 0.0
  %1097 = vmatpush1.msra.mxu0 0.0
  %1098 = vmatprep.subr.mxu0 0.0
  %1099 = vmatpush1.msra.mxu0 0.0
  %1100 = vmatprep.subr.mxu0 0.0
  %1101 = vmatpush1.msra.mxu0 0.0
  %1102 = vmatprep.subr.mxu0 0.0
  %1103 = vmatpush1.msra.mxu0 0.0
  %1104 = vmatprep.subr.mxu0 0.0
  %1105 = vmatpush1.msra.mxu0 0.0
  %1106 = vmatprep.subr.mxu0 0.0
  %1107 = vmatpush1.msra.mxu0 0.0
  %1108 = vmatprep.subr.mxu0 0.0
  %1109 = vmatpush1.msra.mxu0 %v33
  %1110 = vmatprep.subr.mxu0 0.0
  %1111 = vmatpush1.msra.mxu0 %v32
  %1112 = vmatprep.subr.mxu0 0.0
  %1113 = vmatpush1.msra.mxu0 %v31
  %1114 = vmatprep.subr.mxu0 0.0
  %1115 = vmatpush1.msra.mxu0 %v30
  %1116 = vmatprep.subr.mxu0 0.0
  %1117 = vmatpush2.msra.mxu0 0.0
  %1118 = vmatprep.subr.mxu0 0.0
  %1119 = vmatpush2.msra.mxu0 0.0
  %1120 = vmatprep.subr.mxu0 0.0
  %1121 = vmatpush2.msra.mxu0 0.0
  %1122 = vmatprep.subr.mxu0 0.0
  %1123 = vmatpush2.msra.mxu0 0.0
  %1124 = vmatprep.subr.mxu0 0.0
  %1125 = vmatpush2.msra.mxu0 0.0
  %1126 = vmatprep.subr.mxu0 0.0
  %1127 = vmatpush2.msra.mxu0 0.0
  %1128 = vmatprep.subr.mxu0 0.0
  %1129 = vmatpush2.msra.mxu0 0.0
  %1130 = vmatprep.subr.mxu0 0.0
  %1131 = vmatpush2.msra.mxu0 0.0
  %1132 = vmatprep.subr.mxu0 0.0
  %1133 = vmatpush2.msra.mxu0 0.0
  %1134 = vmatprep.subr.mxu0 0.0
  %1135 = vmatpush2.msra.mxu0 0.0
  %1136 = vmatprep.subr.mxu0 0.0
  %1137 = vmatpush2.msra.mxu0 0.0
  %1138 = vmatprep.subr.mxu0 0.0
  %1139 = vmatpush2.msra.mxu0 0.0
  %1140 = vmatprep.subr.mxu0 0.0
  %1141 = vmatpush2.msra.mxu0 0.0
  %1142 = vmatprep.subr.mxu0 0.0
  %1143 = vmatpush2.msra.mxu0 0.0
  %1144 = vmatprep.subr.mxu0 0.0
  %1145 = vmatpush2.msra.mxu0 0.0
  %1146 = vmatprep.subr.mxu0 0.0
  %1147 = vmatpush2.msra.mxu0 0.0
  %1148 = vmatprep.mubr.f32.mxu0 0.0
  %1149 = vmatmul.mubr.f32.gmra.mxu0 %v1012
  %v1150 = vpop.f32.mrf.mxu0
  %v1151 = vadd.f32 0.0, %v1150
  %v1152 = vpop.f32.mrf.mxu0
  %1153 = vdwg.mxu0
  %1154 = vmatprep.subr.mxu0 0.0
  %1155 = vmatpush1.msra.mxu0 0.0
  %1156 = vmatprep.subr.mxu0 0.0
  %1157 = vmatpush1.msra.mxu0 0.0
  %1158 = vmatprep.subr.mxu0 0.0
  %1159 = vmatpush1.msra.mxu0 0.0
  %1160 = vmatprep.subr.mxu0 0.0
  %1161 = vmatpush1.msra.mxu0 0.0
  %1162 = vmatprep.subr.mxu0 0.0
  %1163 = vmatpush1.msra.mxu0 0.0
  %1164 = vmatprep.subr.mxu0 0.0
  %1165 = vmatpush1.msra.mxu0 0.0
  %1166 = vmatprep.subr.mxu0 0.0
  %1167 = vmatpush1.msra.mxu0 0.0
  %1168 = vmatprep.subr.mxu0 0.0
  %1169 = vmatpush1.msra.mxu0 0.0
  %1170 = vmatprep.subr.mxu0 0.0
  %1171 = vmatpush1.msra.mxu0 0.0
  %1172 = vmatprep.subr.mxu0 0.0
  %1173 = vmatpush1.msra.mxu0 0.0
  %1174 = vmatprep.subr.mxu0 0.0
  %1175 = vmatpush1.msra.mxu0 0.0
  %1176 = vmatprep.subr.mxu0 0.0
  %1177 = vmatpush1.msra.mxu0 0.0
  %1178 = vmatprep.subr.mxu0 0.0
  %1179 = vmatpush1.msra.mxu0 %v37
  %1180 = vmatprep.subr.mxu0 0.0
  %1181 = vmatpush1.msra.mxu0 %v36
  %1182 = vmatprep.subr.mxu0 0.0
  %1183 = vmatpush1.msra.mxu0 %v35
  %1184 = vmatprep.subr.mxu0 0.0
  %1185 = vmatpush1.msra.mxu0 %v34
  %1186 = vmatprep.subr.mxu0 0.0
  %1187 = vmatpush2.msra.mxu0 0.0
  %1188 = vmatprep.subr.mxu0 0.0
  %1189 = vmatpush2.msra.mxu0 0.0
  %1190 = vmatprep.subr.mxu0 0.0
  %1191 = vmatpush2.msra.mxu0 0.0
  %1192 = vmatprep.subr.mxu0 0.0
  %1193 = vmatpush2.msra.mxu0 0.0
  %1194 = vmatprep.subr.mxu0 0.0
  %1195 = vmatpush2.msra.mxu0 0.0
  %1196 = vmatprep.subr.mxu0 0.0
  %1197 = vmatpush2.msra.mxu0 0.0
  %1198 = vmatprep.subr.mxu0 0.0
  %1199 = vmatpush2.msra.mxu0 0.0
  %1200 = vmatprep.subr.mxu0 0.0
  %1201 = vmatpush2.msra.mxu0 0.0
  %1202 = vmatprep.subr.mxu0 0.0
  %1203 = vmatpush2.msra.mxu0 0.0
  %1204 = vmatprep.subr.mxu0 0.0
  %1205 = vmatpush2.msra.mxu0 0.0
  %1206 = vmatprep.subr.mxu0 0.0
  %1207 = vmatpush2.msra.mxu0 0.0
  %1208 = vmatprep.subr.mxu0 0.0
  %1209 = vmatpush2.msra.mxu0 0.0
  %1210 = vmatprep.subr.mxu0 0.0
  %1211 = vmatpush2.msra.mxu0 0.0
  %1212 = vmatprep.subr.mxu0 0.0
  %1213 = vmatpush2.msra.mxu0 0.0
  %1214 = vmatprep.subr.mxu0 0.0
  %1215 = vmatpush2.msra.mxu0 0.0
  %1216 = vmatprep.subr.mxu0 0.0
  %1217 = vmatpush2.msra.mxu0 0.0
  %1218 = vmatprep.mubr.f32.mxu0 0.0
  %1219 = vmatmul.mubr.f32.gmra.mxu0 %v1012
  %v1220 = vpop.f32.mrf.mxu0
  %v1221 = vadd.f32 %v43, %v1220
  %v1222 = vpop.f32.mrf.mxu0
  %1223 = vdwg.mxu0
  %s1224 = scalar_lea.vmem %s0, 8
  %v1225 = vld [vmem:[%s1224] sm:$0x3]
  %v1226 = vadd.f32 %v1225, %v1081
  %v1227 = vxor.u32 %v1226, 2147483648
  %v1228 = vmul.f32 %v1227, 1.442695
  %v1229 = vpow.pop %v1228
  %v1230 = vadd.f32 %v1229, 1.0
  %v1231 = vrcp.pop %v1230
  %v1232 = vmul.f32 1.0, %v1231
  %s1233 = scalar_lea.vmem %s1, 8
  %v1234 = vld [vmem:[%s1233] sm:$0x3]
  %v1235 = vadd.f32 %v1234, %v1151
  %v1236 = vxor.u32 %v1235, 2147483648
  %v1237 = vmul.f32 %v1236, 1.442695
  %v1238 = vpow.pop %v1237
  %v1239 = vadd.f32 %v1238, 1.0
  %v1240 = vrcp.pop %v1239
  %v1241 = vmul.f32 1.0, %v1240
  %s1242 = scalar_lea.vmem %s2, 8
  %v1243 = vld [vmem:[%s1242] sm:$0x3]
  %v1244 = vmul.f32 %v1232, %v1221
  %v1245 = vadd.f32 %v1243, %v1244
  %v1246 = vtanh.pop %v1245
  %v1247 = vsub.f32 1.0, %v1241
  %v1248 = vmul.f32 %v1247, %v1246
  %v1249 = vmul.f32 %v1241, %v1008
  %v1250 = vadd.f32 %v1248, %v1249
  %s1251 = scalar_lea.vmem %s7, 8
  %1252 = vst.msk [vmem:[%s1251] sm:$0x3] %vm283, %v1250
  %v1254 = vsel %vm45, %v1250, 0
  %1256 = vmatprep.subr.mxu0 0.0
  %1257 = vmatpush1.msra.mxu0 0.0
  %1258 = vmatprep.subr.mxu0 0.0
  %1259 = vmatpush1.msra.mxu0 0.0
  %1260 = vmatprep.subr.mxu0 0.0
  %1261 = vmatpush1.msra.mxu0 0.0
  %1262 = vmatprep.subr.mxu0 0.0
  %1263 = vmatpush1.msra.mxu0 0.0
  %1264 = vmatprep.subr.mxu0 0.0
  %1265 = vmatpush1.msra.mxu0 0.0
  %1266 = vmatprep.subr.mxu0 0.0
  %1267 = vmatpush1.msra.mxu0 0.0
  %1268 = vmatprep.subr.mxu0 0.0
  %1269 = vmatpush1.msra.mxu0 0.0
  %1270 = vmatprep.subr.mxu0 0.0
  %1271 = vmatpush1.msra.mxu0 0.0
  %1272 = vmatprep.subr.mxu0 0.0
  %1273 = vmatpush1.msra.mxu0 0.0
  %1274 = vmatprep.subr.mxu0 0.0
  %1275 = vmatpush1.msra.mxu0 0.0
  %1276 = vmatprep.subr.mxu0 0.0
  %1277 = vmatpush1.msra.mxu0 0.0
  %1278 = vmatprep.subr.mxu0 0.0
  %1279 = vmatpush1.msra.mxu0 0.0
  %1280 = vmatprep.subr.mxu0 0.0
  %1281 = vmatpush1.msra.mxu0 %v29
  %1282 = vmatprep.subr.mxu0 0.0
  %1283 = vmatpush1.msra.mxu0 %v28
  %1284 = vmatprep.subr.mxu0 0.0
  %1285 = vmatpush1.msra.mxu0 %v27
  %1286 = vmatprep.subr.mxu0 0.0
  %1287 = vmatpush1.msra.mxu0 %v26
  %1288 = vmatprep.subr.mxu0 0.0
  %1289 = vmatpush2.msra.mxu0 0.0
  %1290 = vmatprep.subr.mxu0 0.0
  %1291 = vmatpush2.msra.mxu0 0.0
  %1292 = vmatprep.subr.mxu0 0.0
  %1293 = vmatpush2.msra.mxu0 0.0
  %1294 = vmatprep.subr.mxu0 0.0
  %1295 = vmatpush2.msra.mxu0 0.0
  %1296 = vmatprep.subr.mxu0 0.0
  %1297 = vmatpush2.msra.mxu0 0.0
  %1298 = vmatprep.subr.mxu0 0.0
  %1299 = vmatpush2.msra.mxu0 0.0
  %1300 = vmatprep.subr.mxu0 0.0
  %1301 = vmatpush2.msra.mxu0 0.0
  %1302 = vmatprep.subr.mxu0 0.0
  %1303 = vmatpush2.msra.mxu0 0.0
  %1304 = vmatprep.subr.mxu0 0.0
  %1305 = vmatpush2.msra.mxu0 0.0
  %1306 = vmatprep.subr.mxu0 0.0
  %1307 = vmatpush2.msra.mxu0 0.0
  %1308 = vmatprep.subr.mxu0 0.0
  %1309 = vmatpush2.msra.mxu0 0.0
  %1310 = vmatprep.subr.mxu0 0.0
  %1311 = vmatpush2.msra.mxu0 0.0
  %1312 = vmatprep.subr.mxu0 0.0
  %1313 = vmatpush2.msra.mxu0 0.0
  %1314 = vmatprep.subr.mxu0 0.0
  %1315 = vmatpush2.msra.mxu0 0.0
  %1316 = vmatprep.subr.mxu0 0.0
  %1317 = vmatpush2.msra.mxu0 0.0
  %1318 = vmatprep.subr.mxu0 0.0
  %1319 = vmatpush2.msra.mxu0 0.0
  %1320 = vmatprep.mubr.f32.mxu0 0.0
  %1321 = vmatmul.mubr.f32.gmra.mxu0 %v1254
  %v1322 = vpop.f32.mrf.mxu0
  %v1323 = vadd.f32 0.0, %v1322
  %v1324 = vpop.f32.mrf.mxu0
  %1325 = vdwg.mxu0
  %1326 = vmatprep.subr.mxu0 0.0
  %1327 = vmatpush1.msra.mxu0 0.0
  %1328 = vmatprep.subr.mxu0 0.0
  %1329 = vmatpush1.msra.mxu0 0.0
  %1330 = vmatprep.subr.mxu0 0.0
  %1331 = vmatpush1.msra.mxu0 0.0
  %1332 = vmatprep.subr.mxu0 0.0
  %1333 = vmatpush1.msra.mxu0 0.0
  %1334 = vmatprep.subr.mxu0 0.0
  %1335 = vmatpush1.msra.mxu0 0.0
  %1336 = vmatprep.subr.mxu0 0.0
  %1337 = vmatpush1.msra.mxu0 0.0
  %1338 = vmatprep.subr.mxu0 0.0
  %1339 = vmatpush1.msra.mxu0 0.0
  %1340 = vmatprep.subr.mxu0 0.0
  %1341 = vmatpush1.msra.mxu0 0.0
  %1342 = vmatprep.subr.mxu0 0.0
  %1343 = vmatpush1.msra.mxu0 0.0
  %1344 = vmatprep.subr.mxu0 0.0
  %1345 = vmatpush1.msra.mxu0 0.0
  %1346 = vmatprep.subr.mxu0 0.0
  %1347 = vmatpush1.msra.mxu0 0.0
  %1348 = vmatprep.subr.mxu0 0.0
  %1349 = vmatpush1.msra.mxu0 0.0
  %1350 = vmatprep.subr.mxu0 0.0
  %1351 = vmatpush1.msra.mxu0 %v33
  %1352 = vmatprep.subr.mxu0 0.0
  %1353 = vmatpush1.msra.mxu0 %v32
  %1354 = vmatprep.subr.mxu0 0.0
  %1355 = vmatpush1.msra.mxu0 %v31
  %1356 = vmatprep.subr.mxu0 0.0
  %1357 = vmatpush1.msra.mxu0 %v30
  %1358 = vmatprep.subr.mxu0 0.0
  %1359 = vmatpush2.msra.mxu0 0.0
  %1360 = vmatprep.subr.mxu0 0.0
  %1361 = vmatpush2.msra.mxu0 0.0
  %1362 = vmatprep.subr.mxu0 0.0
  %1363 = vmatpush2.msra.mxu0 0.0
  %1364 = vmatprep.subr.mxu0 0.0
  %1365 = vmatpush2.msra.mxu0 0.0
  %1366 = vmatprep.subr.mxu0 0.0
  %1367 = vmatpush2.msra.mxu0 0.0
  %1368 = vmatprep.subr.mxu0 0.0
  %1369 = vmatpush2.msra.mxu0 0.0
  %1370 = vmatprep.subr.mxu0 0.0
  %1371 = vmatpush2.msra.mxu0 0.0
  %1372 = vmatprep.subr.mxu0 0.0
  %1373 = vmatpush2.msra.mxu0 0.0
  %1374 = vmatprep.subr.mxu0 0.0
  %1375 = vmatpush2.msra.mxu0 0.0
  %1376 = vmatprep.subr.mxu0 0.0
  %1377 = vmatpush2.msra.mxu0 0.0
  %1378 = vmatprep.subr.mxu0 0.0
  %1379 = vmatpush2.msra.mxu0 0.0
  %1380 = vmatprep.subr.mxu0 0.0
  %1381 = vmatpush2.msra.mxu0 0.0
  %1382 = vmatprep.subr.mxu0 0.0
  %1383 = vmatpush2.msra.mxu0 0.0
  %1384 = vmatprep.subr.mxu0 0.0
  %1385 = vmatpush2.msra.mxu0 0.0
  %1386 = vmatprep.subr.mxu0 0.0
  %1387 = vmatpush2.msra.mxu0 0.0
  %1388 = vmatprep.subr.mxu0 0.0
  %1389 = vmatpush2.msra.mxu0 0.0
  %1390 = vmatprep.mubr.f32.mxu0 0.0
  %1391 = vmatmul.mubr.f32.gmra.mxu0 %v1254
  %v1392 = vpop.f32.mrf.mxu0
  %v1393 = vadd.f32 0.0, %v1392
  %v1394 = vpop.f32.mrf.mxu0
  %1395 = vdwg.mxu0
  %1396 = vmatprep.subr.mxu0 0.0
  %1397 = vmatpush1.msra.mxu0 0.0
  %1398 = vmatprep.subr.mxu0 0.0
  %1399 = vmatpush1.msra.mxu0 0.0
  %1400 = vmatprep.subr.mxu0 0.0
  %1401 = vmatpush1.msra.mxu0 0.0
  %1402 = vmatprep.subr.mxu0 0.0
  %1403 = vmatpush1.msra.mxu0 0.0
  %1404 = vmatprep.subr.mxu0 0.0
  %1405 = vmatpush1.msra.mxu0 0.0
  %1406 = vmatprep.subr.mxu0 0.0
  %1407 = vmatpush1.msra.mxu0 0.0
  %1408 = vmatprep.subr.mxu0 0.0
  %1409 = vmatpush1.msra.mxu0 0.0
  %1410 = vmatprep.subr.mxu0 0.0
  %1411 = vmatpush1.msra.mxu0 0.0
  %1412 = vmatprep.subr.mxu0 0.0
  %1413 = vmatpush1.msra.mxu0 0.0
  %1414 = vmatprep.subr.mxu0 0.0
  %1415 = vmatpush1.msra.mxu0 0.0
  %1416 = vmatprep.subr.mxu0 0.0
  %1417 = vmatpush1.msra.mxu0 0.0
  %1418 = vmatprep.subr.mxu0 0.0
  %1419 = vmatpush1.msra.mxu0 0.0
  %1420 = vmatprep.subr.mxu0 0.0
  %1421 = vmatpush1.msra.mxu0 %v37
  %1422 = vmatprep.subr.mxu0 0.0
  %1423 = vmatpush1.msra.mxu0 %v36
  %1424 = vmatprep.subr.mxu0 0.0
  %1425 = vmatpush1.msra.mxu0 %v35
  %1426 = vmatprep.subr.mxu0 0.0
  %1427 = vmatpush1.msra.mxu0 %v34
  %1428 = vmatprep.subr.mxu0 0.0
  %1429 = vmatpush2.msra.mxu0 0.0
  %1430 = vmatprep.subr.mxu0 0.0
  %1431 = vmatpush2.msra.mxu0 0.0
  %1432 = vmatprep.subr.mxu0 0.0
  %1433 = vmatpush2.msra.mxu0 0.0
  %1434 = vmatprep.subr.mxu0 0.0
  %1435 = vmatpush2.msra.mxu0 0.0
  %1436 = vmatprep.subr.mxu0 0.0
  %1437 = vmatpush2.msra.mxu0 0.0
  %1438 = vmatprep.subr.mxu0 0.0
  %1439 = vmatpush2.msra.mxu0 0.0
  %1440 = vmatprep.subr.mxu0 0.0
  %1441 = vmatpush2.msra.mxu0 0.0
  %1442 = vmatprep.subr.mxu0 0.0
  %1443 = vmatpush2.msra.mxu0 0.0
  %1444 = vmatprep.subr.mxu0 0.0
  %1445 = vmatpush2.msra.mxu0 0.0
  %1446 = vmatprep.subr.mxu0 0.0
  %1447 = vmatpush2.msra.mxu0 0.0
  %1448 = vmatprep.subr.mxu0 0.0
  %1449 = vmatpush2.msra.mxu0 0.0
  %1450 = vmatprep.subr.mxu0 0.0
  %1451 = vmatpush2.msra.mxu0 0.0
  %1452 = vmatprep.subr.mxu0 0.0
  %1453 = vmatpush2.msra.mxu0 0.0
  %1454 = vmatprep.subr.mxu0 0.0
  %1455 = vmatpush2.msra.mxu0 0.0
  %1456 = vmatprep.subr.mxu0 0.0
  %1457 = vmatpush2.msra.mxu0 0.0
  %1458 = vmatprep.subr.mxu0 0.0
  %1459 = vmatpush2.msra.mxu0 0.0
  %1460 = vmatprep.mubr.f32.mxu0 0.0
  %1461 = vmatmul.mubr.f32.gmra.mxu0 %v1254
  %v1462 = vpop.f32.mrf.mxu0
  %v1463 = vadd.f32 %v43, %v1462
  %v1464 = vpop.f32.mrf.mxu0
  %1465 = vdwg.mxu0
  %s1466 = scalar_lea.vmem %s0, 10
  %v1467 = vld [vmem:[%s1466] sm:$0x3]
  %v1468 = vadd.f32 %v1467, %v1323
  %v1469 = vxor.u32 %v1468, 2147483648
  %v1470 = vmul.f32 %v1469, 1.442695
  %v1471 = vpow.pop %v1470
  %v1472 = vadd.f32 %v1471, 1.0
  %v1473 = vrcp.pop %v1472
  %v1474 = vmul.f32 1.0, %v1473
  %s1475 = scalar_lea.vmem %s1, 10
  %v1476 = vld [vmem:[%s1475] sm:$0x3]
  %v1477 = vadd.f32 %v1476, %v1393
  %v1478 = vxor.u32 %v1477, 2147483648
  %v1479 = vmul.f32 %v1478, 1.442695
  %v1480 = vpow.pop %v1479
  %v1481 = vadd.f32 %v1480, 1.0
  %v1482 = vrcp.pop %v1481
  %v1483 = vmul.f32 1.0, %v1482
  %s1484 = scalar_lea.vmem %s2, 10
  %v1485 = vld [vmem:[%s1484] sm:$0x3]
  %v1486 = vmul.f32 %v1474, %v1463
  %v1487 = vadd.f32 %v1485, %v1486
  %v1488 = vtanh.pop %v1487
  %v1489 = vsub.f32 1.0, %v1483
  %v1490 = vmul.f32 %v1489, %v1488
  %v1491 = vmul.f32 %v1483, %v1250
  %v1492 = vadd.f32 %v1490, %v1491
  %s1493 = scalar_lea.vmem %s7, 10
  %1494 = vst.msk [vmem:[%s1493] sm:$0x3] %vm283, %v1492
  %v1496 = vsel %vm45, %v1492, 0
  %1498 = vmatprep.subr.mxu0 0.0
  %1499 = vmatpush1.msra.mxu0 0.0
  %1500 = vmatprep.subr.mxu0 0.0
  %1501 = vmatpush1.msra.mxu0 0.0
  %1502 = vmatprep.subr.mxu0 0.0
  %1503 = vmatpush1.msra.mxu0 0.0
  %1504 = vmatprep.subr.mxu0 0.0
  %1505 = vmatpush1.msra.mxu0 0.0
  %1506 = vmatprep.subr.mxu0 0.0
  %1507 = vmatpush1.msra.mxu0 0.0
  %1508 = vmatprep.subr.mxu0 0.0
  %1509 = vmatpush1.msra.mxu0 0.0
  %1510 = vmatprep.subr.mxu0 0.0
  %1511 = vmatpush1.msra.mxu0 0.0
  %1512 = vmatprep.subr.mxu0 0.0
  %1513 = vmatpush1.msra.mxu0 0.0
  %1514 = vmatprep.subr.mxu0 0.0
  %1515 = vmatpush1.msra.mxu0 0.0
  %1516 = vmatprep.subr.mxu0 0.0
  %1517 = vmatpush1.msra.mxu0 0.0
  %1518 = vmatprep.subr.mxu0 0.0
  %1519 = vmatpush1.msra.mxu0 0.0
  %1520 = vmatprep.subr.mxu0 0.0
  %1521 = vmatpush1.msra.mxu0 0.0
  %1522 = vmatprep.subr.mxu0 0.0
  %1523 = vmatpush1.msra.mxu0 %v29
  %1524 = vmatprep.subr.mxu0 0.0
  %1525 = vmatpush1.msra.mxu0 %v28
  %1526 = vmatprep.subr.mxu0 0.0
  %1527 = vmatpush1.msra.mxu0 %v27
  %1528 = vmatprep.subr.mxu0 0.0
  %1529 = vmatpush1.msra.mxu0 %v26
  %1530 = vmatprep.subr.mxu0 0.0
  %1531 = vmatpush2.msra.mxu0 0.0
  %1532 = vmatprep.subr.mxu0 0.0
  %1533 = vmatpush2.msra.mxu0 0.0
  %1534 = vmatprep.subr.mxu0 0.0
  %1535 = vmatpush2.msra.mxu0 0.0
  %1536 = vmatprep.subr.mxu0 0.0
  %1537 = vmatpush2.msra.mxu0 0.0
  %1538 = vmatprep.subr.mxu0 0.0
  %1539 = vmatpush2.msra.mxu0 0.0
  %1540 = vmatprep.subr.mxu0 0.0
  %1541 = vmatpush2.msra.mxu0 0.0
  %1542 = vmatprep.subr.mxu0 0.0
  %1543 = vmatpush2.msra.mxu0 0.0
  %1544 = vmatprep.subr.mxu0 0.0
  %1545 = vmatpush2.msra.mxu0 0.0
  %1546 = vmatprep.subr.mxu0 0.0
  %1547 = vmatpush2.msra.mxu0 0.0
  %1548 = vmatprep.subr.mxu0 0.0
  %1549 = vmatpush2.msra.mxu0 0.0
  %1550 = vmatprep.subr.mxu0 0.0
  %1551 = vmatpush2.msra.mxu0 0.0
  %1552 = vmatprep.subr.mxu0 0.0
  %1553 = vmatpush2.msra.mxu0 0.0
  %1554 = vmatprep.subr.mxu0 0.0
  %1555 = vmatpush2.msra.mxu0 0.0
  %1556 = vmatprep.subr.mxu0 0.0
  %1557 = vmatpush2.msra.mxu0 0.0
  %1558 = vmatprep.subr.mxu0 0.0
  %1559 = vmatpush2.msra.mxu0 0.0
  %1560 = vmatprep.subr.mxu0 0.0
  %1561 = vmatpush2.msra.mxu0 0.0
  %1562 = vmatprep.mubr.f32.mxu0 0.0
  %1563 = vmatmul.mubr.f32.gmra.mxu0 %v1496
  %v1564 = vpop.f32.mrf.mxu0
  %v1565 = vadd.f32 0.0, %v1564
  %v1566 = vpop.f32.mrf.mxu0
  %1567 = vdwg.mxu0
  %1568 = vmatprep.subr.mxu0 0.0
  %1569 = vmatpush1.msra.mxu0 0.0
  %1570 = vmatprep.subr.mxu0 0.0
  %1571 = vmatpush1.msra.mxu0 0.0
  %1572 = vmatprep.subr.mxu0 0.0
  %1573 = vmatpush1.msra.mxu0 0.0
  %1574 = vmatprep.subr.mxu0 0.0
  %1575 = vmatpush1.msra.mxu0 0.0
  %1576 = vmatprep.subr.mxu0 0.0
  %1577 = vmatpush1.msra.mxu0 0.0
  %1578 = vmatprep.subr.mxu0 0.0
  %1579 = vmatpush1.msra.mxu0 0.0
  %1580 = vmatprep.subr.mxu0 0.0
  %1581 = vmatpush1.msra.mxu0 0.0
  %1582 = vmatprep.subr.mxu0 0.0
  %1583 = vmatpush1.msra.mxu0 0.0
  %1584 = vmatprep.subr.mxu0 0.0
  %1585 = vmatpush1.msra.mxu0 0.0
  %1586 = vmatprep.subr.mxu0 0.0
  %1587 = vmatpush1.msra.mxu0 0.0
  %1588 = vmatprep.subr.mxu0 0.0
  %1589 = vmatpush1.msra.mxu0 0.0
  %1590 = vmatprep.subr.mxu0 0.0
  %1591 = vmatpush1.msra.mxu0 0.0
  %1592 = vmatprep.subr.mxu0 0.0
  %1593 = vmatpush1.msra.mxu0 %v33
  %1594 = vmatprep.subr.mxu0 0.0
  %1595 = vmatpush1.msra.mxu0 %v32
  %1596 = vmatprep.subr.mxu0 0.0
  %1597 = vmatpush1.msra.mxu0 %v31
  %1598 = vmatprep.subr.mxu0 0.0
  %1599 = vmatpush1.msra.mxu0 %v30
  %1600 = vmatprep.subr.mxu0 0.0
  %1601 = vmatpush2.msra.mxu0 0.0
  %1602 = vmatprep.subr.mxu0 0.0
  %1603 = vmatpush2.msra.mxu0 0.0
  %1604 = vmatprep.subr.mxu0 0.0
  %1605 = vmatpush2.msra.mxu0 0.0
  %1606 = vmatprep.subr.mxu0 0.0
  %1607 = vmatpush2.msra.mxu0 0.0
  %1608 = vmatprep.subr.mxu0 0.0
  %1609 = vmatpush2.msra.mxu0 0.0
  %1610 = vmatprep.subr.mxu0 0.0
  %1611 = vmatpush2.msra.mxu0 0.0
  %1612 = vmatprep.subr.mxu0 0.0
  %1613 = vmatpush2.msra.mxu0 0.0
  %1614 = vmatprep.subr.mxu0 0.0
  %1615 = vmatpush2.msra.mxu0 0.0
  %1616 = vmatprep.subr.mxu0 0.0
  %1617 = vmatpush2.msra.mxu0 0.0
  %1618 = vmatprep.subr.mxu0 0.0
  %1619 = vmatpush2.msra.mxu0 0.0
  %1620 = vmatprep.subr.mxu0 0.0
  %1621 = vmatpush2.msra.mxu0 0.0
  %1622 = vmatprep.subr.mxu0 0.0
  %1623 = vmatpush2.msra.mxu0 0.0
  %1624 = vmatprep.subr.mxu0 0.0
  %1625 = vmatpush2.msra.mxu0 0.0
  %1626 = vmatprep.subr.mxu0 0.0
  %1627 = vmatpush2.msra.mxu0 0.0
  %1628 = vmatprep.subr.mxu0 0.0
  %1629 = vmatpush2.msra.mxu0 0.0
  %1630 = vmatprep.subr.mxu0 0.0
  %1631 = vmatpush2.msra.mxu0 0.0
  %1632 = vmatprep.mubr.f32.mxu0 0.0
  %1633 = vmatmul.mubr.f32.gmra.mxu0 %v1496
  %v1634 = vpop.f32.mrf.mxu0
  %v1635 = vadd.f32 0.0, %v1634
  %v1636 = vpop.f32.mrf.mxu0
  %1637 = vdwg.mxu0
  %1638 = vmatprep.subr.mxu0 0.0
  %1639 = vmatpush1.msra.mxu0 0.0
  %1640 = vmatprep.subr.mxu0 0.0
  %1641 = vmatpush1.msra.mxu0 0.0
  %1642 = vmatprep.subr.mxu0 0.0
  %1643 = vmatpush1.msra.mxu0 0.0
  %1644 = vmatprep.subr.mxu0 0.0
  %1645 = vmatpush1.msra.mxu0 0.0
  %1646 = vmatprep.subr.mxu0 0.0
  %1647 = vmatpush1.msra.mxu0 0.0
  %1648 = vmatprep.subr.mxu0 0.0
  %1649 = vmatpush1.msra.mxu0 0.0
  %1650 = vmatprep.subr.mxu0 0.0
  %1651 = vmatpush1.msra.mxu0 0.0
  %1652 = vmatprep.subr.mxu0 0.0
  %1653 = vmatpush1.msra.mxu0 0.0
  %1654 = vmatprep.subr.mxu0 0.0
  %1655 = vmatpush1.msra.mxu0 0.0
  %1656 = vmatprep.subr.mxu0 0.0
  %1657 = vmatpush1.msra.mxu0 0.0
  %1658 = vmatprep.subr.mxu0 0.0
  %1659 = vmatpush1.msra.mxu0 0.0
  %1660 = vmatprep.subr.mxu0 0.0
  %1661 = vmatpush1.msra.mxu0 0.0
  %1662 = vmatprep.subr.mxu0 0.0
  %1663 = vmatpush1.msra.mxu0 %v37
  %1664 = vmatprep.subr.mxu0 0.0
  %1665 = vmatpush1.msra.mxu0 %v36
  %1666 = vmatprep.subr.mxu0 0.0
  %1667 = vmatpush1.msra.mxu0 %v35
  %1668 = vmatprep.subr.mxu0 0.0
  %1669 = vmatpush1.msra.mxu0 %v34
  %1670 = vmatprep.subr.mxu0 0.0
  %1671 = vmatpush2.msra.mxu0 0.0
  %1672 = vmatprep.subr.mxu0 0.0
  %1673 = vmatpush2.msra.mxu0 0.0
  %1674 = vmatprep.subr.mxu0 0.0
  %1675 = vmatpush2.msra.mxu0 0.0
  %1676 = vmatprep.subr.mxu0 0.0
  %1677 = vmatpush2.msra.mxu0 0.0
  %1678 = vmatprep.subr.mxu0 0.0
  %1679 = vmatpush2.msra.mxu0 0.0
  %1680 = vmatprep.subr.mxu0 0.0
  %1681 = vmatpush2.msra.mxu0 0.0
  %1682 = vmatprep.subr.mxu0 0.0
  %1683 = vmatpush2.msra.mxu0 0.0
  %1684 = vmatprep.subr.mxu0 0.0
  %1685 = vmatpush2.msra.mxu0 0.0
  %1686 = vmatprep.subr.mxu0 0.0
  %1687 = vmatpush2.msra.mxu0 0.0
  %1688 = vmatprep.subr.mxu0 0.0
  %1689 = vmatpush2.msra.mxu0 0.0
  %1690 = vmatprep.subr.mxu0 0.0
  %1691 = vmatpush2.msra.mxu0 0.0
  %1692 = vmatprep.subr.mxu0 0.0
  %1693 = vmatpush2.msra.mxu0 0.0
  %1694 = vmatprep.subr.mxu0 0.0
  %1695 = vmatpush2.msra.mxu0 0.0
  %1696 = vmatprep.subr.mxu0 0.0
  %1697 = vmatpush2.msra.mxu0 0.0
  %1698 = vmatprep.subr.mxu0 0.0
  %1699 = vmatpush2.msra.mxu0 0.0
  %1700 = vmatprep.subr.mxu0 0.0
  %1701 = vmatpush2.msra.mxu0 0.0
  %1702 = vmatprep.mubr.f32.mxu0 0.0
  %1703 = vmatmul.mubr.f32.gmra.mxu0 %v1496
  %v1704 = vpop.f32.mrf.mxu0
  %v1705 = vadd.f32 %v43, %v1704
  %v1706 = vpop.f32.mrf.mxu0
  %1707 = vdwg.mxu0
  %s1708 = scalar_lea.vmem %s0, 12
  %v1709 = vld [vmem:[%s1708] sm:$0x3]
  %v1710 = vadd.f32 %v1709, %v1565
  %v1711 = vxor.u32 %v1710, 2147483648
  %v1712 = vmul.f32 %v1711, 1.442695
  %v1713 = vpow.pop %v1712
  %v1714 = vadd.f32 %v1713, 1.0
  %v1715 = vrcp.pop %v1714
  %v1716 = vmul.f32 1.0, %v1715
  %s1717 = scalar_lea.vmem %s1, 12
  %v1718 = vld [vmem:[%s1717] sm:$0x3]
  %v1719 = vadd.f32 %v1718, %v1635
  %v1720 = vxor.u32 %v1719, 2147483648
  %v1721 = vmul.f32 %v1720, 1.442695
  %v1722 = vpow.pop %v1721
  %v1723 = vadd.f32 %v1722, 1.0
  %v1724 = vrcp.pop %v1723
  %v1725 = vmul.f32 1.0, %v1724
  %s1726 = scalar_lea.vmem %s2, 12
  %v1727 = vld [vmem:[%s1726] sm:$0x3]
  %v1728 = vmul.f32 %v1716, %v1705
  %v1729 = vadd.f32 %v1727, %v1728
  %v1730 = vtanh.pop %v1729
  %v1731 = vsub.f32 1.0, %v1725
  %v1732 = vmul.f32 %v1731, %v1730
  %v1733 = vmul.f32 %v1725, %v1492
  %v1734 = vadd.f32 %v1732, %v1733
  %s1735 = scalar_lea.vmem %s7, 12
  %1736 = vst.msk [vmem:[%s1735] sm:$0x3] %vm283, %v1734
  %v1738 = vsel %vm45, %v1734, 0
  %1740 = vmatprep.subr.mxu0 0.0
  %1741 = vmatpush1.msra.mxu0 0.0
  %1742 = vmatprep.subr.mxu0 0.0
  %1743 = vmatpush1.msra.mxu0 0.0
  %1744 = vmatprep.subr.mxu0 0.0
  %1745 = vmatpush1.msra.mxu0 0.0
  %1746 = vmatprep.subr.mxu0 0.0
  %1747 = vmatpush1.msra.mxu0 0.0
  %1748 = vmatprep.subr.mxu0 0.0
  %1749 = vmatpush1.msra.mxu0 0.0
  %1750 = vmatprep.subr.mxu0 0.0
  %1751 = vmatpush1.msra.mxu0 0.0
  %1752 = vmatprep.subr.mxu0 0.0
  %1753 = vmatpush1.msra.mxu0 0.0
  %1754 = vmatprep.subr.mxu0 0.0
  %1755 = vmatpush1.msra.mxu0 0.0
  %1756 = vmatprep.subr.mxu0 0.0
  %1757 = vmatpush1.msra.mxu0 0.0
  %1758 = vmatprep.subr.mxu0 0.0
  %1759 = vmatpush1.msra.mxu0 0.0
  %1760 = vmatprep.subr.mxu0 0.0
  %1761 = vmatpush1.msra.mxu0 0.0
  %1762 = vmatprep.subr.mxu0 0.0
  %1763 = vmatpush1.msra.mxu0 0.0
  %1764 = vmatprep.subr.mxu0 0.0
  %1765 = vmatpush1.msra.mxu0 %v29
  %1766 = vmatprep.subr.mxu0 0.0
  %1767 = vmatpush1.msra.mxu0 %v28
  %1768 = vmatprep.subr.mxu0 0.0
  %1769 = vmatpush1.msra.mxu0 %v27
  %1770 = vmatprep.subr.mxu0 0.0
  %1771 = vmatpush1.msra.mxu0 %v26
  %1772 = vmatprep.subr.mxu0 0.0
  %1773 = vmatpush2.msra.mxu0 0.0
  %1774 = vmatprep.subr.mxu0 0.0
  %1775 = vmatpush2.msra.mxu0 0.0
  %1776 = vmatprep.subr.mxu0 0.0
  %1777 = vmatpush2.msra.mxu0 0.0
  %1778 = vmatprep.subr.mxu0 0.0
  %1779 = vmatpush2.msra.mxu0 0.0
  %1780 = vmatprep.subr.mxu0 0.0
  %1781 = vmatpush2.msra.mxu0 0.0
  %1782 = vmatprep.subr.mxu0 0.0
  %1783 = vmatpush2.msra.mxu0 0.0
  %1784 = vmatprep.subr.mxu0 0.0
  %1785 = vmatpush2.msra.mxu0 0.0
  %1786 = vmatprep.subr.mxu0 0.0
  %1787 = vmatpush2.msra.mxu0 0.0
  %1788 = vmatprep.subr.mxu0 0.0
  %1789 = vmatpush2.msra.mxu0 0.0
  %1790 = vmatprep.subr.mxu0 0.0
  %1791 = vmatpush2.msra.mxu0 0.0
  %1792 = vmatprep.subr.mxu0 0.0
  %1793 = vmatpush2.msra.mxu0 0.0
  %1794 = vmatprep.subr.mxu0 0.0
  %1795 = vmatpush2.msra.mxu0 0.0
  %1796 = vmatprep.subr.mxu0 0.0
  %1797 = vmatpush2.msra.mxu0 0.0
  %1798 = vmatprep.subr.mxu0 0.0
  %1799 = vmatpush2.msra.mxu0 0.0
  %1800 = vmatprep.subr.mxu0 0.0
  %1801 = vmatpush2.msra.mxu0 0.0
  %1802 = vmatprep.subr.mxu0 0.0
  %1803 = vmatpush2.msra.mxu0 0.0
  %1804 = vmatprep.mubr.f32.mxu0 0.0
  %1805 = vmatmul.mubr.f32.gmra.mxu0 %v1738
  %v1806 = vpop.f32.mrf.mxu0
  %v1807 = vadd.f32 0.0, %v1806
  %v1808 = vpop.f32.mrf.mxu0
  %1809 = vdwg.mxu0
  %1810 = vmatprep.subr.mxu0 0.0
  %1811 = vmatpush1.msra.mxu0 0.0
  %1812 = vmatprep.subr.mxu0 0.0
  %1813 = vmatpush1.msra.mxu0 0.0
  %1814 = vmatprep.subr.mxu0 0.0
  %1815 = vmatpush1.msra.mxu0 0.0
  %1816 = vmatprep.subr.mxu0 0.0
  %1817 = vmatpush1.msra.mxu0 0.0
  %1818 = vmatprep.subr.mxu0 0.0
  %1819 = vmatpush1.msra.mxu0 0.0
  %1820 = vmatprep.subr.mxu0 0.0
  %1821 = vmatpush1.msra.mxu0 0.0
  %1822 = vmatprep.subr.mxu0 0.0
  %1823 = vmatpush1.msra.mxu0 0.0
  %1824 = vmatprep.subr.mxu0 0.0
  %1825 = vmatpush1.msra.mxu0 0.0
  %1826 = vmatprep.subr.mxu0 0.0
  %1827 = vmatpush1.msra.mxu0 0.0
  %1828 = vmatprep.subr.mxu0 0.0
  %1829 = vmatpush1.msra.mxu0 0.0
  %1830 = vmatprep.subr.mxu0 0.0
  %1831 = vmatpush1.msra.mxu0 0.0
  %1832 = vmatprep.subr.mxu0 0.0
  %1833 = vmatpush1.msra.mxu0 0.0
  %1834 = vmatprep.subr.mxu0 0.0
  %1835 = vmatpush1.msra.mxu0 %v33
  %1836 = vmatprep.subr.mxu0 0.0
  %1837 = vmatpush1.msra.mxu0 %v32
  %1838 = vmatprep.subr.mxu0 0.0
  %1839 = vmatpush1.msra.mxu0 %v31
  %1840 = vmatprep.subr.mxu0 0.0
  %1841 = vmatpush1.msra.mxu0 %v30
  %1842 = vmatprep.subr.mxu0 0.0
  %1843 = vmatpush2.msra.mxu0 0.0
  %1844 = vmatprep.subr.mxu0 0.0
  %1845 = vmatpush2.msra.mxu0 0.0
  %1846 = vmatprep.subr.mxu0 0.0
  %1847 = vmatpush2.msra.mxu0 0.0
  %1848 = vmatprep.subr.mxu0 0.0
  %1849 = vmatpush2.msra.mxu0 0.0
  %1850 = vmatprep.subr.mxu0 0.0
  %1851 = vmatpush2.msra.mxu0 0.0
  %1852 = vmatprep.subr.mxu0 0.0
  %1853 = vmatpush2.msra.mxu0 0.0
  %1854 = vmatprep.subr.mxu0 0.0
  %1855 = vmatpush2.msra.mxu0 0.0
  %1856 = vmatprep.subr.mxu0 0.0
  %1857 = vmatpush2.msra.mxu0 0.0
  %1858 = vmatprep.subr.mxu0 0.0
  %1859 = vmatpush2.msra.mxu0 0.0
  %1860 = vmatprep.subr.mxu0 0.0
  %1861 = vmatpush2.msra.mxu0 0.0
  %1862 = vmatprep.subr.mxu0 0.0
  %1863 = vmatpush2.msra.mxu0 0.0
  %1864 = vmatprep.subr.mxu0 0.0
  %1865 = vmatpush2.msra.mxu0 0.0
  %1866 = vmatprep.subr.mxu0 0.0
  %1867 = vmatpush2.msra.mxu0 0.0
  %1868 = vmatprep.subr.mxu0 0.0
  %1869 = vmatpush2.msra.mxu0 0.0
  %1870 = vmatprep.subr.mxu0 0.0
  %1871 = vmatpush2.msra.mxu0 0.0
  %1872 = vmatprep.subr.mxu0 0.0
  %1873 = vmatpush2.msra.mxu0 0.0
  %1874 = vmatprep.mubr.f32.mxu0 0.0
  %1875 = vmatmul.mubr.f32.gmra.mxu0 %v1738
  %v1876 = vpop.f32.mrf.mxu0
  %v1877 = vadd.f32 0.0, %v1876
  %v1878 = vpop.f32.mrf.mxu0
  %1879 = vdwg.mxu0
  %1880 = vmatprep.subr.mxu0 0.0
  %1881 = vmatpush1.msra.mxu0 0.0
  %1882 = vmatprep.subr.mxu0 0.0
  %1883 = vmatpush1.msra.mxu0 0.0
  %1884 = vmatprep.subr.mxu0 0.0
  %1885 = vmatpush1.msra.mxu0 0.0
  %1886 = vmatprep.subr.mxu0 0.0
  %1887 = vmatpush1.msra.mxu0 0.0
  %1888 = vmatprep.subr.mxu0 0.0
  %1889 = vmatpush1.msra.mxu0 0.0
  %1890 = vmatprep.subr.mxu0 0.0
  %1891 = vmatpush1.msra.mxu0 0.0
  %1892 = vmatprep.subr.mxu0 0.0
  %1893 = vmatpush1.msra.mxu0 0.0
  %1894 = vmatprep.subr.mxu0 0.0
  %1895 = vmatpush1.msra.mxu0 0.0
  %1896 = vmatprep.subr.mxu0 0.0
  %1897 = vmatpush1.msra.mxu0 0.0
  %1898 = vmatprep.subr.mxu0 0.0
  %1899 = vmatpush1.msra.mxu0 0.0
  %1900 = vmatprep.subr.mxu0 0.0
  %1901 = vmatpush1.msra.mxu0 0.0
  %1902 = vmatprep.subr.mxu0 0.0
  %1903 = vmatpush1.msra.mxu0 0.0
  %1904 = vmatprep.subr.mxu0 0.0
  %1905 = vmatpush1.msra.mxu0 %v37
  %1906 = vmatprep.subr.mxu0 0.0
  %1907 = vmatpush1.msra.mxu0 %v36
  %1908 = vmatprep.subr.mxu0 0.0
  %1909 = vmatpush1.msra.mxu0 %v35
  %1910 = vmatprep.subr.mxu0 0.0
  %1911 = vmatpush1.msra.mxu0 %v34
  %1912 = vmatprep.subr.mxu0 0.0
  %1913 = vmatpush2.msra.mxu0 0.0
  %1914 = vmatprep.subr.mxu0 0.0
  %1915 = vmatpush2.msra.mxu0 0.0
  %1916 = vmatprep.subr.mxu0 0.0
  %1917 = vmatpush2.msra.mxu0 0.0
  %1918 = vmatprep.subr.mxu0 0.0
  %1919 = vmatpush2.msra.mxu0 0.0
  %1920 = vmatprep.subr.mxu0 0.0
  %1921 = vmatpush2.msra.mxu0 0.0
  %1922 = vmatprep.subr.mxu0 0.0
  %1923 = vmatpush2.msra.mxu0 0.0
  %1924 = vmatprep.subr.mxu0 0.0
  %1925 = vmatpush2.msra.mxu0 0.0
  %1926 = vmatprep.subr.mxu0 0.0
  %1927 = vmatpush2.msra.mxu0 0.0
  %1928 = vmatprep.subr.mxu0 0.0
  %1929 = vmatpush2.msra.mxu0 0.0
  %1930 = vmatprep.subr.mxu0 0.0
  %1931 = vmatpush2.msra.mxu0 0.0
  %1932 = vmatprep.subr.mxu0 0.0
  %1933 = vmatpush2.msra.mxu0 0.0
  %1934 = vmatprep.subr.mxu0 0.0
  %1935 = vmatpush2.msra.mxu0 0.0
  %1936 = vmatprep.subr.mxu0 0.0
  %1937 = vmatpush2.msra.mxu0 0.0
  %1938 = vmatprep.subr.mxu0 0.0
  %1939 = vmatpush2.msra.mxu0 0.0
  %1940 = vmatprep.subr.mxu0 0.0
  %1941 = vmatpush2.msra.mxu0 0.0
  %1942 = vmatprep.subr.mxu0 0.0
  %1943 = vmatpush2.msra.mxu0 0.0
  %1944 = vmatprep.mubr.f32.mxu0 0.0
  %1945 = vmatmul.mubr.f32.gmra.mxu0 %v1738
  %v1946 = vpop.f32.mrf.mxu0
  %v1947 = vadd.f32 %v43, %v1946
  %v1948 = vpop.f32.mrf.mxu0
  %1949 = vdwg.mxu0
  %s1950 = scalar_lea.vmem %s0, 14
  %v1951 = vld [vmem:[%s1950] sm:$0x3]
  %v1952 = vadd.f32 %v1951, %v1807
  %v1953 = vxor.u32 %v1952, 2147483648
  %v1954 = vmul.f32 %v1953, 1.442695
  %v1955 = vpow.pop %v1954
  %v1956 = vadd.f32 %v1955, 1.0
  %v1957 = vrcp.pop %v1956
  %v1958 = vmul.f32 1.0, %v1957
  %s1959 = scalar_lea.vmem %s1, 14
  %v1960 = vld [vmem:[%s1959] sm:$0x3]
  %v1961 = vadd.f32 %v1960, %v1877
  %v1962 = vxor.u32 %v1961, 2147483648
  %v1963 = vmul.f32 %v1962, 1.442695
  %v1964 = vpow.pop %v1963
  %v1965 = vadd.f32 %v1964, 1.0
  %v1966 = vrcp.pop %v1965
  %v1967 = vmul.f32 1.0, %v1966
  %s1968 = scalar_lea.vmem %s2, 14
  %v1969 = vld [vmem:[%s1968] sm:$0x3]
  %v1970 = vmul.f32 %v1958, %v1947
  %v1971 = vadd.f32 %v1969, %v1970
  %v1972 = vtanh.pop %v1971
  %v1973 = vsub.f32 1.0, %v1967
  %v1974 = vmul.f32 %v1973, %v1972
  %v1975 = vmul.f32 %v1967, %v1734
  %v1976 = vadd.f32 %v1974, %v1975
  %s1977 = scalar_lea.vmem %s7, 14
  %1978 = vst.msk [vmem:[%s1977] sm:$0x3] %vm283, %v1976
  // Predicated region
  $region30: #{classifier_forward.3} parent=0 // pred_check
    _
  $region31: #{classifier_forward.3} parent=0 // pred_check_branch
    %1980 = sbr.rel (0) target = $region33
  $region32: #{classifier_forward.3} parent=0 // pred_region
    _
  $region33: #{classifier_forward.3} parent=0 // pred_fallthru
    _
  // Predicated region
  $region34: #{classifier_forward.3} parent=0 // pred_check
    _
  $region35: #{classifier_forward.3} parent=0 // pred_check_branch
    %1982 = sbr.rel (0) target = $region37
  $region36: #{classifier_forward.3} parent=0 // pred_region
    _
  $region37: #{classifier_forward.3} parent=0 // pred_fallthru
    _

</llo_original>
